<compile_context>
chip_gen: v7x
topology: tpu7x:2x2x1
jax: 0.10.0
libtpu: 0.0.40
codegen_flags: <defaults>
</compile_context>

<pallas_src>
import jax
import jax.numpy as jnp
from jax import lax
from jax.experimental import pallas as pl
from jax.experimental.pallas import tpu as pltpu

PACK = 8     # batch rows packed per lane-dense row (f32 sublane count)
LANE = 128   # TPU lane width


def _cdiv(a, b):
    return (a + b - 1) // b


def _round_up(a, m):
    return _cdiv(a, m) * m


# -----------------------------------------------------------------------------
# in-kernel math
# -----------------------------------------------------------------------------
# TODO(synk): switch to lax.erf in-kernel once Mosaic guarantees an erf lowering; the
# A&S 7.1.26 polynomial below is |err| <= 1.5e-7 and keeps the transcendental on the EUP.
def _erf_approx(x):
    a = jnp.abs(x)
    t = 1.0 / (1.0 + 0.3275911 * a)
    poly = t * (0.254829592 + t * (-0.284496736 + t * (1.421413741
               + t * (-1.453152027 + t * 1.061405429))))
    y = 1.0 - poly * jnp.exp(-(a * a))
    return jnp.where(x < 0.0, -y, y)


def _gelu_k(v):
    # matches torch: (v * 0.5) * (erf(v * 0.7071067811865476) + 1)
    return (v * 0.5) * (_erf_approx(v * 0.7071067811865476) + 1.0)


def mlp_kernel(x_ref, w1_ref, b1_ref, w2_ref, b2_ref,
               w3_ref, b3_ref, w4_ref, b4_ref, o_ref):
    x = x_ref[...]                                                     # (tp, 768)

    v1 = jnp.dot(x, w1_ref[...], preferred_element_type=jnp.float32) + b1_ref[...]
    v12 = _gelu_k(jnp.tanh(_gelu_k(v1)))                               # (tp, 128) dense

    v13 = jnp.dot(v12, w2_ref[...], preferred_element_type=jnp.float32) + b2_ref[...]
    v19 = jnp.tanh(_gelu_k(v13))                                       # (tp, 512) dense

    v20 = jnp.dot(v19, w3_ref[...], preferred_element_type=jnp.float32) + b3_ref[...]
    v25 = _gelu_k(v20)                                                 # (tp, 512) dense

    o_ref[...] = (jnp.dot(v25, w4_ref[...], preferred_element_type=jnp.float32)
                  + b4_ref[...]).astype(o_ref.dtype)                   # (tp, 1024) dense store


# -----------------------------------------------------------------------------
# parameter preparation (wrapper-side, one-time)
# -----------------------------------------------------------------------------
def init_linear_params(key, in_dim, out_dim):
    # PyTorch default Linear init: U(-1/sqrt(in), 1/sqrt(in)); weight stored as (in, out).
    kw, kb = jax.random.split(key)
    bound = 1.0 / jnp.sqrt(jnp.float32(in_dim))
    w = jax.random.uniform(kw, (in_dim, out_dim), jnp.float32, -bound, bound)
    b = jax.random.uniform(kb, (1, out_dim), jnp.float32, -bound, bound)
    return w, b


def _block_diag(w, pack):
    in_d, out_d = w.shape
    bd = jnp.zeros((pack * in_d, pack * out_d), w.dtype)
    for j in range(pack):
        bd = bd.at[j * in_d:(j + 1) * in_d, j * out_d:(j + 1) * out_d].set(w)
    return bd


def pack_params(params, pack=PACK, lane=LANE):
    """Block-diagonalise the four Linear layers so `pack` batch rows ride one
    lane-dense row; the last layer is zero-padded to `lane` output columns.
    All padding is exact zeros -> numerically inert."""
    (w1, b1), (w2, b2), (w3, b3), (w4, b4) = params
    out_dim = w4.shape[1]
    w4p = jnp.zeros((w4.shape[0], lane), w4.dtype).at[:, :out_dim].set(w4)
    b4p = jnp.zeros((1, lane), b4.dtype).at[:, :out_dim].set(b4)
    packed = (
        _block_diag(w1, pack), jnp.tile(b1, (1, pack)),
        _block_diag(w2, pack), jnp.tile(b2, (1, pack)),
        _block_diag(w3, pack), jnp.tile(b3, (1, pack)),
        _block_diag(w4p, pack), jnp.tile(b4p, (1, pack)),
    )
    return packed, out_dim


# -----------------------------------------------------------------------------
# forward wrapper
# -----------------------------------------------------------------------------
def mlp_forward(x, packed_params, out_dim, max_rows_per_tile=1024):
    """x: (B, 96) f32.  packed_params from pack_params().  Returns (B, out_dim) f32."""
    w1, b1, w2, b2, w3, b3, w4, b4 = packed_params
    B, in_dim = x.shape
    packed_in = PACK * in_dim           # 768
    packed_out = w4.shape[1]            # 1024 (= PACK * LANE)

    # packed-row tiling with bounded ragged-tail waste
    bp = _cdiv(B, PACK)                               # packed rows needed
    max_tile_p = max(8, max_rows_per_tile // PACK)    # packed rows per grid step
    n_tiles = _cdiv(bp, max_tile_p)
    tile_p = _round_up(_cdiv(bp, n_tiles), 8)         # multiple of 8 sublanes
    bp_pad = _round_up(bp, tile_p)
    b_pad = bp_pad * PACK

    if b_pad != B:
        x = jnp.pad(x, ((0, b_pad - B), (0, 0)))
    xp = x.reshape(bp_pad, packed_in)   # free row-major repack: 8 rows -> 1 dense row

    grid = (bp_pad // tile_p,)

    def _const_spec(arr):
        # whole array, constant block index -> fetched once, VMEM-resident across steps
        return pl.BlockSpec(arr.shape, lambda i: (0, 0))

    flops = 2 * bp_pad * (packed_in * w1.shape[1] + w2.shape[0] * w2.shape[1]
                          + w3.shape[0] * w3.shape[1] + w4.shape[0] * packed_out)
    transcendentals = bp_pad * (3 * w1.shape[1] + 2 * w2.shape[1] + w3.shape[1])
    bytes_accessed = 4 * (bp_pad * (packed_in + packed_out)
                          + sum(int(a.size) for a in packed_params))

    out = pl.pallas_call(
        mlp_kernel,
        out_shape=jax.ShapeDtypeStruct((bp_pad, packed_out), jnp.float32),
        grid=grid,
        in_specs=[
            pl.BlockSpec((tile_p, packed_in), lambda i: (i, 0)),   # x: packed row tiles
            _const_spec(w1), _const_spec(b1),
            _const_spec(w2), _const_spec(b2),
            _const_spec(w3), _const_spec(b3),
            _const_spec(w4), _const_spec(b4),
        ],
        out_specs=pl.BlockSpec((tile_p, packed_out), lambda i: (i, 0)),
        compiler_params=pltpu.CompilerParams(
            # NOTE: if profiling shows one idle TensorCore on v7x, switch this axis
            # to pltpu.CORE_PARALLEL (plain "parallel" is only a hint).
            dimension_semantics=("parallel",),
            vmem_limit_bytes=32 * 1024 * 1024),
        cost_estimate=pl.CostEstimate(flops=flops,
                                      transcendentals=transcendentals,
                                      bytes_accessed=bytes_accessed),
    )(xp, w1, b1, w2, b2, w3, b3, w4, b4)

    # (bp_pad, 8*128) -> (b_pad, 128) is again a free row-major reshape; slice real rows/cols.
    return out.reshape(b_pad, LANE)[:B, :out_dim]


# -----------------------------------------------------------------------------
# pure-JAX reference (unpacked params, exact erf, highest-precision matmuls)
# -----------------------------------------------------------------------------
def _gelu_ref(v):
    return (v * 0.5) * (lax.erf(v * 0.7071067811865476) + 1.0)


def reference_forward(x, params):
    (w1, b1), (w2, b2), (w3, b3), (w4, b4) = params
    hp = lax.Precision.HIGHEST
    v1 = jnp.dot(x, w1, precision=hp) + b1
    v12 = _gelu_ref(jnp.tanh(_gelu_ref(v1)))
    v13 = jnp.dot(v12, w2, precision=hp) + b2
    v19 = jnp.tanh(_gelu_ref(v13))
    v20 = jnp.dot(v19, w3, precision=hp) + b3
    v25 = _gelu_ref(v20)
    return jnp.dot(v25, w4, precision=hp) + b4


if __name__ == "__main__":
    key = jax.random.PRNGKey(0)
    kx, kx2, k1, k2, k3, k4 = jax.random.split(key, 6)

    params = (
        init_linear_params(k1, 96, 16),
        init_linear_params(k2, 16, 64),
        init_linear_params(k3, 64, 64),
        init_linear_params(k4, 64, 10),
    )
    packed, out_dim = pack_params(params)

    # module takes (batch, 96); original script used batch=1, we use batch=2
    x = jax.random.normal(kx, (2, 96), jnp.float32)
    out = jax.block_until_ready(mlp_forward(x, packed, out_dim))
    ref = reference_forward(x, params)
    assert out.shape == (2, 10)
    assert jnp.allclose(out, ref, atol=5e-4, rtol=5e-4), "mismatch vs reference (B=2)"

    # exercise a multi-step grid with a ragged tail (B=200 -> 4 grid steps of 64 rows)
    x2 = jax.random.normal(kx2, (200, 96), jnp.float32)
    out2 = jax.block_until_ready(mlp_forward(x2, packed, out_dim, max_rows_per_tile=64))
    ref2 = reference_forward(x2, params)
    assert out2.shape == (200, 10)
    assert jnp.allclose(out2, ref2, atol=5e-4, rtol=5e-4), "mismatch vs reference (B=200)"

    print("KERNEL_OK")
</pallas_src>

<mosaic_0001>
module attributes {stable_mosaic.version = 11 : i64} {
  func.func @mlp_kernel(%arg0: i32, %arg1: memref<8x768xf32, #tpu.memory_space<vmem>>, %arg2: memref<768x128xf32, #tpu.memory_space<vmem>>, %arg3: memref<1x128xf32, #tpu.memory_space<vmem>>, %arg4: memref<128x512xf32, #tpu.memory_space<vmem>>, %arg5: memref<1x512xf32, #tpu.memory_space<vmem>>, %arg6: memref<512x512xf32, #tpu.memory_space<vmem>>, %arg7: memref<1x512xf32, #tpu.memory_space<vmem>>, %arg8: memref<512x1024xf32, #tpu.memory_space<vmem>>, %arg9: memref<1x1024xf32, #tpu.memory_space<vmem>>, %arg10: memref<8x1024xf32, #tpu.memory_space<vmem>>) attributes {dimension_semantics = [#tpu.dimension_semantics<parallel>], iteration_bounds = array<i64: 1>, scalar_prefetch = 0 : i64, scratch_operands = 0 : i64, tpu.core_type = #tpu.core_type<tc>, window_params = [{transform_indices = @transform_0, window_bounds = array<i64: 8, 768>}, {pipeline_mode = #tpu.pipeline_mode<synchronous>, transform_indices = @transform_1, window_bounds = array<i64: 768, 128>}, {pipeline_mode = #tpu.pipeline_mode<synchronous>, transform_indices = @transform_2, window_bounds = array<i64: 1, 128>}, {pipeline_mode = #tpu.pipeline_mode<synchronous>, transform_indices = @transform_3, window_bounds = array<i64: 128, 512>}, {pipeline_mode = #tpu.pipeline_mode<synchronous>, transform_indices = @transform_4, window_bounds = array<i64: 1, 512>}, {pipeline_mode = #tpu.pipeline_mode<synchronous>, transform_indices = @transform_5, window_bounds = array<i64: 512, 512>}, {pipeline_mode = #tpu.pipeline_mode<synchronous>, transform_indices = @transform_6, window_bounds = array<i64: 1, 512>}, {pipeline_mode = #tpu.pipeline_mode<synchronous>, transform_indices = @transform_7, window_bounds = array<i64: 512, 1024>}, {pipeline_mode = #tpu.pipeline_mode<synchronous>, transform_indices = @transform_8, window_bounds = array<i64: 1, 1024>}, {transform_indices = @transform_9, window_bounds = array<i64: 8, 1024>}]} {
    %c0 = arith.constant 0 : index
    %c0_0 = arith.constant 0 : index
    %0 = vector.load %arg1[%c0, %c0_0] : memref<8x768xf32, #tpu.memory_space<vmem>>, vector<8x768xf32>
    %c0_1 = arith.constant 0 : index
    %c0_2 = arith.constant 0 : index
    %1 = vector.load %arg2[%c0_1, %c0_2] : memref<768x128xf32, #tpu.memory_space<vmem>>, vector<768x128xf32>
    %cst = arith.constant dense<0.000000e+00> : vector<8x128xf32>
    %2 = tpu.matmul %0, %1, %cst {dimension_numbers = #tpu.dot_dimension_numbers<[1], [0], [0], [1], [0, 0, 1, 1], [], []>} : vector<8x768xf32>, vector<768x128xf32>, vector<8x128xf32> -> vector<8x128xf32>
    %c0_3 = arith.constant 0 : index
    %c0_4 = arith.constant 0 : index
    %3 = vector.load %arg3[%c0_3, %c0_4] : memref<1x128xf32, #tpu.memory_space<vmem>>, vector<1x128xf32>
    %4 = vector.broadcast %3 : vector<1x128xf32> to vector<8x128xf32>
    %5 = arith.addf %2, %4 : vector<8x128xf32>
    %cst_5 = arith.constant 5.000000e-01 : f32
    %6 = vector.broadcast %cst_5 : f32 to vector<8x128xf32>
    %7 = arith.mulf %5, %6 : vector<8x128xf32>
    %cst_6 = arith.constant 0.707106769 : f32
    %8 = vector.broadcast %cst_6 : f32 to vector<8x128xf32>
    %9 = arith.mulf %5, %8 : vector<8x128xf32>
    %10 = math.absf %9 : vector<8x128xf32>
    %cst_7 = arith.constant 0.327591091 : f32
    %11 = vector.broadcast %cst_7 : f32 to vector<8x128xf32>
    %12 = arith.mulf %11, %10 : vector<8x128xf32>
    %cst_8 = arith.constant 1.000000e+00 : f32
    %13 = vector.broadcast %cst_8 : f32 to vector<8x128xf32>
    %14 = arith.addf %13, %12 : vector<8x128xf32>
    %cst_9 = arith.constant 1.000000e+00 : f32
    %15 = vector.broadcast %cst_9 : f32 to vector<8x128xf32>
    %16 = arith.divf %15, %14 : vector<8x128xf32>
    %cst_10 = arith.constant 1.06140542 : f32
    %17 = vector.broadcast %cst_10 : f32 to vector<8x128xf32>
    %18 = arith.mulf %16, %17 : vector<8x128xf32>
    %cst_11 = arith.constant -1.45315206 : f32
    %19 = vector.broadcast %cst_11 : f32 to vector<8x128xf32>
    %20 = arith.addf %19, %18 : vector<8x128xf32>
    %21 = arith.mulf %16, %20 : vector<8x128xf32>
    %cst_12 = arith.constant 1.42141378 : f32
    %22 = vector.broadcast %cst_12 : f32 to vector<8x128xf32>
    %23 = arith.addf %22, %21 : vector<8x128xf32>
    %24 = arith.mulf %16, %23 : vector<8x128xf32>
    %cst_13 = arith.constant -0.284496725 : f32
    %25 = vector.broadcast %cst_13 : f32 to vector<8x128xf32>
    %26 = arith.addf %25, %24 : vector<8x128xf32>
    %27 = arith.mulf %16, %26 : vector<8x128xf32>
    %cst_14 = arith.constant 0.254829586 : f32
    %28 = vector.broadcast %cst_14 : f32 to vector<8x128xf32>
    %29 = arith.addf %28, %27 : vector<8x128xf32>
    %30 = arith.mulf %16, %29 : vector<8x128xf32>
    %31 = arith.mulf %10, %10 : vector<8x128xf32>
    %cst_15 = arith.constant 0.000000e+00 : f32
    %32 = vector.broadcast %cst_15 : f32 to vector<8x128xf32>
    %33 = arith.subf %32, %31 : vector<8x128xf32>
    %34 = math.exp %33 : vector<8x128xf32>
    %35 = arith.mulf %30, %34 : vector<8x128xf32>
    %cst_16 = arith.constant 1.000000e+00 : f32
    %36 = vector.broadcast %cst_16 : f32 to vector<8x128xf32>
    %37 = arith.subf %36, %35 : vector<8x128xf32>
    %cst_17 = arith.constant 0.000000e+00 : f32
    %38 = vector.broadcast %cst_17 : f32 to vector<8x128xf32>
    %39 = arith.cmpf olt, %9, %38 : vector<8x128xf32>
    %cst_18 = arith.constant 0.000000e+00 : f32
    %40 = vector.broadcast %cst_18 : f32 to vector<8x128xf32>
    %41 = arith.subf %40, %37 : vector<8x128xf32>
    %42 = arith.select %39, %41, %37 : vector<8x128xi1>, vector<8x128xf32>
    %cst_19 = arith.constant 1.000000e+00 : f32
    %43 = vector.broadcast %cst_19 : f32 to vector<8x128xf32>
    %44 = arith.addf %42, %43 : vector<8x128xf32>
    %45 = arith.mulf %7, %44 : vector<8x128xf32>
    %46 = math.tanh %45 : vector<8x128xf32>
    %cst_20 = arith.constant 5.000000e-01 : f32
    %47 = vector.broadcast %cst_20 : f32 to vector<8x128xf32>
    %48 = arith.mulf %46, %47 : vector<8x128xf32>
    %cst_21 = arith.constant 0.707106769 : f32
    %49 = vector.broadcast %cst_21 : f32 to vector<8x128xf32>
    %50 = arith.mulf %46, %49 : vector<8x128xf32>
    %51 = math.absf %50 : vector<8x128xf32>
    %cst_22 = arith.constant 0.327591091 : f32
    %52 = vector.broadcast %cst_22 : f32 to vector<8x128xf32>
    %53 = arith.mulf %52, %51 : vector<8x128xf32>
    %cst_23 = arith.constant 1.000000e+00 : f32
    %54 = vector.broadcast %cst_23 : f32 to vector<8x128xf32>
    %55 = arith.addf %54, %53 : vector<8x128xf32>
    %cst_24 = arith.constant 1.000000e+00 : f32
    %56 = vector.broadcast %cst_24 : f32 to vector<8x128xf32>
    %57 = arith.divf %56, %55 : vector<8x128xf32>
    %cst_25 = arith.constant 1.06140542 : f32
    %58 = vector.broadcast %cst_25 : f32 to vector<8x128xf32>
    %59 = arith.mulf %57, %58 : vector<8x128xf32>
    %cst_26 = arith.constant -1.45315206 : f32
    %60 = vector.broadcast %cst_26 : f32 to vector<8x128xf32>
    %61 = arith.addf %60, %59 : vector<8x128xf32>
    %62 = arith.mulf %57, %61 : vector<8x128xf32>
    %cst_27 = arith.constant 1.42141378 : f32
    %63 = vector.broadcast %cst_27 : f32 to vector<8x128xf32>
    %64 = arith.addf %63, %62 : vector<8x128xf32>
    %65 = arith.mulf %57, %64 : vector<8x128xf32>
    %cst_28 = arith.constant -0.284496725 : f32
    %66 = vector.broadcast %cst_28 : f32 to vector<8x128xf32>
    %67 = arith.addf %66, %65 : vector<8x128xf32>
    %68 = arith.mulf %57, %67 : vector<8x128xf32>
    %cst_29 = arith.constant 0.254829586 : f32
    %69 = vector.broadcast %cst_29 : f32 to vector<8x128xf32>
    %70 = arith.addf %69, %68 : vector<8x128xf32>
    %71 = arith.mulf %57, %70 : vector<8x128xf32>
    %72 = arith.mulf %51, %51 : vector<8x128xf32>
    %cst_30 = arith.constant 0.000000e+00 : f32
    %73 = vector.broadcast %cst_30 : f32 to vector<8x128xf32>
    %74 = arith.subf %73, %72 : vector<8x128xf32>
    %75 = math.exp %74 : vector<8x128xf32>
    %76 = arith.mulf %71, %75 : vector<8x128xf32>
    %cst_31 = arith.constant 1.000000e+00 : f32
    %77 = vector.broadcast %cst_31 : f32 to vector<8x128xf32>
    %78 = arith.subf %77, %76 : vector<8x128xf32>
    %cst_32 = arith.constant 0.000000e+00 : f32
    %79 = vector.broadcast %cst_32 : f32 to vector<8x128xf32>
    %80 = arith.cmpf olt, %50, %79 : vector<8x128xf32>
    %cst_33 = arith.constant 0.000000e+00 : f32
    %81 = vector.broadcast %cst_33 : f32 to vector<8x128xf32>
    %82 = arith.subf %81, %78 : vector<8x128xf32>
    %83 = arith.select %80, %82, %78 : vector<8x128xi1>, vector<8x128xf32>
    %cst_34 = arith.constant 1.000000e+00 : f32
    %84 = vector.broadcast %cst_34 : f32 to vector<8x128xf32>
    %85 = arith.addf %83, %84 : vector<8x128xf32>
    %86 = arith.mulf %48, %85 : vector<8x128xf32>
    %c0_35 = arith.constant 0 : index
    %c0_36 = arith.constant 0 : index
    %87 = vector.load %arg4[%c0_35, %c0_36] : memref<128x512xf32, #tpu.memory_space<vmem>>, vector<128x512xf32>
    %cst_37 = arith.constant dense<0.000000e+00> : vector<8x512xf32>
    %88 = tpu.matmul %86, %87, %cst_37 {dimension_numbers = #tpu.dot_dimension_numbers<[1], [0], [0], [1], [0, 0, 1, 1], [], []>} : vector<8x128xf32>, vector<128x512xf32>, vector<8x512xf32> -> vector<8x512xf32>
    %c0_38 = arith.constant 0 : index
    %c0_39 = arith.constant 0 : index
    %89 = vector.load %arg5[%c0_38, %c0_39] : memref<1x512xf32, #tpu.memory_space<vmem>>, vector<1x512xf32>
    %90 = vector.broadcast %89 : vector<1x512xf32> to vector<8x512xf32>
    %91 = arith.addf %88, %90 : vector<8x512xf32>
    %cst_40 = arith.constant 5.000000e-01 : f32
    %92 = vector.broadcast %cst_40 : f32 to vector<8x512xf32>
    %93 = arith.mulf %91, %92 : vector<8x512xf32>
    %cst_41 = arith.constant 0.707106769 : f32
    %94 = vector.broadcast %cst_41 : f32 to vector<8x512xf32>
    %95 = arith.mulf %91, %94 : vector<8x512xf32>
    %96 = math.absf %95 : vector<8x512xf32>
    %cst_42 = arith.constant 0.327591091 : f32
    %97 = vector.broadcast %cst_42 : f32 to vector<8x512xf32>
    %98 = arith.mulf %97, %96 : vector<8x512xf32>
    %cst_43 = arith.constant 1.000000e+00 : f32
    %99 = vector.broadcast %cst_43 : f32 to vector<8x512xf32>
    %100 = arith.addf %99, %98 : vector<8x512xf32>
    %cst_44 = arith.constant 1.000000e+00 : f32
    %101 = vector.broadcast %cst_44 : f32 to vector<8x512xf32>
    %102 = arith.divf %101, %100 : vector<8x512xf32>
    %cst_45 = arith.constant 1.06140542 : f32
    %103 = vector.broadcast %cst_45 : f32 to vector<8x512xf32>
    %104 = arith.mulf %102, %103 : vector<8x512xf32>
    %cst_46 = arith.constant -1.45315206 : f32
    %105 = vector.broadcast %cst_46 : f32 to vector<8x512xf32>
    %106 = arith.addf %105, %104 : vector<8x512xf32>
    %107 = arith.mulf %102, %106 : vector<8x512xf32>
    %cst_47 = arith.constant 1.42141378 : f32
    %108 = vector.broadcast %cst_47 : f32 to vector<8x512xf32>
    %109 = arith.addf %108, %107 : vector<8x512xf32>
    %110 = arith.mulf %102, %109 : vector<8x512xf32>
    %cst_48 = arith.constant -0.284496725 : f32
    %111 = vector.broadcast %cst_48 : f32 to vector<8x512xf32>
    %112 = arith.addf %111, %110 : vector<8x512xf32>
    %113 = arith.mulf %102, %112 : vector<8x512xf32>
    %cst_49 = arith.constant 0.254829586 : f32
    %114 = vector.broadcast %cst_49 : f32 to vector<8x512xf32>
    %115 = arith.addf %114, %113 : vector<8x512xf32>
    %116 = arith.mulf %102, %115 : vector<8x512xf32>
    %117 = arith.mulf %96, %96 : vector<8x512xf32>
    %cst_50 = arith.constant 0.000000e+00 : f32
    %118 = vector.broadcast %cst_50 : f32 to vector<8x512xf32>
    %119 = arith.subf %118, %117 : vector<8x512xf32>
    %120 = math.exp %119 : vector<8x512xf32>
    %121 = arith.mulf %116, %120 : vector<8x512xf32>
    %cst_51 = arith.constant 1.000000e+00 : f32
    %122 = vector.broadcast %cst_51 : f32 to vector<8x512xf32>
    %123 = arith.subf %122, %121 : vector<8x512xf32>
    %cst_52 = arith.constant 0.000000e+00 : f32
    %124 = vector.broadcast %cst_52 : f32 to vector<8x512xf32>
    %125 = arith.cmpf olt, %95, %124 : vector<8x512xf32>
    %cst_53 = arith.constant 0.000000e+00 : f32
    %126 = vector.broadcast %cst_53 : f32 to vector<8x512xf32>
    %127 = arith.subf %126, %123 : vector<8x512xf32>
    %128 = arith.select %125, %127, %123 : vector<8x512xi1>, vector<8x512xf32>
    %cst_54 = arith.constant 1.000000e+00 : f32
    %129 = vector.broadcast %cst_54 : f32 to vector<8x512xf32>
    %130 = arith.addf %128, %129 : vector<8x512xf32>
    %131 = arith.mulf %93, %130 : vector<8x512xf32>
    %132 = math.tanh %131 : vector<8x512xf32>
    %c0_55 = arith.constant 0 : index
    %c0_56 = arith.constant 0 : index
    %133 = vector.load %arg6[%c0_55, %c0_56] : memref<512x512xf32, #tpu.memory_space<vmem>>, vector<512x512xf32>
    %cst_57 = arith.constant dense<0.000000e+00> : vector<8x512xf32>
    %134 = tpu.matmul %132, %133, %cst_57 {dimension_numbers = #tpu.dot_dimension_numbers<[1], [0], [0], [1], [0, 0, 1, 1], [], []>} : vector<8x512xf32>, vector<512x512xf32>, vector<8x512xf32> -> vector<8x512xf32>
    %c0_58 = arith.constant 0 : index
    %c0_59 = arith.constant 0 : index
    %135 = vector.load %arg7[%c0_58, %c0_59] : memref<1x512xf32, #tpu.memory_space<vmem>>, vector<1x512xf32>
    %136 = vector.broadcast %135 : vector<1x512xf32> to vector<8x512xf32>
    %137 = arith.addf %134, %136 : vector<8x512xf32>
    %cst_60 = arith.constant 5.000000e-01 : f32
    %138 = vector.broadcast %cst_60 : f32 to vector<8x512xf32>
    %139 = arith.mulf %137, %138 : vector<8x512xf32>
    %cst_61 = arith.constant 0.707106769 : f32
    %140 = vector.broadcast %cst_61 : f32 to vector<8x512xf32>
    %141 = arith.mulf %137, %140 : vector<8x512xf32>
    %142 = math.absf %141 : vector<8x512xf32>
    %cst_62 = arith.constant 0.327591091 : f32
    %143 = vector.broadcast %cst_62 : f32 to vector<8x512xf32>
    %144 = arith.mulf %143, %142 : vector<8x512xf32>
    %cst_63 = arith.constant 1.000000e+00 : f32
    %145 = vector.broadcast %cst_63 : f32 to vector<8x512xf32>
    %146 = arith.addf %145, %144 : vector<8x512xf32>
    %cst_64 = arith.constant 1.000000e+00 : f32
    %147 = vector.broadcast %cst_64 : f32 to vector<8x512xf32>
    %148 = arith.divf %147, %146 : vector<8x512xf32>
    %cst_65 = arith.constant 1.06140542 : f32
    %149 = vector.broadcast %cst_65 : f32 to vector<8x512xf32>
    %150 = arith.mulf %148, %149 : vector<8x512xf32>
    %cst_66 = arith.constant -1.45315206 : f32
    %151 = vector.broadcast %cst_66 : f32 to vector<8x512xf32>
    %152 = arith.addf %151, %150 : vector<8x512xf32>
    %153 = arith.mulf %148, %152 : vector<8x512xf32>
    %cst_67 = arith.constant 1.42141378 : f32
    %154 = vector.broadcast %cst_67 : f32 to vector<8x512xf32>
    %155 = arith.addf %154, %153 : vector<8x512xf32>
    %156 = arith.mulf %148, %155 : vector<8x512xf32>
    %cst_68 = arith.constant -0.284496725 : f32
    %157 = vector.broadcast %cst_68 : f32 to vector<8x512xf32>
    %158 = arith.addf %157, %156 : vector<8x512xf32>
    %159 = arith.mulf %148, %158 : vector<8x512xf32>
    %cst_69 = arith.constant 0.254829586 : f32
    %160 = vector.broadcast %cst_69 : f32 to vector<8x512xf32>
    %161 = arith.addf %160, %159 : vector<8x512xf32>
    %162 = arith.mulf %148, %161 : vector<8x512xf32>
    %163 = arith.mulf %142, %142 : vector<8x512xf32>
    %cst_70 = arith.constant 0.000000e+00 : f32
    %164 = vector.broadcast %cst_70 : f32 to vector<8x512xf32>
    %165 = arith.subf %164, %163 : vector<8x512xf32>
    %166 = math.exp %165 : vector<8x512xf32>
    %167 = arith.mulf %162, %166 : vector<8x512xf32>
    %cst_71 = arith.constant 1.000000e+00 : f32
    %168 = vector.broadcast %cst_71 : f32 to vector<8x512xf32>
    %169 = arith.subf %168, %167 : vector<8x512xf32>
    %cst_72 = arith.constant 0.000000e+00 : f32
    %170 = vector.broadcast %cst_72 : f32 to vector<8x512xf32>
    %171 = arith.cmpf olt, %141, %170 : vector<8x512xf32>
    %cst_73 = arith.constant 0.000000e+00 : f32
    %172 = vector.broadcast %cst_73 : f32 to vector<8x512xf32>
    %173 = arith.subf %172, %169 : vector<8x512xf32>
    %174 = arith.select %171, %173, %169 : vector<8x512xi1>, vector<8x512xf32>
    %cst_74 = arith.constant 1.000000e+00 : f32
    %175 = vector.broadcast %cst_74 : f32 to vector<8x512xf32>
    %176 = arith.addf %174, %175 : vector<8x512xf32>
    %177 = arith.mulf %139, %176 : vector<8x512xf32>
    %c0_75 = arith.constant 0 : index
    %c0_76 = arith.constant 0 : index
    %178 = vector.load %arg8[%c0_75, %c0_76] : memref<512x1024xf32, #tpu.memory_space<vmem>>, vector<512x1024xf32>
    %cst_77 = arith.constant dense<0.000000e+00> : vector<8x1024xf32>
    %179 = tpu.matmul %177, %178, %cst_77 {dimension_numbers = #tpu.dot_dimension_numbers<[1], [0], [0], [1], [0, 0, 1, 1], [], []>} : vector<8x512xf32>, vector<512x1024xf32>, vector<8x1024xf32> -> vector<8x1024xf32>
    %c0_78 = arith.constant 0 : index
    %c0_79 = arith.constant 0 : index
    %180 = vector.load %arg9[%c0_78, %c0_79] : memref<1x1024xf32, #tpu.memory_space<vmem>>, vector<1x1024xf32>
    %181 = vector.broadcast %180 : vector<1x1024xf32> to vector<8x1024xf32>
    %182 = arith.addf %179, %181 : vector<8x1024xf32>
    %c0_80 = arith.constant 0 : index
    %c0_81 = arith.constant 0 : index
    %183 = vector.load %arg10[%c0_80, %c0_81] : memref<8x1024xf32, #tpu.memory_space<vmem>>, vector<8x1024xf32>
    tpu.vector_store %arg10[%c0_80, %c0_81], %182 {strides = array<i32>} : memref<8x1024xf32, #tpu.memory_space<vmem>>, vector<8x1024xf32>,
    return
  }
  func.func @transform_0(%arg0: i32) -> (i32, i32) {
    %c0_i32 = arith.constant 0 : i32
    %c0_i32_0 = arith.constant 0 : i32
    return %arg0, %c0_i32 : i32, i32
  }
  func.func @transform_1(%arg0: i32) -> (i32, i32) {
    %c0_i32 = arith.constant 0 : i32
    %c0_i32_0 = arith.constant 0 : i32
    %c0_i32_1 = arith.constant 0 : i32
    return %c0_i32, %c0_i32_0 : i32, i32
  }
  func.func @transform_2(%arg0: i32) -> (i32, i32) {
    %c0_i32 = arith.constant 0 : i32
    %c0_i32_0 = arith.constant 0 : i32
    %c0_i32_1 = arith.constant 0 : i32
    return %c0_i32, %c0_i32_0 : i32, i32
  }
  func.func @transform_3(%arg0: i32) -> (i32, i32) {
    %c0_i32 = arith.constant 0 : i32
    %c0_i32_0 = arith.constant 0 : i32
    %c0_i32_1 = arith.constant 0 : i32
    return %c0_i32, %c0_i32_0 : i32, i32
  }
  func.func @transform_4(%arg0: i32) -> (i32, i32) {
    %c0_i32 = arith.constant 0 : i32
    %c0_i32_0 = arith.constant 0 : i32
    %c0_i32_1 = arith.constant 0 : i32
    return %c0_i32, %c0_i32_0 : i32, i32
  }
  func.func @transform_5(%arg0: i32) -> (i32, i32) {
    %c0_i32 = arith.constant 0 : i32
    %c0_i32_0 = arith.constant 0 : i32
    %c0_i32_1 = arith.constant 0 : i32
    return %c0_i32, %c0_i32_0 : i32, i32
  }
  func.func @transform_6(%arg0: i32) -> (i32, i32) {
    %c0_i32 = arith.constant 0 : i32
    %c0_i32_0 = arith.constant 0 : i32
    %c0_i32_1 = arith.constant 0 : i32
    return %c0_i32, %c0_i32_0 : i32, i32
  }
  func.func @transform_7(%arg0: i32) -> (i32, i32) {
    %c0_i32 = arith.constant 0 : i32
    %c0_i32_0 = arith.constant 0 : i32
    %c0_i32_1 = arith.constant 0 : i32
    return %c0_i32, %c0_i32_0 : i32, i32
  }
  func.func @transform_8(%arg0: i32) -> (i32, i32) {
    %c0_i32 = arith.constant 0 : i32
    %c0_i32_0 = arith.constant 0 : i32
    %c0_i32_1 = arith.constant 0 : i32
    return %c0_i32, %c0_i32_0 : i32, i32
  }
  func.func @transform_9(%arg0: i32) -> (i32, i32) {
    %c0_i32 = arith.constant 0 : i32
    %c0_i32_0 = arith.constant 0 : i32
    return %arg0, %c0_i32 : i32, i32
  }
}

</mosaic_0001>

<llo_original>
// kernel: tpu_custom_call.1
$region0: #{tpu_custom_call.1}
  #allocation0 [shape = 'u32[]', space=smem, size = 0x4, offset = 0x4, fixed_abs, tag = 'smem constant byte address 0x4 - core index']
  #allocation1 [shape = 'u32[144,128]{1,0:T(1,128)}', space=vmem, size = 0x12000, scoped, tag = 'internal scratch']
  %s0 = inlined_call_operand.hbm [shape: f32[8,768], index: 0, kind: input, shape index: {}]
  %s1 = inlined_call_operand.hbm [shape: f32[768,128], index: 1, kind: input, shape index: {}]
  %s2 = inlined_call_operand.hbm [shape: f32[1,128], index: 2, kind: input, shape index: {}]
  %s3 = inlined_call_operand.hbm [shape: f32[128,512], index: 3, kind: input, shape index: {}]
  %s4 = inlined_call_operand.hbm [shape: f32[1,512], index: 4, kind: input, shape index: {}]
  %s5 = inlined_call_operand.hbm [shape: f32[512,512], index: 5, kind: input, shape index: {}]
  %s6 = inlined_call_operand.hbm [shape: f32[1,512], index: 6, kind: input, shape index: {}]
  %s7 = inlined_call_operand.hbm [shape: f32[512,1024], index: 7, kind: input, shape index: {}]
  %s8 = inlined_call_operand.hbm [shape: f32[1,1024], index: 8, kind: input, shape index: {}]
  %s9 = inlined_call_operand.hbm [shape: f32[8,1024], index: 9, kind: output, shape index: {}]
  %s10 = sld [smem:[#allocation0]]
  $region82: #{tpu_custom_call.1} parent=0
    _
  %s12 = ssub.s32 1, %s10
  %s13 = scalar_select 0, %s12, %s10
  $region1: #{tpu_custom_call.1} parent=0
    #allocation2 [shape = 'u8[24576]{0}', space=vmem, size = 0x6000, scoped, tag = 'input window, operand 0, single buffered']
    #allocation3 [shape = 's32[1]{0}', space=sflag, size = 0x4, scoped, tag = 'scoped memory for tpu_custom_call.1']
    #allocation4 [shape = 's32[1]{0}', space=sflag, size = 0x4, scoped, tag = 'scoped memory for tpu_custom_call.1']
    #allocation5 [shape = 'u8[393216]{0}', space=vmem, size = 0x60000, scoped, tag = 'input window, operand 1, single buffered']
    #allocation6 [shape = 's32[1]{0}', space=sflag, size = 0x4, scoped, tag = 'scoped memory for tpu_custom_call.1']
    #allocation7 [shape = 'u8[512]{0}', space=vmem, size = 0x400, scoped, tag = 'input window, operand 2, single buffered']
    #allocation8 [shape = 'u8[262144]{0}', space=vmem, size = 0x40000, scoped, tag = 'input window, operand 3, single buffered']
    #allocation9 [shape = 's32[1]{0}', space=sflag, size = 0x4, scoped, tag = 'scoped memory for tpu_custom_call.1']
    #allocation10 [shape = 'u8[2048]{0}', space=vmem, size = 0x800, scoped, tag = 'input window, operand 4, single buffered']
    #allocation11 [shape = 'u8[1048576]{0}', space=vmem, size = 0x100000, scoped, tag = 'input window, operand 5, single buffered']
    #allocation12 [shape = 's32[1]{0}', space=sflag, size = 0x4, scoped, tag = 'scoped memory for tpu_custom_call.1']
    #allocation13 [shape = 'u8[2048]{0}', space=vmem, size = 0x800, scoped, tag = 'input window, operand 6, single buffered']
    #allocation14 [shape = 'u8[2097152]{0}', space=vmem, size = 0x200000, scoped, tag = 'input window, operand 7, single buffered']
    #allocation15 [shape = 's32[1]{0}', space=sflag, size = 0x4, scoped, tag = 'scoped memory for tpu_custom_call.1']
    #allocation16 [shape = 'u8[4096]{0}', space=vmem, size = 0x1000, scoped, tag = 'input window, operand 8, single buffered']
    #allocation17 [shape = 'u8[32768]{0}', space=vmem, size = 0x8000, scoped, tag = 'output window, operand 0, single buffered']
    %14 = vsyncpa [#allocation3], 0
    %15 = vsyncpa [#allocation6], 0
    %16 = vsyncpa [#allocation9], 0
    %17 = vsyncpa [#allocation12], 0
    %18 = vsyncpa [#allocation15], 0
    %19 = vsyncpa [#allocation4], 0
    // Predicated region
    $region2: #{tpu_custom_call.1} parent=1 // pred_check
      _
    $region3: #{tpu_custom_call.1} parent=1 // pred_check_branch
      %21 = sbr.rel (0) target = $region5
    $region4: #{tpu_custom_call.1} parent=1 // pred_region
      %s23 = ssub.s32 768, 768
      %24 = vsyncadd [#allocation3], %s23
      %s26 = sshll.u32 [#allocation2], 4
      %s27 = int_to_ptr.vmem [resolvable:$true] %s26
      %29 = dma.hbm_to_vmem [thread:$0]  %s0, 768, %s27, [#allocation3]
    $region5: #{tpu_custom_call.1} parent=1 // pred_fallthru
      _
    // Predicated region
    $region6: #{tpu_custom_call.1} parent=1 // pred_check
      _
    $region7: #{tpu_custom_call.1} parent=1 // pred_check_branch
      %31 = sbr.rel (0) target = $region9
    $region8: #{tpu_custom_call.1} parent=1 // pred_region
      %s33 = ssub.s32 12288, 12288
      %34 = vsyncadd [#allocation6], %s33
      %s35 = sshll.u32 [#allocation5], 4
      %s36 = int_to_ptr.vmem [resolvable:$true] %s35
      %41 = dma.hbm_to_vmem [thread:$0]  %s1, 12288, %s36, [#allocation6], 128, 128, 8
    $region9: #{tpu_custom_call.1} parent=1 // pred_fallthru
      _
    // Predicated region
    $region10: #{tpu_custom_call.1} parent=1 // pred_check
      _
    $region11: #{tpu_custom_call.1} parent=1 // pred_check_branch
      %43 = sbr.rel (0) target = $region13
    $region12: #{tpu_custom_call.1} parent=1 // pred_region
      %s45 = ssub.s32 16, 16
      %46 = vsyncadd [#allocation6], %s45
      %s48 = sshll.u32 [#allocation7], 4
      %s49 = int_to_ptr.vmem [resolvable:$true] %s48
      %51 = dma.hbm_to_vmem [thread:$0]  %s2, 16, %s49, [#allocation6]
    $region13: #{tpu_custom_call.1} parent=1 // pred_fallthru
      _
    // Predicated region
    $region14: #{tpu_custom_call.1} parent=1 // pred_check
      _
    $region15: #{tpu_custom_call.1} parent=1 // pred_check_branch
      %53 = sbr.rel (0) target = $region17
    $region16: #{tpu_custom_call.1} parent=1 // pred_region
      %s55 = ssub.s32 8192, 8192
      %56 = vsyncadd [#allocation9], %s55
      %s57 = sshll.u32 [#allocation8], 4
      %s58 = int_to_ptr.vmem [resolvable:$true] %s57
      %63 = dma.hbm_to_vmem [thread:$0]  %s3, 8192, %s58, [#allocation9], 512, 512, 32
    $region17: #{tpu_custom_call.1} parent=1 // pred_fallthru
      _
    // Predicated region
    $region18: #{tpu_custom_call.1} parent=1 // pred_check
      _
    $region19: #{tpu_custom_call.1} parent=1 // pred_check_branch
      %65 = sbr.rel (0) target = $region21
    $region20: #{tpu_custom_call.1} parent=1 // pred_region
      %s67 = ssub.s32 64, 64
      %68 = vsyncadd [#allocation9], %s67
      %s70 = sshll.u32 [#allocation10], 4
      %s71 = int_to_ptr.vmem [resolvable:$true] %s70
      %73 = dma.hbm_to_vmem [thread:$0]  %s4, 64, %s71, [#allocation9]
    $region21: #{tpu_custom_call.1} parent=1 // pred_fallthru
      _
    // Predicated region
    $region22: #{tpu_custom_call.1} parent=1 // pred_check
      _
    $region23: #{tpu_custom_call.1} parent=1 // pred_check_branch
      %75 = sbr.rel (0) target = $region25
    $region24: #{tpu_custom_call.1} parent=1 // pred_region
      %s77 = ssub.s32 32768, 32768
      %78 = vsyncadd [#allocation12], %s77
      %s79 = sshll.u32 [#allocation11], 4
      %s80 = int_to_ptr.vmem [resolvable:$true] %s79
      %85 = dma.hbm_to_vmem [thread:$0]  %s5, 32768, %s80, [#allocation12], 512, 512, 32
    $region25: #{tpu_custom_call.1} parent=1 // pred_fallthru
      _
    // Predicated region
    $region26: #{tpu_custom_call.1} parent=1 // pred_check
      _
    $region27: #{tpu_custom_call.1} parent=1 // pred_check_branch
      %87 = sbr.rel (0) target = $region29
    $region28: #{tpu_custom_call.1} parent=1 // pred_region
      %s89 = ssub.s32 64, 64
      %90 = vsyncadd [#allocation12], %s89
      %s92 = sshll.u32 [#allocation13], 4
      %s93 = int_to_ptr.vmem [resolvable:$true] %s92
      %95 = dma.hbm_to_vmem [thread:$0]  %s6, 64, %s93, [#allocation12]
    $region29: #{tpu_custom_call.1} parent=1 // pred_fallthru
      _
    // Predicated region
    $region30: #{tpu_custom_call.1} parent=1 // pred_check
      _
    $region31: #{tpu_custom_call.1} parent=1 // pred_check_branch
      %97 = sbr.rel (0) target = $region33
    $region32: #{tpu_custom_call.1} parent=1 // pred_region
      %s99 = ssub.s32 65536, 65536
      %100 = vsyncadd [#allocation15], %s99
      %s101 = sshll.u32 [#allocation14], 4
      %s102 = int_to_ptr.vmem [resolvable:$true] %s101
      %107 = dma.hbm_to_vmem [thread:$0]  %s7, 65536, %s102, [#allocation15], 1024, 1024, 64
    $region33: #{tpu_custom_call.1} parent=1 // pred_fallthru
      _
    // Predicated region
    $region34: #{tpu_custom_call.1} parent=1 // pred_check
      _
    $region35: #{tpu_custom_call.1} parent=1 // pred_check_branch
      %109 = sbr.rel (0) target = $region37
    $region36: #{tpu_custom_call.1} parent=1 // pred_region
      %s111 = ssub.s32 128, 128
      %112 = vsyncadd [#allocation15], %s111
      %s114 = sshll.u32 [#allocation16], 4
      %s115 = int_to_ptr.vmem [resolvable:$true] %s114
      %117 = dma.hbm_to_vmem [thread:$0]  %s8, 128, %s115, [#allocation15]
    $region37: #{tpu_custom_call.1} parent=1 // pred_fallthru
      _
    // Predicated region
    $region38: #{tpu_custom_call.1} parent=1 // pred_check
      _
    $region39: #{tpu_custom_call.1} parent=1 // pred_check_branch
      %119 = sbr.rel (0) target = $region41
    $region40: #{tpu_custom_call.1} parent=1 // pred_region
      %120 = dma.done [#allocation3], 768
    $region41: #{tpu_custom_call.1} parent=1 // pred_fallthru
      _
    // Predicated region
    $region42: #{tpu_custom_call.1} parent=1 // pred_check
      _
    $region43: #{tpu_custom_call.1} parent=1 // pred_check_branch
      %122 = sbr.rel (0) target = $region45
    $region44: #{tpu_custom_call.1} parent=1 // pred_region
      %123 = dma.done [#allocation6], 12288
    $region45: #{tpu_custom_call.1} parent=1 // pred_fallthru
      _
    // Predicated region
    $region46: #{tpu_custom_call.1} parent=1 // pred_check
      _
    $region47: #{tpu_custom_call.1} parent=1 // pred_check_branch
      %125 = sbr.rel (0) target = $region49
    $region48: #{tpu_custom_call.1} parent=1 // pred_region
      %126 = dma.done [#allocation6], 16
    $region49: #{tpu_custom_call.1} parent=1 // pred_fallthru
      _
    // Predicated region
    $region50: #{tpu_custom_call.1} parent=1 // pred_check
      _
    $region51: #{tpu_custom_call.1} parent=1 // pred_check_branch
      %128 = sbr.rel (0) target = $region53
    $region52: #{tpu_custom_call.1} parent=1 // pred_region
      %129 = dma.done [#allocation9], 8192
    $region53: #{tpu_custom_call.1} parent=1 // pred_fallthru
      _
    // Predicated region
    $region54: #{tpu_custom_call.1} parent=1 // pred_check
      _
    $region55: #{tpu_custom_call.1} parent=1 // pred_check_branch
      %131 = sbr.rel (0) target = $region57
    $region56: #{tpu_custom_call.1} parent=1 // pred_region
      %132 = dma.done [#allocation9], 64
    $region57: #{tpu_custom_call.1} parent=1 // pred_fallthru
      _
    // Predicated region
    $region58: #{tpu_custom_call.1} parent=1 // pred_check
      _
    $region59: #{tpu_custom_call.1} parent=1 // pred_check_branch
      %134 = sbr.rel (0) target = $region61
    $region60: #{tpu_custom_call.1} parent=1 // pred_region
      %135 = dma.done [#allocation12], 32768
    $region61: #{tpu_custom_call.1} parent=1 // pred_fallthru
      _
    // Predicated region
    $region62: #{tpu_custom_call.1} parent=1 // pred_check
      _
    $region63: #{tpu_custom_call.1} parent=1 // pred_check_branch
      %137 = sbr.rel (0) target = $region65
    $region64: #{tpu_custom_call.1} parent=1 // pred_region
      %138 = dma.done [#allocation12], 64
    $region65: #{tpu_custom_call.1} parent=1 // pred_fallthru
      _
    // Predicated region
    $region66: #{tpu_custom_call.1} parent=1 // pred_check
      _
    $region67: #{tpu_custom_call.1} parent=1 // pred_check_branch
      %140 = sbr.rel (0) target = $region69
    $region68: #{tpu_custom_call.1} parent=1 // pred_region
      %141 = dma.done [#allocation15], 65536
    $region69: #{tpu_custom_call.1} parent=1 // pred_fallthru
      _
    // Predicated region
    $region70: #{tpu_custom_call.1} parent=1 // pred_check
      _
    $region71: #{tpu_custom_call.1} parent=1 // pred_check_branch
      %143 = sbr.rel (0) target = $region73
    $region72: #{tpu_custom_call.1} parent=1 // pred_region
      %144 = dma.done [#allocation15], 128
    $region73: #{tpu_custom_call.1} parent=1 // pred_fallthru
      _
    %v145 = vld [vmem:[#allocation2] sm:$0xff]
    %v146 = vld [vmem:[#allocation2 + $0x8] sm:$0xff]
    %v147 = vld [vmem:[#allocation2 + $0x10] sm:$0xff]
    %v148 = vld [vmem:[#allocation2 + $0x18] sm:$0xff]
    %v149 = vld [vmem:[#allocation2 + $0x20] sm:$0xff]
    %v150 = vld [vmem:[#allocation2 + $0x28] sm:$0xff]
    %v151 = vld [vmem:[#allocation5] sm:$0xff]
    %v152 = vld [vmem:[#allocation5 + $0x8] sm:$0xff]
    %v153 = vld [vmem:[#allocation5 + $0x10] sm:$0xff]
    %v154 = vld [vmem:[#allocation5 + $0x18] sm:$0xff]
    %v155 = vld [vmem:[#allocation5 + $0x20] sm:$0xff]
    %v156 = vld [vmem:[#allocation5 + $0x28] sm:$0xff]
    %v157 = vld [vmem:[#allocation5 + $0x30] sm:$0xff]
    %v158 = vld [vmem:[#allocation5 + $0x38] sm:$0xff]
    %v159 = vld [vmem:[#allocation5 + $0x40] sm:$0xff]
    %v160 = vld [vmem:[#allocation5 + $0x48] sm:$0xff]
    %v161 = vld [vmem:[#allocation5 + $0x50] sm:$0xff]
    %v162 = vld [vmem:[#allocation5 + $0x58] sm:$0xff]
    %v163 = vld [vmem:[#allocation5 + $0x60] sm:$0xff]
    %v164 = vld [vmem:[#allocation5 + $0x68] sm:$0xff]
    %v165 = vld [vmem:[#allocation5 + $0x70] sm:$0xff]
    %v166 = vld [vmem:[#allocation5 + $0x78] sm:$0xff]
    %v167 = vld [vmem:[#allocation5 + $0x80] sm:$0xff]
    %v168 = vld [vmem:[#allocation5 + $0x88] sm:$0xff]
    %v169 = vld [vmem:[#allocation5 + $0x90] sm:$0xff]
    %v170 = vld [vmem:[#allocation5 + $0x98] sm:$0xff]
    %v171 = vld [vmem:[#allocation5 + $0xa0] sm:$0xff]
    %v172 = vld [vmem:[#allocation5 + $0xa8] sm:$0xff]
    %v173 = vld [vmem:[#allocation5 + $0xb0] sm:$0xff]
    %v174 = vld [vmem:[#allocation5 + $0xb8] sm:$0xff]
    %v175 = vld [vmem:[#allocation5 + $0xc0] sm:$0xff]
    %v176 = vld [vmem:[#allocation5 + $0xc8] sm:$0xff]
    %v177 = vld [vmem:[#allocation5 + $0xd0] sm:$0xff]
    %v178 = vld [vmem:[#allocation5 + $0xd8] sm:$0xff]
    %v179 = vld [vmem:[#allocation5 + $0xe0] sm:$0xff]
    %v180 = vld [vmem:[#allocation5 + $0xe8] sm:$0xff]
    %v181 = vld [vmem:[#allocation5 + $0xf0] sm:$0xff]
    %v182 = vld [vmem:[#allocation5 + $0xf8] sm:$0xff]
    %v183 = vld [vmem:[#allocation5 + $0x100] sm:$0xff]
    %v184 = vld [vmem:[#allocation5 + $0x108] sm:$0xff]
    %v185 = vld [vmem:[#allocation5 + $0x110] sm:$0xff]
    %v186 = vld [vmem:[#allocation5 + $0x118] sm:$0xff]
    %v187 = vld [vmem:[#allocation5 + $0x120] sm:$0xff]
    %v188 = vld [vmem:[#allocation5 + $0x128] sm:$0xff]
    %v189 = vld [vmem:[#allocation5 + $0x130] sm:$0xff]
    %v190 = vld [vmem:[#allocation5 + $0x138] sm:$0xff]
    %v191 = vld [vmem:[#allocation5 + $0x140] sm:$0xff]
    %v192 = vld [vmem:[#allocation5 + $0x148] sm:$0xff]
    %v193 = vld [vmem:[#allocation5 + $0x150] sm:$0xff]
    %v194 = vld [vmem:[#allocation5 + $0x158] sm:$0xff]
    %v195 = vld [vmem:[#allocation5 + $0x160] sm:$0xff]
    %v196 = vld [vmem:[#allocation5 + $0x168] sm:$0xff]
    %v197 = vld [vmem:[#allocation5 + $0x170] sm:$0xff]
    %v198 = vld [vmem:[#allocation5 + $0x178] sm:$0xff]
    %v199 = vld [vmem:[#allocation5 + $0x180] sm:$0xff]
    %v200 = vld [vmem:[#allocation5 + $0x188] sm:$0xff]
    %v201 = vld [vmem:[#allocation5 + $0x190] sm:$0xff]
    %v202 = vld [vmem:[#allocation5 + $0x198] sm:$0xff]
    %v203 = vld [vmem:[#allocation5 + $0x1a0] sm:$0xff]
    %v204 = vld [vmem:[#allocation5 + $0x1a8] sm:$0xff]
    %v205 = vld [vmem:[#allocation5 + $0x1b0] sm:$0xff]
    %v206 = vld [vmem:[#allocation5 + $0x1b8] sm:$0xff]
    %v207 = vld [vmem:[#allocation5 + $0x1c0] sm:$0xff]
    %v208 = vld [vmem:[#allocation5 + $0x1c8] sm:$0xff]
    %v209 = vld [vmem:[#allocation5 + $0x1d0] sm:$0xff]
    %v210 = vld [vmem:[#allocation5 + $0x1d8] sm:$0xff]
    %v211 = vld [vmem:[#allocation5 + $0x1e0] sm:$0xff]
    %v212 = vld [vmem:[#allocation5 + $0x1e8] sm:$0xff]
    %v213 = vld [vmem:[#allocation5 + $0x1f0] sm:$0xff]
    %v214 = vld [vmem:[#allocation5 + $0x1f8] sm:$0xff]
    %v215 = vld [vmem:[#allocation5 + $0x200] sm:$0xff]
    %v216 = vld [vmem:[#allocation5 + $0x208] sm:$0xff]
    %v217 = vld [vmem:[#allocation5 + $0x210] sm:$0xff]
    %v218 = vld [vmem:[#allocation5 + $0x218] sm:$0xff]
    %v219 = vld [vmem:[#allocation5 + $0x220] sm:$0xff]
    %v220 = vld [vmem:[#allocation5 + $0x228] sm:$0xff]
    %v221 = vld [vmem:[#allocation5 + $0x230] sm:$0xff]
    %v222 = vld [vmem:[#allocation5 + $0x238] sm:$0xff]
    %v223 = vld [vmem:[#allocation5 + $0x240] sm:$0xff]
    %v224 = vld [vmem:[#allocation5 + $0x248] sm:$0xff]
    %v225 = vld [vmem:[#allocation5 + $0x250] sm:$0xff]
    %v226 = vld [vmem:[#allocation5 + $0x258] sm:$0xff]
    %v227 = vld [vmem:[#allocation5 + $0x260] sm:$0xff]
    %v228 = vld [vmem:[#allocation5 + $0x268] sm:$0xff]
    %v229 = vld [vmem:[#allocation5 + $0x270] sm:$0xff]
    %v230 = vld [vmem:[#allocation5 + $0x278] sm:$0xff]
    %v231 = vld [vmem:[#allocation5 + $0x280] sm:$0xff]
    %v232 = vld [vmem:[#allocation5 + $0x288] sm:$0xff]
    %v233 = vld [vmem:[#allocation5 + $0x290] sm:$0xff]
    %v234 = vld [vmem:[#allocation5 + $0x298] sm:$0xff]
    %v235 = vld [vmem:[#allocation5 + $0x2a0] sm:$0xff]
    %v236 = vld [vmem:[#allocation5 + $0x2a8] sm:$0xff]
    %v237 = vld [vmem:[#allocation5 + $0x2b0] sm:$0xff]
    %v238 = vld [vmem:[#allocation5 + $0x2b8] sm:$0xff]
    %v239 = vld [vmem:[#allocation5 + $0x2c0] sm:$0xff]
    %v240 = vld [vmem:[#allocation5 + $0x2c8] sm:$0xff]
    %v241 = vld [vmem:[#allocation5 + $0x2d0] sm:$0xff]
    %v242 = vld [vmem:[#allocation5 + $0x2d8] sm:$0xff]
    %v243 = vld [vmem:[#allocation5 + $0x2e0] sm:$0xff]
    %v244 = vld [vmem:[#allocation5 + $0x2e8] sm:$0xff]
    %v245 = vld [vmem:[#allocation5 + $0x2f0] sm:$0xff]
    %v246 = vld [vmem:[#allocation5 + $0x2f8] sm:$0xff]
    %v247 = vld [vmem:[#allocation7] sm:$0x1]
    %v249 = vlaneseq
    %v250 = vshrl.u32 %v249, 7
    %v251 = vsub.s32 0, %v250
    %v252 = vrot.slane %v247, %v251
    %254 = vmatprep.subr.mxu0 0.0
    %255 = vmatpush1.msra.mxu0 %v151
    %256 = vmatprep.subr.mxu0 0.0
    %257 = vmatpush1.msra.mxu0 %v152
    %258 = vmatprep.subr.mxu0 0.0
    %259 = vmatpush1.msra.mxu0 %v153
    %260 = vmatprep.subr.mxu0 0.0
    %261 = vmatpush1.msra.mxu0 %v154
    %262 = vmatprep.subr.mxu0 0.0
    %263 = vmatpush1.msra.mxu0 %v155
    %264 = vmatprep.subr.mxu0 0.0
    %265 = vmatpush1.msra.mxu0 %v156
    %266 = vmatprep.subr.mxu0 0.0
    %267 = vmatpush1.msra.mxu0 %v157
    %268 = vmatprep.subr.mxu0 0.0
    %269 = vmatpush1.msra.mxu0 %v158
    %270 = vmatprep.subr.mxu0 0.0
    %271 = vmatpush1.msra.mxu0 %v159
    %272 = vmatprep.subr.mxu0 0.0
    %273 = vmatpush1.msra.mxu0 %v160
    %274 = vmatprep.subr.mxu0 0.0
    %275 = vmatpush1.msra.mxu0 %v161
    %276 = vmatprep.subr.mxu0 0.0
    %277 = vmatpush1.msra.mxu0 %v162
    %278 = vmatprep.subr.mxu0 0.0
    %279 = vmatpush1.msra.mxu0 %v163
    %280 = vmatprep.subr.mxu0 0.0
    %281 = vmatpush1.msra.mxu0 %v164
    %282 = vmatprep.subr.mxu0 0.0
    %283 = vmatpush1.msra.mxu0 %v165
    %284 = vmatprep.subr.mxu0 0.0
    %285 = vmatpush1.msra.mxu0 %v166
    %286 = vmatprep.subr.mxu0 0.0
    %287 = vmatpush1.msra.mxu0 %v167
    %288 = vmatprep.subr.mxu0 0.0
    %289 = vmatpush1.msra.mxu0 %v168
    %290 = vmatprep.subr.mxu0 0.0
    %291 = vmatpush1.msra.mxu0 %v169
    %292 = vmatprep.subr.mxu0 0.0
    %293 = vmatpush1.msra.mxu0 %v170
    %294 = vmatprep.subr.mxu0 0.0
    %295 = vmatpush1.msra.mxu0 %v171
    %296 = vmatprep.subr.mxu0 0.0
    %297 = vmatpush1.msra.mxu0 %v172
    %298 = vmatprep.subr.mxu0 0.0
    %299 = vmatpush1.msra.mxu0 %v173
    %300 = vmatprep.subr.mxu0 0.0
    %301 = vmatpush1.msra.mxu0 %v174
    %302 = vmatprep.subr.mxu0 0.0
    %303 = vmatpush1.msra.mxu0 %v175
    %304 = vmatprep.subr.mxu0 0.0
    %305 = vmatpush1.msra.mxu0 %v176
    %306 = vmatprep.subr.mxu0 0.0
    %307 = vmatpush1.msra.mxu0 %v177
    %308 = vmatprep.subr.mxu0 0.0
    %309 = vmatpush1.msra.mxu0 %v178
    %310 = vmatprep.subr.mxu0 0.0
    %311 = vmatpush1.msra.mxu0 %v179
    %312 = vmatprep.subr.mxu0 0.0
    %313 = vmatpush1.msra.mxu0 %v180
    %314 = vmatprep.subr.mxu0 0.0
    %315 = vmatpush1.msra.mxu0 %v181
    %316 = vmatprep.subr.mxu0 0.0
    %317 = vmatpush1.msra.mxu0 %v182
    %318 = vmatprep.mubr.f32.mxu0 %v146
    %319 = vmatmul.mubr.f32.gmra.mrb[0].mxu0 %v145
    %v320 = vpop.f32.mrb[0].mxu0
    %v321 = vadd.f32 %v252, %v320
    %v322 = vpop.f32.mrb[0].mxu0
    %323 = vdwg.mxu0
    %324 = vmatprep.subr.mxu0 0.0
    %325 = vmatpush1.msra.mxu0 %v183
    %326 = vmatprep.subr.mxu0 0.0
    %327 = vmatpush1.msra.mxu0 %v184
    %328 = vmatprep.subr.mxu0 0.0
    %329 = vmatpush1.msra.mxu0 %v185
    %330 = vmatprep.subr.mxu0 0.0
    %331 = vmatpush1.msra.mxu0 %v186
    %332 = vmatprep.subr.mxu0 0.0
    %333 = vmatpush1.msra.mxu0 %v187
    %334 = vmatprep.subr.mxu0 0.0
    %335 = vmatpush1.msra.mxu0 %v188
    %336 = vmatprep.subr.mxu0 0.0
    %337 = vmatpush1.msra.mxu0 %v189
    %338 = vmatprep.subr.mxu0 0.0
    %339 = vmatpush1.msra.mxu0 %v190
    %340 = vmatprep.subr.mxu0 0.0
    %341 = vmatpush1.msra.mxu0 %v191
    %342 = vmatprep.subr.mxu0 0.0
    %343 = vmatpush1.msra.mxu0 %v192
    %344 = vmatprep.subr.mxu0 0.0
    %345 = vmatpush1.msra.mxu0 %v193
    %346 = vmatprep.subr.mxu0 0.0
    %347 = vmatpush1.msra.mxu0 %v194
    %348 = vmatprep.subr.mxu0 0.0
    %349 = vmatpush1.msra.mxu0 %v195
    %350 = vmatprep.subr.mxu0 0.0
    %351 = vmatpush1.msra.mxu0 %v196
    %352 = vmatprep.subr.mxu0 0.0
    %353 = vmatpush1.msra.mxu0 %v197
    %354 = vmatprep.subr.mxu0 0.0
    %355 = vmatpush1.msra.mxu0 %v198
    %356 = vmatprep.subr.mxu0 0.0
    %357 = vmatpush1.msra.mxu0 %v199
    %358 = vmatprep.subr.mxu0 0.0
    %359 = vmatpush1.msra.mxu0 %v200
    %360 = vmatprep.subr.mxu0 0.0
    %361 = vmatpush1.msra.mxu0 %v201
    %362 = vmatprep.subr.mxu0 0.0
    %363 = vmatpush1.msra.mxu0 %v202
    %364 = vmatprep.subr.mxu0 0.0
    %365 = vmatpush1.msra.mxu0 %v203
    %366 = vmatprep.subr.mxu0 0.0
    %367 = vmatpush1.msra.mxu0 %v204
    %368 = vmatprep.subr.mxu0 0.0
    %369 = vmatpush1.msra.mxu0 %v205
    %370 = vmatprep.subr.mxu0 0.0
    %371 = vmatpush1.msra.mxu0 %v206
    %372 = vmatprep.subr.mxu0 0.0
    %373 = vmatpush1.msra.mxu0 %v207
    %374 = vmatprep.subr.mxu0 0.0
    %375 = vmatpush1.msra.mxu0 %v208
    %376 = vmatprep.subr.mxu0 0.0
    %377 = vmatpush1.msra.mxu0 %v209
    %378 = vmatprep.subr.mxu0 0.0
    %379 = vmatpush1.msra.mxu0 %v210
    %380 = vmatprep.subr.mxu0 0.0
    %381 = vmatpush1.msra.mxu0 %v211
    %382 = vmatprep.subr.mxu0 0.0
    %383 = vmatpush1.msra.mxu0 %v212
    %384 = vmatprep.subr.mxu0 0.0
    %385 = vmatpush1.msra.mxu0 %v213
    %386 = vmatprep.subr.mxu0 0.0
    %387 = vmatpush1.msra.mxu0 %v214
    %388 = vmatprep.mubr.f32.mxu0 %v148
    %389 = vmatmul.mubr.f32.gmra.mrb[0].mxu0 %v147
    %v390 = vpop.f32.mrb[0].mxu0
    %v391 = vadd.f32 %v321, %v390
    %v392 = vpop.f32.mrb[0].mxu0
    %393 = vdwg.mxu0
    %394 = vmatprep.subr.mxu0 0.0
    %395 = vmatpush1.msra.mxu0 %v215
    %396 = vmatprep.subr.mxu0 0.0
    %397 = vmatpush1.msra.mxu0 %v216
    %398 = vmatprep.subr.mxu0 0.0
    %399 = vmatpush1.msra.mxu0 %v217
    %400 = vmatprep.subr.mxu0 0.0
    %401 = vmatpush1.msra.mxu0 %v218
    %402 = vmatprep.subr.mxu0 0.0
    %403 = vmatpush1.msra.mxu0 %v219
    %404 = vmatprep.subr.mxu0 0.0
    %405 = vmatpush1.msra.mxu0 %v220
    %406 = vmatprep.subr.mxu0 0.0
    %407 = vmatpush1.msra.mxu0 %v221
    %408 = vmatprep.subr.mxu0 0.0
    %409 = vmatpush1.msra.mxu0 %v222
    %410 = vmatprep.subr.mxu0 0.0
    %411 = vmatpush1.msra.mxu0 %v223
    %412 = vmatprep.subr.mxu0 0.0
    %413 = vmatpush1.msra.mxu0 %v224
    %414 = vmatprep.subr.mxu0 0.0
    %415 = vmatpush1.msra.mxu0 %v225
    %416 = vmatprep.subr.mxu0 0.0
    %417 = vmatpush1.msra.mxu0 %v226
    %418 = vmatprep.subr.mxu0 0.0
    %419 = vmatpush1.msra.mxu0 %v227
    %420 = vmatprep.subr.mxu0 0.0
    %421 = vmatpush1.msra.mxu0 %v228
    %422 = vmatprep.subr.mxu0 0.0
    %423 = vmatpush1.msra.mxu0 %v229
    %424 = vmatprep.subr.mxu0 0.0
    %425 = vmatpush1.msra.mxu0 %v230
    %426 = vmatprep.subr.mxu0 0.0
    %427 = vmatpush1.msra.mxu0 %v231
    %428 = vmatprep.subr.mxu0 0.0
    %429 = vmatpush1.msra.mxu0 %v232
    %430 = vmatprep.subr.mxu0 0.0
    %431 = vmatpush1.msra.mxu0 %v233
    %432 = vmatprep.subr.mxu0 0.0
    %433 = vmatpush1.msra.mxu0 %v234
    %434 = vmatprep.subr.mxu0 0.0
    %435 = vmatpush1.msra.mxu0 %v235
    %436 = vmatprep.subr.mxu0 0.0
    %437 = vmatpush1.msra.mxu0 %v236
    %438 = vmatprep.subr.mxu0 0.0
    %439 = vmatpush1.msra.mxu0 %v237
    %440 = vmatprep.subr.mxu0 0.0
    %441 = vmatpush1.msra.mxu0 %v238
    %442 = vmatprep.subr.mxu0 0.0
    %443 = vmatpush1.msra.mxu0 %v239
    %444 = vmatprep.subr.mxu0 0.0
    %445 = vmatpush1.msra.mxu0 %v240
    %446 = vmatprep.subr.mxu0 0.0
    %447 = vmatpush1.msra.mxu0 %v241
    %448 = vmatprep.subr.mxu0 0.0
    %449 = vmatpush1.msra.mxu0 %v242
    %450 = vmatprep.subr.mxu0 0.0
    %451 = vmatpush1.msra.mxu0 %v243
    %452 = vmatprep.subr.mxu0 0.0
    %453 = vmatpush1.msra.mxu0 %v244
    %454 = vmatprep.subr.mxu0 0.0
    %455 = vmatpush1.msra.mxu0 %v245
    %456 = vmatprep.subr.mxu0 0.0
    %457 = vmatpush1.msra.mxu0 %v246
    %458 = vmatprep.mubr.f32.mxu0 %v150
    %459 = vmatmul.mubr.f32.gmra.mrb[0].mxu0 %v149
    %v460 = vpop.f32.mrb[0].mxu0
    %v461 = vadd.f32 %v391, %v460
    %v462 = vpop.f32.mrb[0].mxu0
    %463 = vdwg.mxu0
    %v464 = vmul.f32 %v461, 0.5
    %v465 = vmul.f32 %v461, 0.70710677
    %v466 = vand.u32 2147483647, %v465
    %v467 = vmul.f32 %v466, 0.3275911
    %v468 = vadd.f32 %v467, 1.0
    %v469 = vrcp.pop %v468
    %v470 = vmul.f32 1.0, %v469
    %v471 = vmul.f32 %v470, 1.0614054
    %v472 = vadd.f32 %v471, -1.4531521
    %v473 = vmul.f32 %v470, %v472
    %v474 = vadd.f32 %v473, 1.4214138
    %v475 = vmul.f32 %v470, %v474
    %v476 = vadd.f32 %v475, -0.28449672
    %v477 = vmul.f32 %v470, %v476
    %v478 = vadd.f32 %v477, 0.2548296
    %v479 = vmul.f32 %v470, %v478
    %v480 = vmul.f32 %v466, %v466
    %v481 = vsub.f32 0.0, %v480
    %v482 = vmul.f32 %v481, 1.442695
    %v483 = vpow.pop %v482
    %v484 = vmul.f32 %v479, %v483
    %v485 = vsub.f32 1.0, %v484
    %vm486 = vcmp.lt.f32.partialorder %v465, 0.0
    %v487 = vsub.f32 0.0, %v485
    %v488 = vsel %vm486, %v487, %v485
    %v489 = vadd.f32 %v488, 1.0
    %v490 = vmul.f32 %v464, %v489
    %v491 = vtanh.pop %v490
    %v492 = vmul.f32 %v491, 0.5
    %v493 = vmul.f32 %v491, 0.70710677
    %v494 = vand.u32 2147483647, %v493
    %v495 = vmul.f32 %v494, 0.3275911
    %v496 = vadd.f32 %v495, 1.0
    %v497 = vrcp.pop %v496
    %v498 = vmul.f32 1.0, %v497
    %v499 = vmul.f32 %v498, 1.0614054
    %v500 = vadd.f32 %v499, -1.4531521
    %v501 = vmul.f32 %v498, %v500
    %v502 = vadd.f32 %v501, 1.4214138
    %v503 = vmul.f32 %v498, %v502
    %v504 = vadd.f32 %v503, -0.28449672
    %v505 = vmul.f32 %v498, %v504
    %v506 = vadd.f32 %v505, 0.2548296
    %v507 = vmul.f32 %v498, %v506
    %v508 = vmul.f32 %v494, %v494
    %v509 = vsub.f32 0.0, %v508
    %v510 = vmul.f32 %v509, 1.442695
    %v511 = vpow.pop %v510
    %v512 = vmul.f32 %v507, %v511
    %v513 = vsub.f32 1.0, %v512
    %vm514 = vcmp.lt.f32.partialorder %v493, 0.0
    %v515 = vsub.f32 0.0, %v513
    %v516 = vsel %vm514, %v515, %v513
    %v517 = vadd.f32 %v516, 1.0
    %v518 = vmul.f32 %v492, %v517
    %v519 = vld [vmem:[#allocation8] sm:$0xff]
    %v520 = vld [vmem:[#allocation8 + $0x8] sm:$0xff]
    %v521 = vld [vmem:[#allocation8 + $0x10] sm:$0xff]
    %v522 = vld [vmem:[#allocation8 + $0x18] sm:$0xff]
    %v523 = vld [vmem:[#allocation8 + $0x20] sm:$0xff]
    %v524 = vld [vmem:[#allocation8 + $0x28] sm:$0xff]
    %v525 = vld [vmem:[#allocation8 + $0x30] sm:$0xff]
    %v526 = vld [vmem:[#allocation8 + $0x38] sm:$0xff]
    %v527 = vld [vmem:[#allocation8 + $0x40] sm:$0xff]
    %v528 = vld [vmem:[#allocation8 + $0x48] sm:$0xff]
    %v529 = vld [vmem:[#allocation8 + $0x50] sm:$0xff]
    %v530 = vld [vmem:[#allocation8 + $0x58] sm:$0xff]
    %v531 = vld [vmem:[#allocation8 + $0x60] sm:$0xff]
    %v532 = vld [vmem:[#allocation8 + $0x68] sm:$0xff]
    %v533 = vld [vmem:[#allocation8 + $0x70] sm:$0xff]
    %v534 = vld [vmem:[#allocation8 + $0x78] sm:$0xff]
    %v535 = vld [vmem:[#allocation8 + $0x80] sm:$0xff]
    %v536 = vld [vmem:[#allocation8 + $0x88] sm:$0xff]
    %v537 = vld [vmem:[#allocation8 + $0x90] sm:$0xff]
    %v538 = vld [vmem:[#allocation8 + $0x98] sm:$0xff]
    %v539 = vld [vmem:[#allocation8 + $0xa0] sm:$0xff]
    %v540 = vld [vmem:[#allocation8 + $0xa8] sm:$0xff]
    %v541 = vld [vmem:[#allocation8 + $0xb0] sm:$0xff]
    %v542 = vld [vmem:[#allocation8 + $0xb8] sm:$0xff]
    %v543 = vld [vmem:[#allocation8 + $0xc0] sm:$0xff]
    %v544 = vld [vmem:[#allocation8 + $0xc8] sm:$0xff]
    %v545 = vld [vmem:[#allocation8 + $0xd0] sm:$0xff]
    %v546 = vld [vmem:[#allocation8 + $0xd8] sm:$0xff]
    %v547 = vld [vmem:[#allocation8 + $0xe0] sm:$0xff]
    %v548 = vld [vmem:[#allocation8 + $0xe8] sm:$0xff]
    %v549 = vld [vmem:[#allocation8 + $0xf0] sm:$0xff]
    %v550 = vld [vmem:[#allocation8 + $0xf8] sm:$0xff]
    %v551 = vld [vmem:[#allocation8 + $0x100] sm:$0xff]
    %v552 = vld [vmem:[#allocation8 + $0x108] sm:$0xff]
    %v553 = vld [vmem:[#allocation8 + $0x110] sm:$0xff]
    %v554 = vld [vmem:[#allocation8 + $0x118] sm:$0xff]
    %v555 = vld [vmem:[#allocation8 + $0x120] sm:$0xff]
    %v556 = vld [vmem:[#allocation8 + $0x128] sm:$0xff]
    %v557 = vld [vmem:[#allocation8 + $0x130] sm:$0xff]
    %v558 = vld [vmem:[#allocation8 + $0x138] sm:$0xff]
    %v559 = vld [vmem:[#allocation8 + $0x140] sm:$0xff]
    %v560 = vld [vmem:[#allocation8 + $0x148] sm:$0xff]
    %v561 = vld [vmem:[#allocation8 + $0x150] sm:$0xff]
    %v562 = vld [vmem:[#allocation8 + $0x158] sm:$0xff]
    %v563 = vld [vmem:[#allocation8 + $0x160] sm:$0xff]
    %v564 = vld [vmem:[#allocation8 + $0x168] sm:$0xff]
    %v565 = vld [vmem:[#allocation8 + $0x170] sm:$0xff]
    %v566 = vld [vmem:[#allocation8 + $0x178] sm:$0xff]
    %v567 = vld [vmem:[#allocation8 + $0x180] sm:$0xff]
    %v568 = vld [vmem:[#allocation8 + $0x188] sm:$0xff]
    %v569 = vld [vmem:[#allocation8 + $0x190] sm:$0xff]
    %v570 = vld [vmem:[#allocation8 + $0x198] sm:$0xff]
    %v571 = vld [vmem:[#allocation8 + $0x1a0] sm:$0xff]
    %v572 = vld [vmem:[#allocation8 + $0x1a8] sm:$0xff]
    %v573 = vld [vmem:[#allocation8 + $0x1b0] sm:$0xff]
    %v574 = vld [vmem:[#allocation8 + $0x1b8] sm:$0xff]
    %v575 = vld [vmem:[#allocation8 + $0x1c0] sm:$0xff]
    %v576 = vld [vmem:[#allocation8 + $0x1c8] sm:$0xff]
    %v577 = vld [vmem:[#allocation8 + $0x1d0] sm:$0xff]
    %v578 = vld [vmem:[#allocation8 + $0x1d8] sm:$0xff]
    %v579 = vld [vmem:[#allocation8 + $0x1e0] sm:$0xff]
    %v580 = vld [vmem:[#allocation8 + $0x1e8] sm:$0xff]
    %v581 = vld [vmem:[#allocation8 + $0x1f0] sm:$0xff]
    %v582 = vld [vmem:[#allocation8 + $0x1f8] sm:$0xff]
    %v583 = vld [vmem:[#allocation10] sm:$0xf]
    %v585 = vlaneseq
    %v586 = vshrl.u32 %v585, 7
    %v587 = vsub.s32 0, %v586
    %v588 = vrot.slane %v583, %v587
    %v589 = vlaneseq
    %v590 = vshrl.u32 %v589, 7
    %v591 = vsub.s32 1, %v590
    %v592 = vrot.slane %v583, %v591
    %v593 = vlaneseq
    %v594 = vshrl.u32 %v593, 7
    %v595 = vsub.s32 2, %v594
    %v596 = vrot.slane %v583, %v595
    %v597 = vlaneseq
    %v598 = vshrl.u32 %v597, 7
    %v599 = vsub.s32 3, %v598
    %v600 = vrot.slane %v583, %v599
    %605 = vmatprep.subr.mxu0 %v520
    %606 = vmatpush1.msra.mxu0 %v519
    %607 = vmatprep.subr.mxu0 %v524
    %608 = vmatpush1.msra.mxu0 %v523
    %609 = vmatprep.subr.mxu0 %v528
    %610 = vmatpush1.msra.mxu0 %v527
    %611 = vmatprep.subr.mxu0 %v532
    %612 = vmatpush1.msra.mxu0 %v531
    %613 = vmatprep.subr.mxu0 %v536
    %614 = vmatpush1.msra.mxu0 %v535
    %615 = vmatprep.subr.mxu0 %v540
    %616 = vmatpush1.msra.mxu0 %v539
    %617 = vmatprep.subr.mxu0 %v544
    %618 = vmatpush1.msra.mxu0 %v543
    %619 = vmatprep.subr.mxu0 %v548
    %620 = vmatpush1.msra.mxu0 %v547
    %621 = vmatprep.subr.mxu0 %v552
    %622 = vmatpush1.msra.mxu0 %v551
    %623 = vmatprep.subr.mxu0 %v556
    %624 = vmatpush1.msra.mxu0 %v555
    %625 = vmatprep.subr.mxu0 %v560
    %626 = vmatpush1.msra.mxu0 %v559
    %627 = vmatprep.subr.mxu0 %v564
    %628 = vmatpush1.msra.mxu0 %v563
    %629 = vmatprep.subr.mxu0 %v568
    %630 = vmatpush1.msra.mxu0 %v567
    %631 = vmatprep.subr.mxu0 %v572
    %632 = vmatpush1.msra.mxu0 %v571
    %633 = vmatprep.subr.mxu0 %v576
    %634 = vmatpush1.msra.mxu0 %v575
    %635 = vmatprep.subr.mxu0 %v580
    %636 = vmatpush1.msra.mxu0 %v579
    %637 = vmatprep.subr.mxu0 0.0
    %638 = vmatpush1.msra.mxu0 0.0
    %639 = vmatprep.subr.mxu0 0.0
    %640 = vmatpush1.msra.mxu0 0.0
    %641 = vmatprep.subr.mxu0 0.0
    %642 = vmatpush1.msra.mxu0 0.0
    %643 = vmatprep.subr.mxu0 0.0
    %644 = vmatpush1.msra.mxu0 0.0
    %645 = vmatprep.subr.mxu0 0.0
    %646 = vmatpush1.msra.mxu0 0.0
    %647 = vmatprep.subr.mxu0 0.0
    %648 = vmatpush1.msra.mxu0 0.0
    %649 = vmatprep.subr.mxu0 0.0
    %650 = vmatpush1.msra.mxu0 0.0
    %651 = vmatprep.subr.mxu0 0.0
    %652 = vmatpush1.msra.mxu0 0.0
    %653 = vmatprep.subr.mxu0 0.0
    %654 = vmatpush1.msra.mxu0 0.0
    %655 = vmatprep.subr.mxu0 0.0
    %656 = vmatpush1.msra.mxu0 0.0
    %657 = vmatprep.subr.mxu0 0.0
    %658 = vmatpush1.msra.mxu0 0.0
    %659 = vmatprep.subr.mxu0 0.0
    %660 = vmatpush1.msra.mxu0 0.0
    %661 = vmatprep.subr.mxu0 0.0
    %662 = vmatpush1.msra.mxu0 0.0
    %663 = vmatprep.subr.mxu0 0.0
    %664 = vmatpush1.msra.mxu0 0.0
    %665 = vmatprep.subr.mxu0 0.0
    %666 = vmatpush1.msra.mxu0 0.0
    %667 = vmatprep.subr.mxu0 0.0
    %668 = vmatpush1.msra.mxu0 0.0
    %669 = vmatprep.mubr.f32.mxu0 0.0
    %670 = vmatmul.mubr.f32.gmra.mrb[0].mxu0 %v518
    %v671 = vpop.f32.mrb[0].mxu0
    %v672 = vadd.f32 %v588, %v671
    %v673 = vpop.f32.mrb[0].mxu0
    %v674 = vadd.f32 %v592, %v673
    %675 = vdwg.mxu0
    %676 = vmatprep.subr.mxu0 %v522
    %677 = vmatpush1.msra.mxu0 %v521
    %678 = vmatprep.subr.mxu0 %v526
    %679 = vmatpush1.msra.mxu0 %v525
    %680 = vmatprep.subr.mxu0 %v530
    %681 = vmatpush1.msra.mxu0 %v529
    %682 = vmatprep.subr.mxu0 %v534
    %683 = vmatpush1.msra.mxu0 %v533
    %684 = vmatprep.subr.mxu0 %v538
    %685 = vmatpush1.msra.mxu0 %v537
    %686 = vmatprep.subr.mxu0 %v542
    %687 = vmatpush1.msra.mxu0 %v541
    %688 = vmatprep.subr.mxu0 %v546
    %689 = vmatpush1.msra.mxu0 %v545
    %690 = vmatprep.subr.mxu0 %v550
    %691 = vmatpush1.msra.mxu0 %v549
    %692 = vmatprep.subr.mxu0 %v554
    %693 = vmatpush1.msra.mxu0 %v553
    %694 = vmatprep.subr.mxu0 %v558
    %695 = vmatpush1.msra.mxu0 %v557
    %696 = vmatprep.subr.mxu0 %v562
    %697 = vmatpush1.msra.mxu0 %v561
    %698 = vmatprep.subr.mxu0 %v566
    %699 = vmatpush1.msra.mxu0 %v565
    %700 = vmatprep.subr.mxu0 %v570
    %701 = vmatpush1.msra.mxu0 %v569
    %702 = vmatprep.subr.mxu0 %v574
    %703 = vmatpush1.msra.mxu0 %v573
    %704 = vmatprep.subr.mxu0 %v578
    %705 = vmatpush1.msra.mxu0 %v577
    %706 = vmatprep.subr.mxu0 %v582
    %707 = vmatpush1.msra.mxu0 %v581
    %708 = vmatprep.subr.mxu0 0.0
    %709 = vmatpush1.msra.mxu0 0.0
    %710 = vmatprep.subr.mxu0 0.0
    %711 = vmatpush1.msra.mxu0 0.0
    %712 = vmatprep.subr.mxu0 0.0
    %713 = vmatpush1.msra.mxu0 0.0
    %714 = vmatprep.subr.mxu0 0.0
    %715 = vmatpush1.msra.mxu0 0.0
    %716 = vmatprep.subr.mxu0 0.0
    %717 = vmatpush1.msra.mxu0 0.0
    %718 = vmatprep.subr.mxu0 0.0
    %719 = vmatpush1.msra.mxu0 0.0
    %720 = vmatprep.subr.mxu0 0.0
    %721 = vmatpush1.msra.mxu0 0.0
    %722 = vmatprep.subr.mxu0 0.0
    %723 = vmatpush1.msra.mxu0 0.0
    %724 = vmatprep.subr.mxu0 0.0
    %725 = vmatpush1.msra.mxu0 0.0
    %726 = vmatprep.subr.mxu0 0.0
    %727 = vmatpush1.msra.mxu0 0.0
    %728 = vmatprep.subr.mxu0 0.0
    %729 = vmatpush1.msra.mxu0 0.0
    %730 = vmatprep.subr.mxu0 0.0
    %731 = vmatpush1.msra.mxu0 0.0
    %732 = vmatprep.subr.mxu0 0.0
    %733 = vmatpush1.msra.mxu0 0.0
    %734 = vmatprep.subr.mxu0 0.0
    %735 = vmatpush1.msra.mxu0 0.0
    %736 = vmatprep.subr.mxu0 0.0
    %737 = vmatpush1.msra.mxu0 0.0
    %738 = vmatprep.subr.mxu0 0.0
    %739 = vmatpush1.msra.mxu0 0.0
    %740 = vmatprep.mubr.f32.mxu0 0.0
    %741 = vmatmul.mubr.f32.gmra.mrb[0].mxu0 %v518
    %v742 = vpop.f32.mrb[0].mxu0
    %v743 = vadd.f32 %v596, %v742
    %v744 = vpop.f32.mrb[0].mxu0
    %v745 = vadd.f32 %v600, %v744
    %746 = vdwg.mxu0
    %v747 = vmul.f32 %v672, 0.5
    %v748 = vmul.f32 %v674, 0.5
    %v749 = vmul.f32 %v743, 0.5
    %v750 = vmul.f32 %v745, 0.5
    %v751 = vmul.f32 %v672, 0.70710677
    %v752 = vmul.f32 %v674, 0.70710677
    %v753 = vmul.f32 %v743, 0.70710677
    %v754 = vmul.f32 %v745, 0.70710677
    %v755 = vand.u32 2147483647, %v751
    %v756 = vand.u32 2147483647, %v752
    %v757 = vand.u32 2147483647, %v753
    %v758 = vand.u32 2147483647, %v754
    %v759 = vmul.f32 %v755, 0.3275911
    %v760 = vmul.f32 %v756, 0.3275911
    %v761 = vmul.f32 %v757, 0.3275911
    %v762 = vmul.f32 %v758, 0.3275911
    %v763 = vadd.f32 %v759, 1.0
    %v764 = vadd.f32 %v760, 1.0
    %v765 = vadd.f32 %v761, 1.0
    %v766 = vadd.f32 %v762, 1.0
    %v767 = vrcp.pop %v763
    %v768 = vmul.f32 1.0, %v767
    %v769 = vrcp.pop %v764
    %v770 = vmul.f32 1.0, %v769
    %v771 = vrcp.pop %v765
    %v772 = vmul.f32 1.0, %v771
    %v773 = vrcp.pop %v766
    %v774 = vmul.f32 1.0, %v773
    %v775 = vmul.f32 %v768, 1.0614054
    %v776 = vmul.f32 %v770, 1.0614054
    %v777 = vmul.f32 %v772, 1.0614054
    %v778 = vmul.f32 %v774, 1.0614054
    %v779 = vadd.f32 %v775, -1.4531521
    %v780 = vadd.f32 %v776, -1.4531521
    %v781 = vadd.f32 %v777, -1.4531521
    %v782 = vadd.f32 %v778, -1.4531521
    %v783 = vmul.f32 %v768, %v779
    %v784 = vmul.f32 %v770, %v780
    %v785 = vmul.f32 %v772, %v781
    %v786 = vmul.f32 %v774, %v782
    %v787 = vadd.f32 %v783, 1.4214138
    %v788 = vadd.f32 %v784, 1.4214138
    %v789 = vadd.f32 %v785, 1.4214138
    %v790 = vadd.f32 %v786, 1.4214138
    %v791 = vmul.f32 %v768, %v787
    %v792 = vmul.f32 %v770, %v788
    %v793 = vmul.f32 %v772, %v789
    %v794 = vmul.f32 %v774, %v790
    %v795 = vadd.f32 %v791, -0.28449672
    %v796 = vadd.f32 %v792, -0.28449672
    %v797 = vadd.f32 %v793, -0.28449672
    %v798 = vadd.f32 %v794, -0.28449672
    %v799 = vmul.f32 %v768, %v795
    %v800 = vmul.f32 %v770, %v796
    %v801 = vmul.f32 %v772, %v797
    %v802 = vmul.f32 %v774, %v798
    %v803 = vadd.f32 %v799, 0.2548296
    %v804 = vadd.f32 %v800, 0.2548296
    %v805 = vadd.f32 %v801, 0.2548296
    %v806 = vadd.f32 %v802, 0.2548296
    %v807 = vmul.f32 %v768, %v803
    %v808 = vmul.f32 %v770, %v804
    %v809 = vmul.f32 %v772, %v805
    %v810 = vmul.f32 %v774, %v806
    %v811 = vmul.f32 %v755, %v755
    %v812 = vmul.f32 %v756, %v756
    %v813 = vmul.f32 %v757, %v757
    %v814 = vmul.f32 %v758, %v758
    %v815 = vsub.f32 0.0, %v811
    %v816 = vsub.f32 0.0, %v812
    %v817 = vsub.f32 0.0, %v813
    %v818 = vsub.f32 0.0, %v814
    %v819 = vmul.f32 %v815, 1.442695
    %v820 = vpow.pop %v819
    %v821 = vmul.f32 %v816, 1.442695
    %v822 = vpow.pop %v821
    %v823 = vmul.f32 %v817, 1.442695
    %v824 = vpow.pop %v823
    %v825 = vmul.f32 %v818, 1.442695
    %v826 = vpow.pop %v825
    %v827 = vmul.f32 %v807, %v820
    %v828 = vmul.f32 %v808, %v822
    %v829 = vmul.f32 %v809, %v824
    %v830 = vmul.f32 %v810, %v826
    %v831 = vsub.f32 1.0, %v827
    %v832 = vsub.f32 1.0, %v828
    %v833 = vsub.f32 1.0, %v829
    %v834 = vsub.f32 1.0, %v830
    %vm835 = vcmp.lt.f32.partialorder %v751, 0.0
    %vm836 = vcmp.lt.f32.partialorder %v752, 0.0
    %vm837 = vcmp.lt.f32.partialorder %v753, 0.0
    %vm838 = vcmp.lt.f32.partialorder %v754, 0.0
    %v839 = vsub.f32 0.0, %v831
    %v840 = vsub.f32 0.0, %v832
    %v841 = vsub.f32 0.0, %v833
    %v842 = vsub.f32 0.0, %v834
    %v843 = vsel %vm835, %v839, %v831
    %v844 = vsel %vm836, %v840, %v832
    %v845 = vsel %vm837, %v841, %v833
    %v846 = vsel %vm838, %v842, %v834
    %v847 = vadd.f32 %v843, 1.0
    %v848 = vadd.f32 %v844, 1.0
    %v849 = vadd.f32 %v845, 1.0
    %v850 = vadd.f32 %v846, 1.0
    %v851 = vmul.f32 %v747, %v847
    %v852 = vmul.f32 %v748, %v848
    %v853 = vmul.f32 %v749, %v849
    %v854 = vmul.f32 %v750, %v850
    %v855 = vtanh.pop %v851
    %v856 = vtanh.pop %v852
    %v857 = vtanh.pop %v853
    %v858 = vtanh.pop %v854
    %v859 = vld [vmem:[#allocation11] sm:$0xff]
    %v860 = vld [vmem:[#allocation11 + $0x8] sm:$0xff]
    %v861 = vld [vmem:[#allocation11 + $0x10] sm:$0xff]
    %v862 = vld [vmem:[#allocation11 + $0x18] sm:$0xff]
    %v863 = vld [vmem:[#allocation11 + $0x20] sm:$0xff]
    %v864 = vld [vmem:[#allocation11 + $0x28] sm:$0xff]
    %v865 = vld [vmem:[#allocation11 + $0x30] sm:$0xff]
    %v866 = vld [vmem:[#allocation11 + $0x38] sm:$0xff]
    %v867 = vld [vmem:[#allocation11 + $0x40] sm:$0xff]
    %v868 = vld [vmem:[#allocation11 + $0x48] sm:$0xff]
    %v869 = vld [vmem:[#allocation11 + $0x50] sm:$0xff]
    %v870 = vld [vmem:[#allocation11 + $0x58] sm:$0xff]
    %v871 = vld [vmem:[#allocation11 + $0x60] sm:$0xff]
    %v872 = vld [vmem:[#allocation11 + $0x68] sm:$0xff]
    %v873 = vld [vmem:[#allocation11 + $0x70] sm:$0xff]
    %v874 = vld [vmem:[#allocation11 + $0x78] sm:$0xff]
    %v875 = vld [vmem:[#allocation11 + $0x80] sm:$0xff]
    %v876 = vld [vmem:[#allocation11 + $0x88] sm:$0xff]
    %v877 = vld [vmem:[#allocation11 + $0x90] sm:$0xff]
    %v878 = vld [vmem:[#allocation11 + $0x98] sm:$0xff]
    %v879 = vld [vmem:[#allocation11 + $0xa0] sm:$0xff]
    %v880 = vld [vmem:[#allocation11 + $0xa8] sm:$0xff]
    %v881 = vld [vmem:[#allocation11 + $0xb0] sm:$0xff]
    %v882 = vld [vmem:[#allocation11 + $0xb8] sm:$0xff]
    %v883 = vld [vmem:[#allocation11 + $0xc0] sm:$0xff]
    %v884 = vld [vmem:[#allocation11 + $0xc8] sm:$0xff]
    %v885 = vld [vmem:[#allocation11 + $0xd0] sm:$0xff]
    %v886 = vld [vmem:[#allocation11 + $0xd8] sm:$0xff]
    %v887 = vld [vmem:[#allocation11 + $0xe0] sm:$0xff]
    %v888 = vld [vmem:[#allocation11 + $0xe8] sm:$0xff]
    %v889 = vld [vmem:[#allocation11 + $0xf0] sm:$0xff]
    %v890 = vld [vmem:[#allocation11 + $0xf8] sm:$0xff]
    %v891 = vld [vmem:[#allocation11 + $0x100] sm:$0xff]
    %v892 = vld [vmem:[#allocation11 + $0x108] sm:$0xff]
    %v893 = vld [vmem:[#allocation11 + $0x110] sm:$0xff]
    %v894 = vld [vmem:[#allocation11 + $0x118] sm:$0xff]
    %v895 = vld [vmem:[#allocation11 + $0x120] sm:$0xff]
    %v896 = vld [vmem:[#allocation11 + $0x128] sm:$0xff]
    %v897 = vld [vmem:[#allocation11 + $0x130] sm:$0xff]
    %v898 = vld [vmem:[#allocation11 + $0x138] sm:$0xff]
    %v899 = vld [vmem:[#allocation11 + $0x140] sm:$0xff]
    %v900 = vld [vmem:[#allocation11 + $0x148] sm:$0xff]
    %v901 = vld [vmem:[#allocation11 + $0x150] sm:$0xff]
    %v902 = vld [vmem:[#allocation11 + $0x158] sm:$0xff]
    %v903 = vld [vmem:[#allocation11 + $0x160] sm:$0xff]
    %v904 = vld [vmem:[#allocation11 + $0x168] sm:$0xff]
    %v905 = vld [vmem:[#allocation11 + $0x170] sm:$0xff]
    %v906 = vld [vmem:[#allocation11 + $0x178] sm:$0xff]
    %v907 = vld [vmem:[#allocation11 + $0x180] sm:$0xff]
    %v908 = vld [vmem:[#allocation11 + $0x188] sm:$0xff]
    %v909 = vld [vmem:[#allocation11 + $0x190] sm:$0xff]
    %v910 = vld [vmem:[#allocation11 + $0x198] sm:$0xff]
    %v911 = vld [vmem:[#allocation11 + $0x1a0] sm:$0xff]
    %v912 = vld [vmem:[#allocation11 + $0x1a8] sm:$0xff]
    %v913 = vld [vmem:[#allocation11 + $0x1b0] sm:$0xff]
    %v914 = vld [vmem:[#allocation11 + $0x1b8] sm:$0xff]
    %v915 = vld [vmem:[#allocation11 + $0x1c0] sm:$0xff]
    %v916 = vld [vmem:[#allocation11 + $0x1c8] sm:$0xff]
    %v917 = vld [vmem:[#allocation11 + $0x1d0] sm:$0xff]
    %v918 = vld [vmem:[#allocation11 + $0x1d8] sm:$0xff]
    %v919 = vld [vmem:[#allocation11 + $0x1e0] sm:$0xff]
    %v920 = vld [vmem:[#allocation11 + $0x1e8] sm:$0xff]
    %v921 = vld [vmem:[#allocation11 + $0x1f0] sm:$0xff]
    %v922 = vld [vmem:[#allocation11 + $0x1f8] sm:$0xff]
    %v923 = vld [vmem:[#allocation11 + $0x200] sm:$0xff]
    %v924 = vld [vmem:[#allocation11 + $0x208] sm:$0xff]
    %v925 = vld [vmem:[#allocation11 + $0x210] sm:$0xff]
    %v926 = vld [vmem:[#allocation11 + $0x218] sm:$0xff]
    %v927 = vld [vmem:[#allocation11 + $0x220] sm:$0xff]
    %v928 = vld [vmem:[#allocation11 + $0x228] sm:$0xff]
    %v929 = vld [vmem:[#allocation11 + $0x230] sm:$0xff]
    %v930 = vld [vmem:[#allocation11 + $0x238] sm:$0xff]
    %v931 = vld [vmem:[#allocation11 + $0x240] sm:$0xff]
    %v932 = vld [vmem:[#allocation11 + $0x248] sm:$0xff]
    %v933 = vld [vmem:[#allocation11 + $0x250] sm:$0xff]
    %v934 = vld [vmem:[#allocation11 + $0x258] sm:$0xff]
    %v935 = vld [vmem:[#allocation11 + $0x260] sm:$0xff]
    %v936 = vld [vmem:[#allocation11 + $0x268] sm:$0xff]
    %v937 = vld [vmem:[#allocation11 + $0x270] sm:$0xff]
    %v938 = vld [vmem:[#allocation11 + $0x278] sm:$0xff]
    %v939 = vld [vmem:[#allocation11 + $0x280] sm:$0xff]
    %v940 = vld [vmem:[#allocation11 + $0x288] sm:$0xff]
    %v941 = vld [vmem:[#allocation11 + $0x290] sm:$0xff]
    %v942 = vld [vmem:[#allocation11 + $0x298] sm:$0xff]
    %v943 = vld [vmem:[#allocation11 + $0x2a0] sm:$0xff]
    %v944 = vld [vmem:[#allocation11 + $0x2a8] sm:$0xff]
    %v945 = vld [vmem:[#allocation11 + $0x2b0] sm:$0xff]
    %v946 = vld [vmem:[#allocation11 + $0x2b8] sm:$0xff]
    %v947 = vld [vmem:[#allocation11 + $0x2c0] sm:$0xff]
    %v948 = vld [vmem:[#allocation11 + $0x2c8] sm:$0xff]
    %v949 = vld [vmem:[#allocation11 + $0x2d0] sm:$0xff]
    %v950 = vld [vmem:[#allocation11 + $0x2d8] sm:$0xff]
    %v951 = vld [vmem:[#allocation11 + $0x2e0] sm:$0xff]
    %v952 = vld [vmem:[#allocation11 + $0x2e8] sm:$0xff]
    %v953 = vld [vmem:[#allocation11 + $0x2f0] sm:$0xff]
    %v954 = vld [vmem:[#allocation11 + $0x2f8] sm:$0xff]
    %v955 = vld [vmem:[#allocation11 + $0x300] sm:$0xff]
    %v956 = vld [vmem:[#allocation11 + $0x308] sm:$0xff]
    %v957 = vld [vmem:[#allocation11 + $0x310] sm:$0xff]
    %v958 = vld [vmem:[#allocation11 + $0x318] sm:$0xff]
    %v959 = vld [vmem:[#allocation11 + $0x320] sm:$0xff]
    %v960 = vld [vmem:[#allocation11 + $0x328] sm:$0xff]
    %v961 = vld [vmem:[#allocation11 + $0x330] sm:$0xff]
    %v962 = vld [vmem:[#allocation11 + $0x338] sm:$0xff]
    %v963 = vld [vmem:[#allocation11 + $0x340] sm:$0xff]
    %v964 = vld [vmem:[#allocation11 + $0x348] sm:$0xff]
    %v965 = vld [vmem:[#allocation11 + $0x350] sm:$0xff]
    %v966 = vld [vmem:[#allocation11 + $0x358] sm:$0xff]
    %v967 = vld [vmem:[#allocation11 + $0x360] sm:$0xff]
    %v968 = vld [vmem:[#allocation11 + $0x368] sm:$0xff]
    %v969 = vld [vmem:[#allocation11 + $0x370] sm:$0xff]
    %v970 = vld [vmem:[#allocation11 + $0x378] sm:$0xff]
    %v971 = vld [vmem:[#allocation11 + $0x380] sm:$0xff]
    %v972 = vld [vmem:[#allocation11 + $0x388] sm:$0xff]
    %v973 = vld [vmem:[#allocation11 + $0x390] sm:$0xff]
    %v974 = vld [vmem:[#allocation11 + $0x398] sm:$0xff]
    %v975 = vld [vmem:[#allocation11 + $0x3a0] sm:$0xff]
    %v976 = vld [vmem:[#allocation11 + $0x3a8] sm:$0xff]
    %v977 = vld [vmem:[#allocation11 + $0x3b0] sm:$0xff]
    %v978 = vld [vmem:[#allocation11 + $0x3b8] sm:$0xff]
    %v979 = vld [vmem:[#allocation11 + $0x3c0] sm:$0xff]
    %v980 = vld [vmem:[#allocation11 + $0x3c8] sm:$0xff]
    %v981 = vld [vmem:[#allocation11 + $0x3d0] sm:$0xff]
    %v982 = vld [vmem:[#allocation11 + $0x3d8] sm:$0xff]
    %v983 = vld [vmem:[#allocation11 + $0x3e0] sm:$0xff]
    %v984 = vld [vmem:[#allocation11 + $0x3e8] sm:$0xff]
    %v985 = vld [vmem:[#allocation11 + $0x3f0] sm:$0xff]
    %v986 = vld [vmem:[#allocation11 + $0x3f8] sm:$0xff]
    %v987 = vld [vmem:[#allocation11 + $0x400] sm:$0xff]
    %v988 = vld [vmem:[#allocation11 + $0x408] sm:$0xff]
    %v989 = vld [vmem:[#allocation11 + $0x410] sm:$0xff]
    %v990 = vld [vmem:[#allocation11 + $0x418] sm:$0xff]
    %v991 = vld [vmem:[#allocation11 + $0x420] sm:$0xff]
    %v992 = vld [vmem:[#allocation11 + $0x428] sm:$0xff]
    %v993 = vld [vmem:[#allocation11 + $0x430] sm:$0xff]
    %v994 = vld [vmem:[#allocation11 + $0x438] sm:$0xff]
    %v995 = vld [vmem:[#allocation11 + $0x440] sm:$0xff]
    %v996 = vld [vmem:[#allocation11 + $0x448] sm:$0xff]
    %v997 = vld [vmem:[#allocation11 + $0x450] sm:$0xff]
    %v998 = vld [vmem:[#allocation11 + $0x458] sm:$0xff]
    %v999 = vld [vmem:[#allocation11 + $0x460] sm:$0xff]
    %v1000 = vld [vmem:[#allocation11 + $0x468] sm:$0xff]
    %v1001 = vld [vmem:[#allocation11 + $0x470] sm:$0xff]
    %v1002 = vld [vmem:[#allocation11 + $0x478] sm:$0xff]
    %v1003 = vld [vmem:[#allocation11 + $0x480] sm:$0xff]
    %v1004 = vld [vmem:[#allocation11 + $0x488] sm:$0xff]
    %v1005 = vld [vmem:[#allocation11 + $0x490] sm:$0xff]
    %v1006 = vld [vmem:[#allocation11 + $0x498] sm:$0xff]
    %v1007 = vld [vmem:[#allocation11 + $0x4a0] sm:$0xff]
    %v1008 = vld [vmem:[#allocation11 + $0x4a8] sm:$0xff]
    %v1009 = vld [vmem:[#allocation11 + $0x4b0] sm:$0xff]
    %v1010 = vld [vmem:[#allocation11 + $0x4b8] sm:$0xff]
    %v1011 = vld [vmem:[#allocation11 + $0x4c0] sm:$0xff]
    %v1012 = vld [vmem:[#allocation11 + $0x4c8] sm:$0xff]
    %v1013 = vld [vmem:[#allocation11 + $0x4d0] sm:$0xff]
    %v1014 = vld [vmem:[#allocation11 + $0x4d8] sm:$0xff]
    %v1015 = vld [vmem:[#allocation11 + $0x4e0] sm:$0xff]
    %v1016 = vld [vmem:[#allocation11 + $0x4e8] sm:$0xff]
    %v1017 = vld [vmem:[#allocation11 + $0x4f0] sm:$0xff]
    %v1018 = vld [vmem:[#allocation11 + $0x4f8] sm:$0xff]
    %v1019 = vld [vmem:[#allocation11 + $0x500] sm:$0xff]
    %v1020 = vld [vmem:[#allocation11 + $0x508] sm:$0xff]
    %v1021 = vld [vmem:[#allocation11 + $0x510] sm:$0xff]
    %v1022 = vld [vmem:[#allocation11 + $0x518] sm:$0xff]
    %v1023 = vld [vmem:[#allocation11 + $0x520] sm:$0xff]
    %v1024 = vld [vmem:[#allocation11 + $0x528] sm:$0xff]
    %v1025 = vld [vmem:[#allocation11 + $0x530] sm:$0xff]
    %v1026 = vld [vmem:[#allocation11 + $0x538] sm:$0xff]
    %v1027 = vld [vmem:[#allocation11 + $0x540] sm:$0xff]
    %v1028 = vld [vmem:[#allocation11 + $0x548] sm:$0xff]
    %v1029 = vld [vmem:[#allocation11 + $0x550] sm:$0xff]
    %v1030 = vld [vmem:[#allocation11 + $0x558] sm:$0xff]
    %v1031 = vld [vmem:[#allocation11 + $0x560] sm:$0xff]
    %v1032 = vld [vmem:[#allocation11 + $0x568] sm:$0xff]
    %v1033 = vld [vmem:[#allocation11 + $0x570] sm:$0xff]
    %v1034 = vld [vmem:[#allocation11 + $0x578] sm:$0xff]
    %v1035 = vld [vmem:[#allocation11 + $0x580] sm:$0xff]
    %v1036 = vld [vmem:[#allocation11 + $0x588] sm:$0xff]
    %v1037 = vld [vmem:[#allocation11 + $0x590] sm:$0xff]
    %v1038 = vld [vmem:[#allocation11 + $0x598] sm:$0xff]
    %v1039 = vld [vmem:[#allocation11 + $0x5a0] sm:$0xff]
    %v1040 = vld [vmem:[#allocation11 + $0x5a8] sm:$0xff]
    %v1041 = vld [vmem:[#allocation11 + $0x5b0] sm:$0xff]
    %v1042 = vld [vmem:[#allocation11 + $0x5b8] sm:$0xff]
    %v1043 = vld [vmem:[#allocation11 + $0x5c0] sm:$0xff]
    %v1044 = vld [vmem:[#allocation11 + $0x5c8] sm:$0xff]
    %v1045 = vld [vmem:[#allocation11 + $0x5d0] sm:$0xff]
    %v1046 = vld [vmem:[#allocation11 + $0x5d8] sm:$0xff]
    %v1047 = vld [vmem:[#allocation11 + $0x5e0] sm:$0xff]
    %v1048 = vld [vmem:[#allocation11 + $0x5e8] sm:$0xff]
    %v1049 = vld [vmem:[#allocation11 + $0x5f0] sm:$0xff]
    %v1050 = vld [vmem:[#allocation11 + $0x5f8] sm:$0xff]
    %v1051 = vld [vmem:[#allocation11 + $0x600] sm:$0xff]
    %v1052 = vld [vmem:[#allocation11 + $0x608] sm:$0xff]
    %v1053 = vld [vmem:[#allocation11 + $0x610] sm:$0xff]
    %v1054 = vld [vmem:[#allocation11 + $0x618] sm:$0xff]
    %v1055 = vld [vmem:[#allocation11 + $0x620] sm:$0xff]
    %v1056 = vld [vmem:[#allocation11 + $0x628] sm:$0xff]
    %v1057 = vld [vmem:[#allocation11 + $0x630] sm:$0xff]
    %v1058 = vld [vmem:[#allocation11 + $0x638] sm:$0xff]
    %v1059 = vld [vmem:[#allocation11 + $0x640] sm:$0xff]
    %v1060 = vld [vmem:[#allocation11 + $0x648] sm:$0xff]
    %v1061 = vld [vmem:[#allocation11 + $0x650] sm:$0xff]
    %v1062 = vld [vmem:[#allocation11 + $0x658] sm:$0xff]
    %v1063 = vld [vmem:[#allocation11 + $0x660] sm:$0xff]
    %v1064 = vld [vmem:[#allocation11 + $0x668] sm:$0xff]
    %v1065 = vld [vmem:[#allocation11 + $0x670] sm:$0xff]
    %v1066 = vld [vmem:[#allocation11 + $0x678] sm:$0xff]
    %v1067 = vld [vmem:[#allocation11 + $0x680] sm:$0xff]
    %v1068 = vld [vmem:[#allocation11 + $0x688] sm:$0xff]
    %v1069 = vld [vmem:[#allocation11 + $0x690] sm:$0xff]
    %v1070 = vld [vmem:[#allocation11 + $0x698] sm:$0xff]
    %v1071 = vld [vmem:[#allocation11 + $0x6a0] sm:$0xff]
    %v1072 = vld [vmem:[#allocation11 + $0x6a8] sm:$0xff]
    %v1073 = vld [vmem:[#allocation11 + $0x6b0] sm:$0xff]
    %v1074 = vld [vmem:[#allocation11 + $0x6b8] sm:$0xff]
    %v1075 = vld [vmem:[#allocation11 + $0x6c0] sm:$0xff]
    %v1076 = vld [vmem:[#allocation11 + $0x6c8] sm:$0xff]
    %v1077 = vld [vmem:[#allocation11 + $0x6d0] sm:$0xff]
    %v1078 = vld [vmem:[#allocation11 + $0x6d8] sm:$0xff]
    %v1079 = vld [vmem:[#allocation11 + $0x6e0] sm:$0xff]
    %v1080 = vld [vmem:[#allocation11 + $0x6e8] sm:$0xff]
    %v1081 = vld [vmem:[#allocation11 + $0x6f0] sm:$0xff]
    %v1082 = vld [vmem:[#allocation11 + $0x6f8] sm:$0xff]
    %v1083 = vld [vmem:[#allocation11 + $0x700] sm:$0xff]
    %v1084 = vld [vmem:[#allocation11 + $0x708] sm:$0xff]
    %v1085 = vld [vmem:[#allocation11 + $0x710] sm:$0xff]
    %v1086 = vld [vmem:[#allocation11 + $0x718] sm:$0xff]
    %v1087 = vld [vmem:[#allocation11 + $0x720] sm:$0xff]
    %v1088 = vld [vmem:[#allocation11 + $0x728] sm:$0xff]
    %v1089 = vld [vmem:[#allocation11 + $0x730] sm:$0xff]
    %v1090 = vld [vmem:[#allocation11 + $0x738] sm:$0xff]
    %v1091 = vld [vmem:[#allocation11 + $0x740] sm:$0xff]
    %v1092 = vld [vmem:[#allocation11 + $0x748] sm:$0xff]
    %v1093 = vld [vmem:[#allocation11 + $0x750] sm:$0xff]
    %v1094 = vld [vmem:[#allocation11 + $0x758] sm:$0xff]
    %v1095 = vld [vmem:[#allocation11 + $0x760] sm:$0xff]
    %v1096 = vld [vmem:[#allocation11 + $0x768] sm:$0xff]
    %v1097 = vld [vmem:[#allocation11 + $0x770] sm:$0xff]
    %v1098 = vld [vmem:[#allocation11 + $0x778] sm:$0xff]
    %v1099 = vld [vmem:[#allocation11 + $0x780] sm:$0xff]
    %v1100 = vld [vmem:[#allocation11 + $0x788] sm:$0xff]
    %v1101 = vld [vmem:[#allocation11 + $0x790] sm:$0xff]
    %v1102 = vld [vmem:[#allocation11 + $0x798] sm:$0xff]
    %v1103 = vld [vmem:[#allocation11 + $0x7a0] sm:$0xff]
    %v1104 = vld [vmem:[#allocation11 + $0x7a8] sm:$0xff]
    %v1105 = vld [vmem:[#allocation11 + $0x7b0] sm:$0xff]
    %v1106 = vld [vmem:[#allocation11 + $0x7b8] sm:$0xff]
    %v1107 = vld [vmem:[#allocation11 + $0x7c0] sm:$0xff]
    %v1108 = vld [vmem:[#allocation11 + $0x7c8] sm:$0xff]
    %v1109 = vld [vmem:[#allocation11 + $0x7d0] sm:$0xff]
    %v1110 = vld [vmem:[#allocation11 + $0x7d8] sm:$0xff]
    %v1111 = vld [vmem:[#allocation11 + $0x7e0] sm:$0xff]
    %v1112 = vld [vmem:[#allocation11 + $0x7e8] sm:$0xff]
    %v1113 = vld [vmem:[#allocation11 + $0x7f0] sm:$0xff]
    %v1114 = vld [vmem:[#allocation11 + $0x7f8] sm:$0xff]
    %v1115 = vld [vmem:[#allocation13] sm:$0xf]
    %v1117 = vlaneseq
    %v1118 = vshrl.u32 %v1117, 7
    %v1119 = vsub.s32 0, %v1118
    %v1120 = vrot.slane %v1115, %v1119
    %v1121 = vlaneseq
    %v1122 = vshrl.u32 %v1121, 7
    %v1123 = vsub.s32 1, %v1122
    %v1124 = vrot.slane %v1115, %v1123
    %v1125 = vlaneseq
    %v1126 = vshrl.u32 %v1125, 7
    %v1127 = vsub.s32 2, %v1126
    %v1128 = vrot.slane %v1115, %v1127
    %v1129 = vlaneseq
    %v1130 = vshrl.u32 %v1129, 7
    %v1131 = vsub.s32 3, %v1130
    %v1132 = vrot.slane %v1115, %v1131
    %1137 = vmatprep.subr.mxu0 %v860
    %1138 = vmatpush1.msra.mxu0 %v859
    %1139 = vmatprep.subr.mxu0 %v864
    %1140 = vmatpush1.msra.mxu0 %v863
    %1141 = vmatprep.subr.mxu0 %v868
    %1142 = vmatpush1.msra.mxu0 %v867
    %1143 = vmatprep.subr.mxu0 %v872
    %1144 = vmatpush1.msra.mxu0 %v871
    %1145 = vmatprep.subr.mxu0 %v876
    %1146 = vmatpush1.msra.mxu0 %v875
    %1147 = vmatprep.subr.mxu0 %v880
    %1148 = vmatpush1.msra.mxu0 %v879
    %1149 = vmatprep.subr.mxu0 %v884
    %1150 = vmatpush1.msra.mxu0 %v883
    %1151 = vmatprep.subr.mxu0 %v888
    %1152 = vmatpush1.msra.mxu0 %v887
    %1153 = vmatprep.subr.mxu0 %v892
    %1154 = vmatpush1.msra.mxu0 %v891
    %1155 = vmatprep.subr.mxu0 %v896
    %1156 = vmatpush1.msra.mxu0 %v895
    %1157 = vmatprep.subr.mxu0 %v900
    %1158 = vmatpush1.msra.mxu0 %v899
    %1159 = vmatprep.subr.mxu0 %v904
    %1160 = vmatpush1.msra.mxu0 %v903
    %1161 = vmatprep.subr.mxu0 %v908
    %1162 = vmatpush1.msra.mxu0 %v907
    %1163 = vmatprep.subr.mxu0 %v912
    %1164 = vmatpush1.msra.mxu0 %v911
    %1165 = vmatprep.subr.mxu0 %v916
    %1166 = vmatpush1.msra.mxu0 %v915
    %1167 = vmatprep.subr.mxu0 %v920
    %1168 = vmatpush1.msra.mxu0 %v919
    %1169 = vmatprep.subr.mxu0 %v924
    %1170 = vmatpush1.msra.mxu0 %v923
    %1171 = vmatprep.subr.mxu0 %v928
    %1172 = vmatpush1.msra.mxu0 %v927
    %1173 = vmatprep.subr.mxu0 %v932
    %1174 = vmatpush1.msra.mxu0 %v931
    %1175 = vmatprep.subr.mxu0 %v936
    %1176 = vmatpush1.msra.mxu0 %v935
    %1177 = vmatprep.subr.mxu0 %v940
    %1178 = vmatpush1.msra.mxu0 %v939
    %1179 = vmatprep.subr.mxu0 %v944
    %1180 = vmatpush1.msra.mxu0 %v943
    %1181 = vmatprep.subr.mxu0 %v948
    %1182 = vmatpush1.msra.mxu0 %v947
    %1183 = vmatprep.subr.mxu0 %v952
    %1184 = vmatpush1.msra.mxu0 %v951
    %1185 = vmatprep.subr.mxu0 %v956
    %1186 = vmatpush1.msra.mxu0 %v955
    %1187 = vmatprep.subr.mxu0 %v960
    %1188 = vmatpush1.msra.mxu0 %v959
    %1189 = vmatprep.subr.mxu0 %v964
    %1190 = vmatpush1.msra.mxu0 %v963
    %1191 = vmatprep.subr.mxu0 %v968
    %1192 = vmatpush1.msra.mxu0 %v967
    %1193 = vmatprep.subr.mxu0 %v972
    %1194 = vmatpush1.msra.mxu0 %v971
    %1195 = vmatprep.subr.mxu0 %v976
    %1196 = vmatpush1.msra.mxu0 %v975
    %1197 = vmatprep.subr.mxu0 %v980
    %1198 = vmatpush1.msra.mxu0 %v979
    %1199 = vmatprep.subr.mxu0 %v984
    %1200 = vmatpush1.msra.mxu0 %v983
    %1201 = vmatprep.mubr.f32.mxu0 %v856
    %1202 = vmatmul.mubr.f32.gmra.mrb[0].mxu0 %v855
    %v1203 = vpop.f32.mrb[0].mxu0
    %v1204 = vadd.f32 %v1120, %v1203
    %v1205 = vpop.f32.mrb[0].mxu0
    %v1206 = vadd.f32 %v1124, %v1205
    %1207 = vdwg.mxu0
    %1208 = vmatprep.subr.mxu0 %v988
    %1209 = vmatpush1.msra.mxu0 %v987
    %1210 = vmatprep.subr.mxu0 %v992
    %1211 = vmatpush1.msra.mxu0 %v991
    %1212 = vmatprep.subr.mxu0 %v996
    %1213 = vmatpush1.msra.mxu0 %v995
    %1214 = vmatprep.subr.mxu0 %v1000
    %1215 = vmatpush1.msra.mxu0 %v999
    %1216 = vmatprep.subr.mxu0 %v1004
    %1217 = vmatpush1.msra.mxu0 %v1003
    %1218 = vmatprep.subr.mxu0 %v1008
    %1219 = vmatpush1.msra.mxu0 %v1007
    %1220 = vmatprep.subr.mxu0 %v1012
    %1221 = vmatpush1.msra.mxu0 %v1011
    %1222 = vmatprep.subr.mxu0 %v1016
    %1223 = vmatpush1.msra.mxu0 %v1015
    %1224 = vmatprep.subr.mxu0 %v1020
    %1225 = vmatpush1.msra.mxu0 %v1019
    %1226 = vmatprep.subr.mxu0 %v1024
    %1227 = vmatpush1.msra.mxu0 %v1023
    %1228 = vmatprep.subr.mxu0 %v1028
    %1229 = vmatpush1.msra.mxu0 %v1027
    %1230 = vmatprep.subr.mxu0 %v1032
    %1231 = vmatpush1.msra.mxu0 %v1031
    %1232 = vmatprep.subr.mxu0 %v1036
    %1233 = vmatpush1.msra.mxu0 %v1035
    %1234 = vmatprep.subr.mxu0 %v1040
    %1235 = vmatpush1.msra.mxu0 %v1039
    %1236 = vmatprep.subr.mxu0 %v1044
    %1237 = vmatpush1.msra.mxu0 %v1043
    %1238 = vmatprep.subr.mxu0 %v1048
    %1239 = vmatpush1.msra.mxu0 %v1047
    %1240 = vmatprep.subr.mxu0 %v1052
    %1241 = vmatpush1.msra.mxu0 %v1051
    %1242 = vmatprep.subr.mxu0 %v1056
    %1243 = vmatpush1.msra.mxu0 %v1055
    %1244 = vmatprep.subr.mxu0 %v1060
    %1245 = vmatpush1.msra.mxu0 %v1059
    %1246 = vmatprep.subr.mxu0 %v1064
    %1247 = vmatpush1.msra.mxu0 %v1063
    %1248 = vmatprep.subr.mxu0 %v1068
    %1249 = vmatpush1.msra.mxu0 %v1067
    %1250 = vmatprep.subr.mxu0 %v1072
    %1251 = vmatpush1.msra.mxu0 %v1071
    %1252 = vmatprep.subr.mxu0 %v1076
    %1253 = vmatpush1.msra.mxu0 %v1075
    %1254 = vmatprep.subr.mxu0 %v1080
    %1255 = vmatpush1.msra.mxu0 %v1079
    %1256 = vmatprep.subr.mxu0 %v1084
    %1257 = vmatpush1.msra.mxu0 %v1083
    %1258 = vmatprep.subr.mxu0 %v1088
    %1259 = vmatpush1.msra.mxu0 %v1087
    %1260 = vmatprep.subr.mxu0 %v1092
    %1261 = vmatpush1.msra.mxu0 %v1091
    %1262 = vmatprep.subr.mxu0 %v1096
    %1263 = vmatpush1.msra.mxu0 %v1095
    %1264 = vmatprep.subr.mxu0 %v1100
    %1265 = vmatpush1.msra.mxu0 %v1099
    %1266 = vmatprep.subr.mxu0 %v1104
    %1267 = vmatpush1.msra.mxu0 %v1103
    %1268 = vmatprep.subr.mxu0 %v1108
    %1269 = vmatpush1.msra.mxu0 %v1107
    %1270 = vmatprep.subr.mxu0 %v1112
    %1271 = vmatpush1.msra.mxu0 %v1111
    %1272 = vmatprep.mubr.f32.mxu0 %v858
    %1273 = vmatmul.mubr.f32.gmra.mrb[0].mxu0 %v857
    %v1274 = vpop.f32.mrb[0].mxu0
    %v1275 = vadd.f32 %v1204, %v1274
    %v1276 = vpop.f32.mrb[0].mxu0
    %v1277 = vadd.f32 %v1206, %v1276
    %1278 = vdwg.mxu0
    %1279 = vmatprep.subr.mxu0 %v862
    %1280 = vmatpush1.msra.mxu0 %v861
    %1281 = vmatprep.subr.mxu0 %v866
    %1282 = vmatpush1.msra.mxu0 %v865
    %1283 = vmatprep.subr.mxu0 %v870
    %1284 = vmatpush1.msra.mxu0 %v869
    %1285 = vmatprep.subr.mxu0 %v874
    %1286 = vmatpush1.msra.mxu0 %v873
    %1287 = vmatprep.subr.mxu0 %v878
    %1288 = vmatpush1.msra.mxu0 %v877
    %1289 = vmatprep.subr.mxu0 %v882
    %1290 = vmatpush1.msra.mxu0 %v881
    %1291 = vmatprep.subr.mxu0 %v886
    %1292 = vmatpush1.msra.mxu0 %v885
    %1293 = vmatprep.subr.mxu0 %v890
    %1294 = vmatpush1.msra.mxu0 %v889
    %1295 = vmatprep.subr.mxu0 %v894
    %1296 = vmatpush1.msra.mxu0 %v893
    %1297 = vmatprep.subr.mxu0 %v898
    %1298 = vmatpush1.msra.mxu0 %v897
    %1299 = vmatprep.subr.mxu0 %v902
    %1300 = vmatpush1.msra.mxu0 %v901
    %1301 = vmatprep.subr.mxu0 %v906
    %1302 = vmatpush1.msra.mxu0 %v905
    %1303 = vmatprep.subr.mxu0 %v910
    %1304 = vmatpush1.msra.mxu0 %v909
    %1305 = vmatprep.subr.mxu0 %v914
    %1306 = vmatpush1.msra.mxu0 %v913
    %1307 = vmatprep.subr.mxu0 %v918
    %1308 = vmatpush1.msra.mxu0 %v917
    %1309 = vmatprep.subr.mxu0 %v922
    %1310 = vmatpush1.msra.mxu0 %v921
    %1311 = vmatprep.subr.mxu0 %v926
    %1312 = vmatpush1.msra.mxu0 %v925
    %1313 = vmatprep.subr.mxu0 %v930
    %1314 = vmatpush1.msra.mxu0 %v929
    %1315 = vmatprep.subr.mxu0 %v934
    %1316 = vmatpush1.msra.mxu0 %v933
    %1317 = vmatprep.subr.mxu0 %v938
    %1318 = vmatpush1.msra.mxu0 %v937
    %1319 = vmatprep.subr.mxu0 %v942
    %1320 = vmatpush1.msra.mxu0 %v941
    %1321 = vmatprep.subr.mxu0 %v946
    %1322 = vmatpush1.msra.mxu0 %v945
    %1323 = vmatprep.subr.mxu0 %v950
    %1324 = vmatpush1.msra.mxu0 %v949
    %1325 = vmatprep.subr.mxu0 %v954
    %1326 = vmatpush1.msra.mxu0 %v953
    %1327 = vmatprep.subr.mxu0 %v958
    %1328 = vmatpush1.msra.mxu0 %v957
    %1329 = vmatprep.subr.mxu0 %v962
    %1330 = vmatpush1.msra.mxu0 %v961
    %1331 = vmatprep.subr.mxu0 %v966
    %1332 = vmatpush1.msra.mxu0 %v965
    %1333 = vmatprep.subr.mxu0 %v970
    %1334 = vmatpush1.msra.mxu0 %v969
    %1335 = vmatprep.subr.mxu0 %v974
    %1336 = vmatpush1.msra.mxu0 %v973
    %1337 = vmatprep.subr.mxu0 %v978
    %1338 = vmatpush1.msra.mxu0 %v977
    %1339 = vmatprep.subr.mxu0 %v982
    %1340 = vmatpush1.msra.mxu0 %v981
    %1341 = vmatprep.subr.mxu0 %v986
    %1342 = vmatpush1.msra.mxu0 %v985
    %1343 = vmatprep.mubr.f32.mxu0 %v856
    %1344 = vmatmul.mubr.f32.gmra.mrb[0].mxu0 %v855
    %v1345 = vpop.f32.mrb[0].mxu0
    %v1346 = vadd.f32 %v1128, %v1345
    %v1347 = vpop.f32.mrb[0].mxu0
    %v1348 = vadd.f32 %v1132, %v1347
    %1349 = vdwg.mxu0
    %1350 = vmatprep.subr.mxu0 %v990
    %1351 = vmatpush1.msra.mxu0 %v989
    %1352 = vmatprep.subr.mxu0 %v994
    %1353 = vmatpush1.msra.mxu0 %v993
    %1354 = vmatprep.subr.mxu0 %v998
    %1355 = vmatpush1.msra.mxu0 %v997
    %1356 = vmatprep.subr.mxu0 %v1002
    %1357 = vmatpush1.msra.mxu0 %v1001
    %1358 = vmatprep.subr.mxu0 %v1006
    %1359 = vmatpush1.msra.mxu0 %v1005
    %1360 = vmatprep.subr.mxu0 %v1010
    %1361 = vmatpush1.msra.mxu0 %v1009
    %1362 = vmatprep.subr.mxu0 %v1014
    %1363 = vmatpush1.msra.mxu0 %v1013
    %1364 = vmatprep.subr.mxu0 %v1018
    %1365 = vmatpush1.msra.mxu0 %v1017
    %1366 = vmatprep.subr.mxu0 %v1022
    %1367 = vmatpush1.msra.mxu0 %v1021
    %1368 = vmatprep.subr.mxu0 %v1026
    %1369 = vmatpush1.msra.mxu0 %v1025
    %1370 = vmatprep.subr.mxu0 %v1030
    %1371 = vmatpush1.msra.mxu0 %v1029
    %1372 = vmatprep.subr.mxu0 %v1034
    %1373 = vmatpush1.msra.mxu0 %v1033
    %1374 = vmatprep.subr.mxu0 %v1038
    %1375 = vmatpush1.msra.mxu0 %v1037
    %1376 = vmatprep.subr.mxu0 %v1042
    %1377 = vmatpush1.msra.mxu0 %v1041
    %1378 = vmatprep.subr.mxu0 %v1046
    %1379 = vmatpush1.msra.mxu0 %v1045
    %1380 = vmatprep.subr.mxu0 %v1050
    %1381 = vmatpush1.msra.mxu0 %v1049
    %1382 = vmatprep.subr.mxu0 %v1054
    %1383 = vmatpush1.msra.mxu0 %v1053
    %1384 = vmatprep.subr.mxu0 %v1058
    %1385 = vmatpush1.msra.mxu0 %v1057
    %1386 = vmatprep.subr.mxu0 %v1062
    %1387 = vmatpush1.msra.mxu0 %v1061
    %1388 = vmatprep.subr.mxu0 %v1066
    %1389 = vmatpush1.msra.mxu0 %v1065
    %1390 = vmatprep.subr.mxu0 %v1070
    %1391 = vmatpush1.msra.mxu0 %v1069
    %1392 = vmatprep.subr.mxu0 %v1074
    %1393 = vmatpush1.msra.mxu0 %v1073
    %1394 = vmatprep.subr.mxu0 %v1078
    %1395 = vmatpush1.msra.mxu0 %v1077
    %1396 = vmatprep.subr.mxu0 %v1082
    %1397 = vmatpush1.msra.mxu0 %v1081
    %1398 = vmatprep.subr.mxu0 %v1086
    %1399 = vmatpush1.msra.mxu0 %v1085
    %1400 = vmatprep.subr.mxu0 %v1090
    %1401 = vmatpush1.msra.mxu0 %v1089
    %1402 = vmatprep.subr.mxu0 %v1094
    %1403 = vmatpush1.msra.mxu0 %v1093
    %1404 = vmatprep.subr.mxu0 %v1098
    %1405 = vmatpush1.msra.mxu0 %v1097
    %1406 = vmatprep.subr.mxu0 %v1102
    %1407 = vmatpush1.msra.mxu0 %v1101
    %1408 = vmatprep.subr.mxu0 %v1106
    %1409 = vmatpush1.msra.mxu0 %v1105
    %1410 = vmatprep.subr.mxu0 %v1110
    %1411 = vmatpush1.msra.mxu0 %v1109
    %1412 = vmatprep.subr.mxu0 %v1114
    %1413 = vmatpush1.msra.mxu0 %v1113
    %1414 = vmatprep.mubr.f32.mxu0 %v858
    %1415 = vmatmul.mubr.f32.gmra.mrb[0].mxu0 %v857
    %v1416 = vpop.f32.mrb[0].mxu0
    %v1417 = vadd.f32 %v1346, %v1416
    %v1418 = vpop.f32.mrb[0].mxu0
    %v1419 = vadd.f32 %v1348, %v1418
    %1420 = vdwg.mxu0
    %v1421 = vmul.f32 %v1275, 0.5
    %v1422 = vmul.f32 %v1277, 0.5
    %v1423 = vmul.f32 %v1417, 0.5
    %v1424 = vmul.f32 %v1419, 0.5
    %v1425 = vmul.f32 %v1275, 0.70710677
    %v1426 = vmul.f32 %v1277, 0.70710677
    %v1427 = vmul.f32 %v1417, 0.70710677
    %v1428 = vmul.f32 %v1419, 0.70710677
    %v1429 = vand.u32 2147483647, %v1425
    %v1430 = vand.u32 2147483647, %v1426
    %v1431 = vand.u32 2147483647, %v1427
    %v1432 = vand.u32 2147483647, %v1428
    %v1433 = vmul.f32 %v1429, 0.3275911
    %v1434 = vmul.f32 %v1430, 0.3275911
    %v1435 = vmul.f32 %v1431, 0.3275911
    %v1436 = vmul.f32 %v1432, 0.3275911
    %v1437 = vadd.f32 %v1433, 1.0
    %v1438 = vadd.f32 %v1434, 1.0
    %v1439 = vadd.f32 %v1435, 1.0
    %v1440 = vadd.f32 %v1436, 1.0
    %v1441 = vrcp.pop %v1437
    %v1442 = vmul.f32 1.0, %v1441
    %v1443 = vrcp.pop %v1438
    %v1444 = vmul.f32 1.0, %v1443
    %v1445 = vrcp.pop %v1439
    %v1446 = vmul.f32 1.0, %v1445
    %v1447 = vrcp.pop %v1440
    %v1448 = vmul.f32 1.0, %v1447
    %v1449 = vmul.f32 %v1442, 1.0614054
    %v1450 = vmul.f32 %v1444, 1.0614054
    %v1451 = vmul.f32 %v1446, 1.0614054
    %v1452 = vmul.f32 %v1448, 1.0614054
    %v1453 = vadd.f32 %v1449, -1.4531521
    %v1454 = vadd.f32 %v1450, -1.4531521
    %v1455 = vadd.f32 %v1451, -1.4531521
    %v1456 = vadd.f32 %v1452, -1.4531521
    %v1457 = vmul.f32 %v1442, %v1453
    %v1458 = vmul.f32 %v1444, %v1454
    %v1459 = vmul.f32 %v1446, %v1455
    %v1460 = vmul.f32 %v1448, %v1456
    %v1461 = vadd.f32 %v1457, 1.4214138
    %v1462 = vadd.f32 %v1458, 1.4214138
    %v1463 = vadd.f32 %v1459, 1.4214138
    %v1464 = vadd.f32 %v1460, 1.4214138
    %v1465 = vmul.f32 %v1442, %v1461
    %v1466 = vmul.f32 %v1444, %v1462
    %v1467 = vmul.f32 %v1446, %v1463
    %v1468 = vmul.f32 %v1448, %v1464
    %v1469 = vadd.f32 %v1465, -0.28449672
    %v1470 = vadd.f32 %v1466, -0.28449672
    %v1471 = vadd.f32 %v1467, -0.28449672
    %v1472 = vadd.f32 %v1468, -0.28449672
    %v1473 = vmul.f32 %v1442, %v1469
    %v1474 = vmul.f32 %v1444, %v1470
    %v1475 = vmul.f32 %v1446, %v1471
    %v1476 = vmul.f32 %v1448, %v1472
    %v1477 = vadd.f32 %v1473, 0.2548296
    %v1478 = vadd.f32 %v1474, 0.2548296
    %v1479 = vadd.f32 %v1475, 0.2548296
    %v1480 = vadd.f32 %v1476, 0.2548296
    %v1481 = vmul.f32 %v1442, %v1477
    %v1482 = vmul.f32 %v1444, %v1478
    %v1483 = vmul.f32 %v1446, %v1479
    %v1484 = vmul.f32 %v1448, %v1480
    %v1485 = vmul.f32 %v1429, %v1429
    %v1486 = vmul.f32 %v1430, %v1430
    %v1487 = vmul.f32 %v1431, %v1431
    %v1488 = vmul.f32 %v1432, %v1432
    %v1489 = vsub.f32 0.0, %v1485
    %v1490 = vsub.f32 0.0, %v1486
    %v1491 = vsub.f32 0.0, %v1487
    %v1492 = vsub.f32 0.0, %v1488
    %v1493 = vmul.f32 %v1489, 1.442695
    %v1494 = vpow.pop %v1493
    %v1495 = vmul.f32 %v1490, 1.442695
    %v1496 = vpow.pop %v1495
    %v1497 = vmul.f32 %v1491, 1.442695
    %v1498 = vpow.pop %v1497
    %v1499 = vmul.f32 %v1492, 1.442695
    %v1500 = vpow.pop %v1499
    %v1501 = vmul.f32 %v1481, %v1494
    %v1502 = vmul.f32 %v1482, %v1496
    %v1503 = vmul.f32 %v1483, %v1498
    %v1504 = vmul.f32 %v1484, %v1500
    %v1505 = vsub.f32 1.0, %v1501
    %v1506 = vsub.f32 1.0, %v1502
    %v1507 = vsub.f32 1.0, %v1503
    %v1508 = vsub.f32 1.0, %v1504
    %vm1509 = vcmp.lt.f32.partialorder %v1425, 0.0
    %vm1510 = vcmp.lt.f32.partialorder %v1426, 0.0
    %vm1511 = vcmp.lt.f32.partialorder %v1427, 0.0
    %vm1512 = vcmp.lt.f32.partialorder %v1428, 0.0
    %v1513 = vsub.f32 0.0, %v1505
    %v1514 = vsub.f32 0.0, %v1506
    %v1515 = vsub.f32 0.0, %v1507
    %v1516 = vsub.f32 0.0, %v1508
    %v1517 = vsel %vm1509, %v1513, %v1505
    %v1518 = vsel %vm1510, %v1514, %v1506
    %v1519 = vsel %vm1511, %v1515, %v1507
    %v1520 = vsel %vm1512, %v1516, %v1508
    %v1521 = vadd.f32 %v1517, 1.0
    %v1522 = vadd.f32 %v1518, 1.0
    %v1523 = vadd.f32 %v1519, 1.0
    %v1524 = vadd.f32 %v1520, 1.0
    %v1525 = vmul.f32 %v1421, %v1521
    %v1526 = vmul.f32 %v1422, %v1522
    %v1527 = vmul.f32 %v1423, %v1523
    %v1528 = vmul.f32 %v1424, %v1524
    %v1529 = vld [vmem:[#allocation14] sm:$0xff]
    %v1530 = vld [vmem:[#allocation14 + $0x8] sm:$0xff]
    %v1531 = vld [vmem:[#allocation14 + $0x10] sm:$0xff]
    %v1532 = vld [vmem:[#allocation14 + $0x18] sm:$0xff]
    %v1533 = vld [vmem:[#allocation14 + $0x20] sm:$0xff]
    %v1534 = vld [vmem:[#allocation14 + $0x28] sm:$0xff]
    %v1535 = vld [vmem:[#allocation14 + $0x30] sm:$0xff]
    %v1536 = vld [vmem:[#allocation14 + $0x38] sm:$0xff]
    %v1537 = vld [vmem:[#allocation14 + $0x40] sm:$0xff]
    %v1538 = vld [vmem:[#allocation14 + $0x48] sm:$0xff]
    %v1539 = vld [vmem:[#allocation14 + $0x50] sm:$0xff]
    %v1540 = vld [vmem:[#allocation14 + $0x58] sm:$0xff]
    %v1541 = vld [vmem:[#allocation14 + $0x60] sm:$0xff]
    %v1542 = vld [vmem:[#allocation14 + $0x68] sm:$0xff]
    %v1543 = vld [vmem:[#allocation14 + $0x70] sm:$0xff]
    %v1544 = vld [vmem:[#allocation14 + $0x78] sm:$0xff]
    %v1545 = vld [vmem:[#allocation14 + $0x80] sm:$0xff]
    %v1546 = vld [vmem:[#allocation14 + $0x88] sm:$0xff]
    %v1547 = vld [vmem:[#allocation14 + $0x90] sm:$0xff]
    %v1548 = vld [vmem:[#allocation14 + $0x98] sm:$0xff]
    %v1549 = vld [vmem:[#allocation14 + $0xa0] sm:$0xff]
    %v1550 = vld [vmem:[#allocation14 + $0xa8] sm:$0xff]
    %v1551 = vld [vmem:[#allocation14 + $0xb0] sm:$0xff]
    %v1552 = vld [vmem:[#allocation14 + $0xb8] sm:$0xff]
    %v1553 = vld [vmem:[#allocation14 + $0xc0] sm:$0xff]
    %v1554 = vld [vmem:[#allocation14 + $0xc8] sm:$0xff]
    %v1555 = vld [vmem:[#allocation14 + $0xd0] sm:$0xff]
    %v1556 = vld [vmem:[#allocation14 + $0xd8] sm:$0xff]
    %v1557 = vld [vmem:[#allocation14 + $0xe0] sm:$0xff]
    %v1558 = vld [vmem:[#allocation14 + $0xe8] sm:$0xff]
    %v1559 = vld [vmem:[#allocation14 + $0xf0] sm:$0xff]
    %v1560 = vld [vmem:[#allocation14 + $0xf8] sm:$0xff]
    %v1561 = vld [vmem:[#allocation14 + $0x100] sm:$0xff]
    %v1562 = vld [vmem:[#allocation14 + $0x108] sm:$0xff]
    %v1563 = vld [vmem:[#allocation14 + $0x110] sm:$0xff]
    %v1564 = vld [vmem:[#allocation14 + $0x118] sm:$0xff]
    %v1565 = vld [vmem:[#allocation14 + $0x120] sm:$0xff]
    %v1566 = vld [vmem:[#allocation14 + $0x128] sm:$0xff]
    %v1567 = vld [vmem:[#allocation14 + $0x130] sm:$0xff]
    %v1568 = vld [vmem:[#allocation14 + $0x138] sm:$0xff]
    %v1569 = vld [vmem:[#allocation14 + $0x140] sm:$0xff]
    %v1570 = vld [vmem:[#allocation14 + $0x148] sm:$0xff]
    %v1571 = vld [vmem:[#allocation14 + $0x150] sm:$0xff]
    %v1572 = vld [vmem:[#allocation14 + $0x158] sm:$0xff]
    %v1573 = vld [vmem:[#allocation14 + $0x160] sm:$0xff]
    %v1574 = vld [vmem:[#allocation14 + $0x168] sm:$0xff]
    %v1575 = vld [vmem:[#allocation14 + $0x170] sm:$0xff]
    %v1576 = vld [vmem:[#allocation14 + $0x178] sm:$0xff]
    %v1577 = vld [vmem:[#allocation14 + $0x180] sm:$0xff]
    %v1578 = vld [vmem:[#allocation14 + $0x188] sm:$0xff]
    %v1579 = vld [vmem:[#allocation14 + $0x190] sm:$0xff]
    %v1580 = vld [vmem:[#allocation14 + $0x198] sm:$0xff]
    %v1581 = vld [vmem:[#allocation14 + $0x1a0] sm:$0xff]
    %v1582 = vld [vmem:[#allocation14 + $0x1a8] sm:$0xff]
    %v1583 = vld [vmem:[#allocation14 + $0x1b0] sm:$0xff]
    %v1584 = vld [vmem:[#allocation14 + $0x1b8] sm:$0xff]
    %v1585 = vld [vmem:[#allocation14 + $0x1c0] sm:$0xff]
    %v1586 = vld [vmem:[#allocation14 + $0x1c8] sm:$0xff]
    %v1587 = vld [vmem:[#allocation14 + $0x1d0] sm:$0xff]
    %v1588 = vld [vmem:[#allocation14 + $0x1d8] sm:$0xff]
    %v1589 = vld [vmem:[#allocation14 + $0x1e0] sm:$0xff]
    %v1590 = vld [vmem:[#allocation14 + $0x1e8] sm:$0xff]
    %v1591 = vld [vmem:[#allocation14 + $0x1f0] sm:$0xff]
    %v1592 = vld [vmem:[#allocation14 + $0x1f8] sm:$0xff]
    %v1593 = vld [vmem:[#allocation14 + $0x200] sm:$0xff]
    %v1594 = vld [vmem:[#allocation14 + $0x208] sm:$0xff]
    %v1595 = vld [vmem:[#allocation14 + $0x210] sm:$0xff]
    %v1596 = vld [vmem:[#allocation14 + $0x218] sm:$0xff]
    %v1597 = vld [vmem:[#allocation14 + $0x220] sm:$0xff]
    %v1598 = vld [vmem:[#allocation14 + $0x228] sm:$0xff]
    %v1599 = vld [vmem:[#allocation14 + $0x230] sm:$0xff]
    %v1600 = vld [vmem:[#allocation14 + $0x238] sm:$0xff]
    %v1601 = vld [vmem:[#allocation14 + $0x240] sm:$0xff]
    %v1602 = vld [vmem:[#allocation14 + $0x248] sm:$0xff]
    %v1603 = vld [vmem:[#allocation14 + $0x250] sm:$0xff]
    %v1604 = vld [vmem:[#allocation14 + $0x258] sm:$0xff]
    %v1605 = vld [vmem:[#allocation14 + $0x260] sm:$0xff]
    %v1606 = vld [vmem:[#allocation14 + $0x268] sm:$0xff]
    %v1607 = vld [vmem:[#allocation14 + $0x270] sm:$0xff]
    %v1608 = vld [vmem:[#allocation14 + $0x278] sm:$0xff]
    %v1609 = vld [vmem:[#allocation14 + $0x280] sm:$0xff]
    %v1610 = vld [vmem:[#allocation14 + $0x288] sm:$0xff]
    %v1611 = vld [vmem:[#allocation14 + $0x290] sm:$0xff]
    %v1612 = vld [vmem:[#allocation14 + $0x298] sm:$0xff]
    %v1613 = vld [vmem:[#allocation14 + $0x2a0] sm:$0xff]
    %v1614 = vld [vmem:[#allocation14 + $0x2a8] sm:$0xff]
    %v1615 = vld [vmem:[#allocation14 + $0x2b0] sm:$0xff]
    %v1616 = vld [vmem:[#allocation14 + $0x2b8] sm:$0xff]
    %v1617 = vld [vmem:[#allocation14 + $0x2c0] sm:$0xff]
    %v1618 = vld [vmem:[#allocation14 + $0x2c8] sm:$0xff]
    %v1619 = vld [vmem:[#allocation14 + $0x2d0] sm:$0xff]
    %v1620 = vld [vmem:[#allocation14 + $0x2d8] sm:$0xff]
    %v1621 = vld [vmem:[#allocation14 + $0x2e0] sm:$0xff]
    %v1622 = vld [vmem:[#allocation14 + $0x2e8] sm:$0xff]
    %v1623 = vld [vmem:[#allocation14 + $0x2f0] sm:$0xff]
    %v1624 = vld [vmem:[#allocation14 + $0x2f8] sm:$0xff]
    %v1625 = vld [vmem:[#allocation14 + $0x300] sm:$0xff]
    %v1626 = vld [vmem:[#allocation14 + $0x308] sm:$0xff]
    %v1627 = vld [vmem:[#allocation14 + $0x310] sm:$0xff]
    %v1628 = vld [vmem:[#allocation14 + $0x318] sm:$0xff]
    %v1629 = vld [vmem:[#allocation14 + $0x320] sm:$0xff]
    %v1630 = vld [vmem:[#allocation14 + $0x328] sm:$0xff]
    %v1631 = vld [vmem:[#allocation14 + $0x330] sm:$0xff]
    %v1632 = vld [vmem:[#allocation14 + $0x338] sm:$0xff]
    %v1633 = vld [vmem:[#allocation14 + $0x340] sm:$0xff]
    %v1634 = vld [vmem:[#allocation14 + $0x348] sm:$0xff]
    %v1635 = vld [vmem:[#allocation14 + $0x350] sm:$0xff]
    %v1636 = vld [vmem:[#allocation14 + $0x358] sm:$0xff]
    %v1637 = vld [vmem:[#allocation14 + $0x360] sm:$0xff]
    %v1638 = vld [vmem:[#allocation14 + $0x368] sm:$0xff]
    %v1639 = vld [vmem:[#allocation14 + $0x370] sm:$0xff]
    %v1640 = vld [vmem:[#allocation14 + $0x378] sm:$0xff]
    %v1641 = vld [vmem:[#allocation14 + $0x380] sm:$0xff]
    %v1642 = vld [vmem:[#allocation14 + $0x388] sm:$0xff]
    %v1643 = vld [vmem:[#allocation14 + $0x390] sm:$0xff]
    %v1644 = vld [vmem:[#allocation14 + $0x398] sm:$0xff]
    %v1645 = vld [vmem:[#allocation14 + $0x3a0] sm:$0xff]
    %v1646 = vld [vmem:[#allocation14 + $0x3a8] sm:$0xff]
    %v1647 = vld [vmem:[#allocation14 + $0x3b0] sm:$0xff]
    %v1648 = vld [vmem:[#allocation14 + $0x3b8] sm:$0xff]
    %v1649 = vld [vmem:[#allocation14 + $0x3c0] sm:$0xff]
    %v1650 = vld [vmem:[#allocation14 + $0x3c8] sm:$0xff]
    %v1651 = vld [vmem:[#allocation14 + $0x3d0] sm:$0xff]
    %v1652 = vld [vmem:[#allocation14 + $0x3d8] sm:$0xff]
    %v1653 = vld [vmem:[#allocation14 + $0x3e0] sm:$0xff]
    %v1654 = vld [vmem:[#allocation14 + $0x3e8] sm:$0xff]
    %v1655 = vld [vmem:[#allocation14 + $0x3f0] sm:$0xff]
    %v1656 = vld [vmem:[#allocation14 + $0x3f8] sm:$0xff]
    %v1657 = vld [vmem:[#allocation14 + $0x400] sm:$0xff]
    %v1658 = vld [vmem:[#allocation14 + $0x408] sm:$0xff]
    %v1659 = vld [vmem:[#allocation14 + $0x410] sm:$0xff]
    %v1660 = vld [vmem:[#allocation14 + $0x418] sm:$0xff]
    %v1661 = vld [vmem:[#allocation14 + $0x420] sm:$0xff]
    %v1662 = vld [vmem:[#allocation14 + $0x428] sm:$0xff]
    %v1663 = vld [vmem:[#allocation14 + $0x430] sm:$0xff]
    %v1664 = vld [vmem:[#allocation14 + $0x438] sm:$0xff]
    %v1665 = vld [vmem:[#allocation14 + $0x440] sm:$0xff]
    %v1666 = vld [vmem:[#allocation14 + $0x448] sm:$0xff]
    %v1667 = vld [vmem:[#allocation14 + $0x450] sm:$0xff]
    %v1668 = vld [vmem:[#allocation14 + $0x458] sm:$0xff]
    %v1669 = vld [vmem:[#allocation14 + $0x460] sm:$0xff]
    %v1670 = vld [vmem:[#allocation14 + $0x468] sm:$0xff]
    %v1671 = vld [vmem:[#allocation14 + $0x470] sm:$0xff]
    %v1672 = vld [vmem:[#allocation14 + $0x478] sm:$0xff]
    %v1673 = vld [vmem:[#allocation14 + $0x480] sm:$0xff]
    %v1674 = vld [vmem:[#allocation14 + $0x488] sm:$0xff]
    %v1675 = vld [vmem:[#allocation14 + $0x490] sm:$0xff]
    %v1676 = vld [vmem:[#allocation14 + $0x498] sm:$0xff]
    %v1677 = vld [vmem:[#allocation14 + $0x4a0] sm:$0xff]
    %v1678 = vld [vmem:[#allocation14 + $0x4a8] sm:$0xff]
    %v1679 = vld [vmem:[#allocation14 + $0x4b0] sm:$0xff]
    %v1680 = vld [vmem:[#allocation14 + $0x4b8] sm:$0xff]
    %v1681 = vld [vmem:[#allocation14 + $0x4c0] sm:$0xff]
    %v1682 = vld [vmem:[#allocation14 + $0x4c8] sm:$0xff]
    %v1683 = vld [vmem:[#allocation14 + $0x4d0] sm:$0xff]
    %v1684 = vld [vmem:[#allocation14 + $0x4d8] sm:$0xff]
    %v1685 = vld [vmem:[#allocation14 + $0x4e0] sm:$0xff]
    %v1686 = vld [vmem:[#allocation14 + $0x4e8] sm:$0xff]
    %v1687 = vld [vmem:[#allocation14 + $0x4f0] sm:$0xff]
    %v1688 = vld [vmem:[#allocation14 + $0x4f8] sm:$0xff]
    %v1689 = vld [vmem:[#allocation14 + $0x500] sm:$0xff]
    %v1690 = vld [vmem:[#allocation14 + $0x508] sm:$0xff]
    %v1691 = vld [vmem:[#allocation14 + $0x510] sm:$0xff]
    %v1692 = vld [vmem:[#allocation14 + $0x518] sm:$0xff]
    %v1693 = vld [vmem:[#allocation14 + $0x520] sm:$0xff]
    %v1694 = vld [vmem:[#allocation14 + $0x528] sm:$0xff]
    %v1695 = vld [vmem:[#allocation14 + $0x530] sm:$0xff]
    %v1696 = vld [vmem:[#allocation14 + $0x538] sm:$0xff]
    %v1697 = vld [vmem:[#allocation14 + $0x540] sm:$0xff]
    %v1698 = vld [vmem:[#allocation14 + $0x548] sm:$0xff]
    %v1699 = vld [vmem:[#allocation14 + $0x550] sm:$0xff]
    %v1700 = vld [vmem:[#allocation14 + $0x558] sm:$0xff]
    %v1701 = vld [vmem:[#allocation14 + $0x560] sm:$0xff]
    %v1702 = vld [vmem:[#allocation14 + $0x568] sm:$0xff]
    %v1703 = vld [vmem:[#allocation14 + $0x570] sm:$0xff]
    %v1704 = vld [vmem:[#allocation14 + $0x578] sm:$0xff]
    %v1705 = vld [vmem:[#allocation14 + $0x580] sm:$0xff]
    %v1706 = vld [vmem:[#allocation14 + $0x588] sm:$0xff]
    %v1707 = vld [vmem:[#allocation14 + $0x590] sm:$0xff]
    %v1708 = vld [vmem:[#allocation14 + $0x598] sm:$0xff]
    %v1709 = vld [vmem:[#allocation14 + $0x5a0] sm:$0xff]
    %v1710 = vld [vmem:[#allocation14 + $0x5a8] sm:$0xff]
    %v1711 = vld [vmem:[#allocation14 + $0x5b0] sm:$0xff]
    %v1712 = vld [vmem:[#allocation14 + $0x5b8] sm:$0xff]
    %v1713 = vld [vmem:[#allocation14 + $0x5c0] sm:$0xff]
    %v1714 = vld [vmem:[#allocation14 + $0x5c8] sm:$0xff]
    %v1715 = vld [vmem:[#allocation14 + $0x5d0] sm:$0xff]
    %v1716 = vld [vmem:[#allocation14 + $0x5d8] sm:$0xff]
    %v1717 = vld [vmem:[#allocation14 + $0x5e0] sm:$0xff]
    %v1718 = vld [vmem:[#allocation14 + $0x5e8] sm:$0xff]
    %v1719 = vld [vmem:[#allocation14 + $0x5f0] sm:$0xff]
    %v1720 = vld [vmem:[#allocation14 + $0x5f8] sm:$0xff]
    %v1721 = vld [vmem:[#allocation14 + $0x600] sm:$0xff]
    %v1722 = vld [vmem:[#allocation14 + $0x608] sm:$0xff]
    %v1723 = vld [vmem:[#allocation14 + $0x610] sm:$0xff]
    %v1724 = vld [vmem:[#allocation14 + $0x618] sm:$0xff]
    %v1725 = vld [vmem:[#allocation14 + $0x620] sm:$0xff]
    %v1726 = vld [vmem:[#allocation14 + $0x628] sm:$0xff]
    %v1727 = vld [vmem:[#allocation14 + $0x630] sm:$0xff]
    %v1728 = vld [vmem:[#allocation14 + $0x638] sm:$0xff]
    %v1729 = vld [vmem:[#allocation14 + $0x640] sm:$0xff]
    %v1730 = vld [vmem:[#allocation14 + $0x648] sm:$0xff]
    %v1731 = vld [vmem:[#allocation14 + $0x650] sm:$0xff]
    %v1732 = vld [vmem:[#allocation14 + $0x658] sm:$0xff]
    %v1733 = vld [vmem:[#allocation14 + $0x660] sm:$0xff]
    %v1734 = vld [vmem:[#allocation14 + $0x668] sm:$0xff]
    %v1735 = vld [vmem:[#allocation14 + $0x670] sm:$0xff]
    %v1736 = vld [vmem:[#allocation14 + $0x678] sm:$0xff]
    %v1737 = vld [vmem:[#allocation14 + $0x680] sm:$0xff]
    %v1738 = vld [vmem:[#allocation14 + $0x688] sm:$0xff]
    %v1739 = vld [vmem:[#allocation14 + $0x690] sm:$0xff]
    %v1740 = vld [vmem:[#allocation14 + $0x698] sm:$0xff]
    %v1741 = vld [vmem:[#allocation14 + $0x6a0] sm:$0xff]
    %v1742 = vld [vmem:[#allocation14 + $0x6a8] sm:$0xff]
    %v1743 = vld [vmem:[#allocation14 + $0x6b0] sm:$0xff]
    %v1744 = vld [vmem:[#allocation14 + $0x6b8] sm:$0xff]
    %v1745 = vld [vmem:[#allocation14 + $0x6c0] sm:$0xff]
    %v1746 = vld [vmem:[#allocation14 + $0x6c8] sm:$0xff]
    %v1747 = vld [vmem:[#allocation14 + $0x6d0] sm:$0xff]
    %v1748 = vld [vmem:[#allocation14 + $0x6d8] sm:$0xff]
    %v1749 = vld [vmem:[#allocation14 + $0x6e0] sm:$0xff]
    %v1750 = vld [vmem:[#allocation14 + $0x6e8] sm:$0xff]
    %v1751 = vld [vmem:[#allocation14 + $0x6f0] sm:$0xff]
    %v1752 = vld [vmem:[#allocation14 + $0x6f8] sm:$0xff]
    %v1753 = vld [vmem:[#allocation14 + $0x700] sm:$0xff]
    %v1754 = vld [vmem:[#allocation14 + $0x708] sm:$0xff]
    %v1755 = vld [vmem:[#allocation14 + $0x710] sm:$0xff]
    %v1756 = vld [vmem:[#allocation14 + $0x718] sm:$0xff]
    %v1757 = vld [vmem:[#allocation14 + $0x720] sm:$0xff]
    %v1758 = vld [vmem:[#allocation14 + $0x728] sm:$0xff]
    %v1759 = vld [vmem:[#allocation14 + $0x730] sm:$0xff]
    %v1760 = vld [vmem:[#allocation14 + $0x738] sm:$0xff]
    %v1761 = vld [vmem:[#allocation14 + $0x740] sm:$0xff]
    %v1762 = vld [vmem:[#allocation14 + $0x748] sm:$0xff]
    %v1763 = vld [vmem:[#allocation14 + $0x750] sm:$0xff]
    %v1764 = vld [vmem:[#allocation14 + $0x758] sm:$0xff]
    %v1765 = vld [vmem:[#allocation14 + $0x760] sm:$0xff]
    %v1766 = vld [vmem:[#allocation14 + $0x768] sm:$0xff]
    %v1767 = vld [vmem:[#allocation14 + $0x770] sm:$0xff]
    %v1768 = vld [vmem:[#allocation14 + $0x778] sm:$0xff]
    %v1769 = vld [vmem:[#allocation14 + $0x780] sm:$0xff]
    %v1770 = vld [vmem:[#allocation14 + $0x788] sm:$0xff]
    %v1771 = vld [vmem:[#allocation14 + $0x790] sm:$0xff]
    %v1772 = vld [vmem:[#allocation14 + $0x798] sm:$0xff]
    %v1773 = vld [vmem:[#allocation14 + $0x7a0] sm:$0xff]
    %v1774 = vld [vmem:[#allocation14 + $0x7a8] sm:$0xff]
    %v1775 = vld [vmem:[#allocation14 + $0x7b0] sm:$0xff]
    %v1776 = vld [vmem:[#allocation14 + $0x7b8] sm:$0xff]
    %v1777 = vld [vmem:[#allocation14 + $0x7c0] sm:$0xff]
    %v1778 = vld [vmem:[#allocation14 + $0x7c8] sm:$0xff]
    %v1779 = vld [vmem:[#allocation14 + $0x7d0] sm:$0xff]
    %v1780 = vld [vmem:[#allocation14 + $0x7d8] sm:$0xff]
    %v1781 = vld [vmem:[#allocation14 + $0x7e0] sm:$0xff]
    %v1782 = vld [vmem:[#allocation14 + $0x7e8] sm:$0xff]
    %v1783 = vld [vmem:[#allocation14 + $0x7f0] sm:$0xff]
    %v1784 = vld [vmem:[#allocation14 + $0x7f8] sm:$0xff]
    %v1785 = vld [vmem:[#allocation14 + $0x800] sm:$0xff]
    %v1786 = vld [vmem:[#allocation14 + $0x808] sm:$0xff]
    %v1787 = vld [vmem:[#allocation14 + $0x810] sm:$0xff]
    %v1788 = vld [vmem:[#allocation14 + $0x818] sm:$0xff]
    %v1789 = vld [vmem:[#allocation14 + $0x820] sm:$0xff]
    %v1790 = vld [vmem:[#allocation14 + $0x828] sm:$0xff]
    %v1791 = vld [vmem:[#allocation14 + $0x830] sm:$0xff]
    %v1792 = vld [vmem:[#allocation14 + $0x838] sm:$0xff]
    %v1793 = vld [vmem:[#allocation14 + $0x840] sm:$0xff]
    %v1794 = vld [vmem:[#allocation14 + $0x848] sm:$0xff]
    %v1795 = vld [vmem:[#allocation14 + $0x850] sm:$0xff]
    %v1796 = vld [vmem:[#allocation14 + $0x858] sm:$0xff]
    %v1797 = vld [vmem:[#allocation14 + $0x860] sm:$0xff]
    %v1798 = vld [vmem:[#allocation14 + $0x868] sm:$0xff]
    %v1799 = vld [vmem:[#allocation14 + $0x870] sm:$0xff]
    %v1800 = vld [vmem:[#allocation14 + $0x878] sm:$0xff]
    %v1801 = vld [vmem:[#allocation14 + $0x880] sm:$0xff]
    %v1802 = vld [vmem:[#allocation14 + $0x888] sm:$0xff]
    %v1803 = vld [vmem:[#allocation14 + $0x890] sm:$0xff]
    %v1804 = vld [vmem:[#allocation14 + $0x898] sm:$0xff]
    %v1805 = vld [vmem:[#allocation14 + $0x8a0] sm:$0xff]
    %v1806 = vld [vmem:[#allocation14 + $0x8a8] sm:$0xff]
    %v1807 = vld [vmem:[#allocation14 + $0x8b0] sm:$0xff]
    %v1808 = vld [vmem:[#allocation14 + $0x8b8] sm:$0xff]
    %v1809 = vld [vmem:[#allocation14 + $0x8c0] sm:$0xff]
    %v1810 = vld [vmem:[#allocation14 + $0x8c8] sm:$0xff]
    %v1811 = vld [vmem:[#allocation14 + $0x8d0] sm:$0xff]
    %v1812 = vld [vmem:[#allocation14 + $0x8d8] sm:$0xff]
    %v1813 = vld [vmem:[#allocation14 + $0x8e0] sm:$0xff]
    %v1814 = vld [vmem:[#allocation14 + $0x8e8] sm:$0xff]
    %v1815 = vld [vmem:[#allocation14 + $0x8f0] sm:$0xff]
    %v1816 = vld [vmem:[#allocation14 + $0x8f8] sm:$0xff]
    %v1817 = vld [vmem:[#allocation14 + $0x900] sm:$0xff]
    %v1818 = vld [vmem:[#allocation14 + $0x908] sm:$0xff]
    %v1819 = vld [vmem:[#allocation14 + $0x910] sm:$0xff]
    %v1820 = vld [vmem:[#allocation14 + $0x918] sm:$0xff]
    %v1821 = vld [vmem:[#allocation14 + $0x920] sm:$0xff]
    %v1822 = vld [vmem:[#allocation14 + $0x928] sm:$0xff]
    %v1823 = vld [vmem:[#allocation14 + $0x930] sm:$0xff]
    %v1824 = vld [vmem:[#allocation14 + $0x938] sm:$0xff]
    %v1825 = vld [vmem:[#allocation14 + $0x940] sm:$0xff]
    %v1826 = vld [vmem:[#allocation14 + $0x948] sm:$0xff]
    %v1827 = vld [vmem:[#allocation14 + $0x950] sm:$0xff]
    %v1828 = vld [vmem:[#allocation14 + $0x958] sm:$0xff]
    %v1829 = vld [vmem:[#allocation14 + $0x960] sm:$0xff]
    %v1830 = vld [vmem:[#allocation14 + $0x968] sm:$0xff]
    %v1831 = vld [vmem:[#allocation14 + $0x970] sm:$0xff]
    %v1832 = vld [vmem:[#allocation14 + $0x978] sm:$0xff]
    %v1833 = vld [vmem:[#allocation14 + $0x980] sm:$0xff]
    %v1834 = vld [vmem:[#allocation14 + $0x988] sm:$0xff]
    %v1835 = vld [vmem:[#allocation14 + $0x990] sm:$0xff]
    %v1836 = vld [vmem:[#allocation14 + $0x998] sm:$0xff]
    %v1837 = vld [vmem:[#allocation14 + $0x9a0] sm:$0xff]
    %v1838 = vld [vmem:[#allocation14 + $0x9a8] sm:$0xff]
    %v1839 = vld [vmem:[#allocation14 + $0x9b0] sm:$0xff]
    %v1840 = vld [vmem:[#allocation14 + $0x9b8] sm:$0xff]
    %v1841 = vld [vmem:[#allocation14 + $0x9c0] sm:$0xff]
    %v1842 = vld [vmem:[#allocation14 + $0x9c8] sm:$0xff]
    %v1843 = vld [vmem:[#allocation14 + $0x9d0] sm:$0xff]
    %v1844 = vld [vmem:[#allocation14 + $0x9d8] sm:$0xff]
    %v1845 = vld [vmem:[#allocation14 + $0x9e0] sm:$0xff]
    %v1846 = vld [vmem:[#allocation14 + $0x9e8] sm:$0xff]
    %v1847 = vld [vmem:[#allocation14 + $0x9f0] sm:$0xff]
    %v1848 = vld [vmem:[#allocation14 + $0x9f8] sm:$0xff]
    %v1849 = vld [vmem:[#allocation14 + $0xa00] sm:$0xff]
    %v1850 = vld [vmem:[#allocation14 + $0xa08] sm:$0xff]
    %v1851 = vld [vmem:[#allocation14 + $0xa10] sm:$0xff]
    %v1852 = vld [vmem:[#allocation14 + $0xa18] sm:$0xff]
    %v1853 = vld [vmem:[#allocation14 + $0xa20] sm:$0xff]
    %v1854 = vld [vmem:[#allocation14 + $0xa28] sm:$0xff]
    %v1855 = vld [vmem:[#allocation14 + $0xa30] sm:$0xff]
    %v1856 = vld [vmem:[#allocation14 + $0xa38] sm:$0xff]
    %v1857 = vld [vmem:[#allocation14 + $0xa40] sm:$0xff]
    %v1858 = vld [vmem:[#allocation14 + $0xa48] sm:$0xff]
    %v1859 = vld [vmem:[#allocation14 + $0xa50] sm:$0xff]
    %v1860 = vld [vmem:[#allocation14 + $0xa58] sm:$0xff]
    %v1861 = vld [vmem:[#allocation14 + $0xa60] sm:$0xff]
    %v1862 = vld [vmem:[#allocation14 + $0xa68] sm:$0xff]
    %v1863 = vld [vmem:[#allocation14 + $0xa70] sm:$0xff]
    %v1864 = vld [vmem:[#allocation14 + $0xa78] sm:$0xff]
    %v1865 = vld [vmem:[#allocation14 + $0xa80] sm:$0xff]
    %v1866 = vld [vmem:[#allocation14 + $0xa88] sm:$0xff]
    %v1867 = vld [vmem:[#allocation14 + $0xa90] sm:$0xff]
    %v1868 = vld [vmem:[#allocation14 + $0xa98] sm:$0xff]
    %v1869 = vld [vmem:[#allocation14 + $0xaa0] sm:$0xff]
    %v1870 = vld [vmem:[#allocation14 + $0xaa8] sm:$0xff]
    %v1871 = vld [vmem:[#allocation14 + $0xab0] sm:$0xff]
    %v1872 = vld [vmem:[#allocation14 + $0xab8] sm:$0xff]
    %v1873 = vld [vmem:[#allocation14 + $0xac0] sm:$0xff]
    %v1874 = vld [vmem:[#allocation14 + $0xac8] sm:$0xff]
    %v1875 = vld [vmem:[#allocation14 + $0xad0] sm:$0xff]
    %v1876 = vld [vmem:[#allocation14 + $0xad8] sm:$0xff]
    %v1877 = vld [vmem:[#allocation14 + $0xae0] sm:$0xff]
    %v1878 = vld [vmem:[#allocation14 + $0xae8] sm:$0xff]
    %v1879 = vld [vmem:[#allocation14 + $0xaf0] sm:$0xff]
    %v1880 = vld [vmem:[#allocation14 + $0xaf8] sm:$0xff]
    %v1881 = vld [vmem:[#allocation14 + $0xb00] sm:$0xff]
    %v1882 = vld [vmem:[#allocation14 + $0xb08] sm:$0xff]
    %v1883 = vld [vmem:[#allocation14 + $0xb10] sm:$0xff]
    %v1884 = vld [vmem:[#allocation14 + $0xb18] sm:$0xff]
    %v1885 = vld [vmem:[#allocation14 + $0xb20] sm:$0xff]
    %v1886 = vld [vmem:[#allocation14 + $0xb28] sm:$0xff]
    %v1887 = vld [vmem:[#allocation14 + $0xb30] sm:$0xff]
    %v1888 = vld [vmem:[#allocation14 + $0xb38] sm:$0xff]
    %v1889 = vld [vmem:[#allocation14 + $0xb40] sm:$0xff]
    %v1890 = vld [vmem:[#allocation14 + $0xb48] sm:$0xff]
    %v1891 = vld [vmem:[#allocation14 + $0xb50] sm:$0xff]
    %v1892 = vld [vmem:[#allocation14 + $0xb58] sm:$0xff]
    %v1893 = vld [vmem:[#allocation14 + $0xb60] sm:$0xff]
    %v1894 = vld [vmem:[#allocation14 + $0xb68] sm:$0xff]
    %v1895 = vld [vmem:[#allocation14 + $0xb70] sm:$0xff]
    %v1896 = vld [vmem:[#allocation14 + $0xb78] sm:$0xff]
    %v1897 = vld [vmem:[#allocation14 + $0xb80] sm:$0xff]
    %v1898 = vld [vmem:[#allocation14 + $0xb88] sm:$0xff]
    %v1899 = vld [vmem:[#allocation14 + $0xb90] sm:$0xff]
    %v1900 = vld [vmem:[#allocation14 + $0xb98] sm:$0xff]
    %v1901 = vld [vmem:[#allocation14 + $0xba0] sm:$0xff]
    %v1902 = vld [vmem:[#allocation14 + $0xba8] sm:$0xff]
    %v1903 = vld [vmem:[#allocation14 + $0xbb0] sm:$0xff]
    %v1904 = vld [vmem:[#allocation14 + $0xbb8] sm:$0xff]
    %v1905 = vld [vmem:[#allocation14 + $0xbc0] sm:$0xff]
    %v1906 = vld [vmem:[#allocation14 + $0xbc8] sm:$0xff]
    %v1907 = vld [vmem:[#allocation14 + $0xbd0] sm:$0xff]
    %v1908 = vld [vmem:[#allocation14 + $0xbd8] sm:$0xff]
    %v1909 = vld [vmem:[#allocation14 + $0xbe0] sm:$0xff]
    %v1910 = vld [vmem:[#allocation14 + $0xbe8] sm:$0xff]
    %v1911 = vld [vmem:[#allocation14 + $0xbf0] sm:$0xff]
    %v1912 = vld [vmem:[#allocation14 + $0xbf8] sm:$0xff]
    %v1913 = vld [vmem:[#allocation14 + $0xc00] sm:$0xff]
    %v1914 = vld [vmem:[#allocation14 + $0xc08] sm:$0xff]
    %v1915 = vld [vmem:[#allocation14 + $0xc10] sm:$0xff]
    %v1916 = vld [vmem:[#allocation14 + $0xc18] sm:$0xff]
    %v1917 = vld [vmem:[#allocation14 + $0xc20] sm:$0xff]
    %v1918 = vld [vmem:[#allocation14 + $0xc28] sm:$0xff]
    %v1919 = vld [vmem:[#allocation14 + $0xc30] sm:$0xff]
    %v1920 = vld [vmem:[#allocation14 + $0xc38] sm:$0xff]
    %v1921 = vld [vmem:[#allocation14 + $0xc40] sm:$0xff]
    %v1922 = vld [vmem:[#allocation14 + $0xc48] sm:$0xff]
    %v1923 = vld [vmem:[#allocation14 + $0xc50] sm:$0xff]
    %v1924 = vld [vmem:[#allocation14 + $0xc58] sm:$0xff]
    %v1925 = vld [vmem:[#allocation14 + $0xc60] sm:$0xff]
    %v1926 = vld [vmem:[#allocation14 + $0xc68] sm:$0xff]
    %v1927 = vld [vmem:[#allocation14 + $0xc70] sm:$0xff]
    %v1928 = vld [vmem:[#allocation14 + $0xc78] sm:$0xff]
    %v1929 = vld [vmem:[#allocation14 + $0xc80] sm:$0xff]
    %v1930 = vld [vmem:[#allocation14 + $0xc88] sm:$0xff]
    %v1931 = vld [vmem:[#allocation14 + $0xc90] sm:$0xff]
    %v1932 = vld [vmem:[#allocation14 + $0xc98] sm:$0xff]
    %v1933 = vld [vmem:[#allocation14 + $0xca0] sm:$0xff]
    %v1934 = vld [vmem:[#allocation14 + $0xca8] sm:$0xff]
    %v1935 = vld [vmem:[#allocation14 + $0xcb0] sm:$0xff]
    %v1936 = vld [vmem:[#allocation14 + $0xcb8] sm:$0xff]
    %v1937 = vld [vmem:[#allocation14 + $0xcc0] sm:$0xff]
    %v1938 = vld [vmem:[#allocation14 + $0xcc8] sm:$0xff]
    %v1939 = vld [vmem:[#allocation14 + $0xcd0] sm:$0xff]
    %v1940 = vld [vmem:[#allocation14 + $0xcd8] sm:$0xff]
    %v1941 = vld [vmem:[#allocation14 + $0xce0] sm:$0xff]
    %v1942 = vld [vmem:[#allocation14 + $0xce8] sm:$0xff]
    %v1943 = vld [vmem:[#allocation14 + $0xcf0] sm:$0xff]
    %v1944 = vld [vmem:[#allocation14 + $0xcf8] sm:$0xff]
    %v1945 = vld [vmem:[#allocation14 + $0xd00] sm:$0xff]
    %v1946 = vld [vmem:[#allocation14 + $0xd08] sm:$0xff]
    %v1947 = vld [vmem:[#allocation14 + $0xd10] sm:$0xff]
    %v1948 = vld [vmem:[#allocation14 + $0xd18] sm:$0xff]
    %v1949 = vld [vmem:[#allocation14 + $0xd20] sm:$0xff]
    %v1950 = vld [vmem:[#allocation14 + $0xd28] sm:$0xff]
    %v1951 = vld [vmem:[#allocation14 + $0xd30] sm:$0xff]
    %v1952 = vld [vmem:[#allocation14 + $0xd38] sm:$0xff]
    %v1953 = vld [vmem:[#allocation14 + $0xd40] sm:$0xff]
    %v1954 = vld [vmem:[#allocation14 + $0xd48] sm:$0xff]
    %v1955 = vld [vmem:[#allocation14 + $0xd50] sm:$0xff]
    %v1956 = vld [vmem:[#allocation14 + $0xd58] sm:$0xff]
    %v1957 = vld [vmem:[#allocation14 + $0xd60] sm:$0xff]
    %v1958 = vld [vmem:[#allocation14 + $0xd68] sm:$0xff]
    %v1959 = vld [vmem:[#allocation14 + $0xd70] sm:$0xff]
    %v1960 = vld [vmem:[#allocation14 + $0xd78] sm:$0xff]
    %v1961 = vld [vmem:[#allocation14 + $0xd80] sm:$0xff]
    %v1962 = vld [vmem:[#allocation14 + $0xd88] sm:$0xff]
    %v1963 = vld [vmem:[#allocation14 + $0xd90] sm:$0xff]
    %v1964 = vld [vmem:[#allocation14 + $0xd98] sm:$0xff]
    %v1965 = vld [vmem:[#allocation14 + $0xda0] sm:$0xff]
    %v1966 = vld [vmem:[#allocation14 + $0xda8] sm:$0xff]
    %v1967 = vld [vmem:[#allocation14 + $0xdb0] sm:$0xff]
    %v1968 = vld [vmem:[#allocation14 + $0xdb8] sm:$0xff]
    %v1969 = vld [vmem:[#allocation14 + $0xdc0] sm:$0xff]
    %v1970 = vld [vmem:[#allocation14 + $0xdc8] sm:$0xff]
    %v1971 = vld [vmem:[#allocation14 + $0xdd0] sm:$0xff]
    %v1972 = vld [vmem:[#allocation14 + $0xdd8] sm:$0xff]
    %v1973 = vld [vmem:[#allocation14 + $0xde0] sm:$0xff]
    %v1974 = vld [vmem:[#allocation14 + $0xde8] sm:$0xff]
    %v1975 = vld [vmem:[#allocation14 + $0xdf0] sm:$0xff]
    %v1976 = vld [vmem:[#allocation14 + $0xdf8] sm:$0xff]
    %v1977 = vld [vmem:[#allocation14 + $0xe00] sm:$0xff]
    %v1978 = vld [vmem:[#allocation14 + $0xe08] sm:$0xff]
    %v1979 = vld [vmem:[#allocation14 + $0xe10] sm:$0xff]
    %v1980 = vld [vmem:[#allocation14 + $0xe18] sm:$0xff]
    %v1981 = vld [vmem:[#allocation14 + $0xe20] sm:$0xff]
    %v1982 = vld [vmem:[#allocation14 + $0xe28] sm:$0xff]
    %v1983 = vld [vmem:[#allocation14 + $0xe30] sm:$0xff]
    %v1984 = vld [vmem:[#allocation14 + $0xe38] sm:$0xff]
    %v1985 = vld [vmem:[#allocation14 + $0xe40] sm:$0xff]
    %v1986 = vld [vmem:[#allocation14 + $0xe48] sm:$0xff]
    %v1987 = vld [vmem:[#allocation14 + $0xe50] sm:$0xff]
    %v1988 = vld [vmem:[#allocation14 + $0xe58] sm:$0xff]
    %v1989 = vld [vmem:[#allocation14 + $0xe60] sm:$0xff]
    %v1990 = vld [vmem:[#allocation14 + $0xe68] sm:$0xff]
    %v1991 = vld [vmem:[#allocation14 + $0xe70] sm:$0xff]
    %v1992 = vld [vmem:[#allocation14 + $0xe78] sm:$0xff]
    %v1993 = vld [vmem:[#allocation14 + $0xe80] sm:$0xff]
    %v1994 = vld [vmem:[#allocation14 + $0xe88] sm:$0xff]
    %v1995 = vld [vmem:[#allocation14 + $0xe90] sm:$0xff]
    %v1996 = vld [vmem:[#allocation14 + $0xe98] sm:$0xff]
    %v1997 = vld [vmem:[#allocation14 + $0xea0] sm:$0xff]
    %v1998 = vld [vmem:[#allocation14 + $0xea8] sm:$0xff]
    %v1999 = vld [vmem:[#allocation14 + $0xeb0] sm:$0xff]
    %v2000 = vld [vmem:[#allocation14 + $0xeb8] sm:$0xff]
    %v2001 = vld [vmem:[#allocation14 + $0xec0] sm:$0xff]
    %v2002 = vld [vmem:[#allocation14 + $0xec8] sm:$0xff]
    %v2003 = vld [vmem:[#allocation14 + $0xed0] sm:$0xff]
    %v2004 = vld [vmem:[#allocation14 + $0xed8] sm:$0xff]
    %v2005 = vld [vmem:[#allocation14 + $0xee0] sm:$0xff]
    %v2006 = vld [vmem:[#allocation14 + $0xee8] sm:$0xff]
    %v2007 = vld [vmem:[#allocation14 + $0xef0] sm:$0xff]
    %v2008 = vld [vmem:[#allocation14 + $0xef8] sm:$0xff]
    %v2009 = vld [vmem:[#allocation14 + $0xf00] sm:$0xff]
    %v2010 = vld [vmem:[#allocation14 + $0xf08] sm:$0xff]
    %v2011 = vld [vmem:[#allocation14 + $0xf10] sm:$0xff]
    %v2012 = vld [vmem:[#allocation14 + $0xf18] sm:$0xff]
    %v2013 = vld [vmem:[#allocation14 + $0xf20] sm:$0xff]
    %v2014 = vld [vmem:[#allocation14 + $0xf28] sm:$0xff]
    %v2015 = vld [vmem:[#allocation14 + $0xf30] sm:$0xff]
    %v2016 = vld [vmem:[#allocation14 + $0xf38] sm:$0xff]
    %v2017 = vld [vmem:[#allocation14 + $0xf40] sm:$0xff]
    %v2018 = vld [vmem:[#allocation14 + $0xf48] sm:$0xff]
    %v2019 = vld [vmem:[#allocation14 + $0xf50] sm:$0xff]
    %v2020 = vld [vmem:[#allocation14 + $0xf58] sm:$0xff]
    %v2021 = vld [vmem:[#allocation14 + $0xf60] sm:$0xff]
    %v2022 = vld [vmem:[#allocation14 + $0xf68] sm:$0xff]
    %v2023 = vld [vmem:[#allocation14 + $0xf70] sm:$0xff]
    %v2024 = vld [vmem:[#allocation14 + $0xf78] sm:$0xff]
    %v2025 = vld [vmem:[#allocation14 + $0xf80] sm:$0xff]
    %v2026 = vld [vmem:[#allocation14 + $0xf88] sm:$0xff]
    %v2027 = vld [vmem:[#allocation14 + $0xf90] sm:$0xff]
    %v2028 = vld [vmem:[#allocation14 + $0xf98] sm:$0xff]
    %v2029 = vld [vmem:[#allocation14 + $0xfa0] sm:$0xff]
    %v2030 = vld [vmem:[#allocation14 + $0xfa8] sm:$0xff]
    %v2031 = vld [vmem:[#allocation14 + $0xfb0] sm:$0xff]
    %v2032 = vld [vmem:[#allocation14 + $0xfb8] sm:$0xff]
    %v2033 = vld [vmem:[#allocation14 + $0xfc0] sm:$0xff]
    %v2034 = vld [vmem:[#allocation14 + $0xfc8] sm:$0xff]
    %v2035 = vld [vmem:[#allocation14 + $0xfd0] sm:$0xff]
    %v2036 = vld [vmem:[#allocation14 + $0xfd8] sm:$0xff]
    %v2037 = vld [vmem:[#allocation14 + $0xfe0] sm:$0xff]
    %v2038 = vld [vmem:[#allocation14 + $0xfe8] sm:$0xff]
    %v2039 = vld [vmem:[#allocation14 + $0xff0] sm:$0xff]
    %v2040 = vld [vmem:[#allocation14 + $0xff8] sm:$0xff]
    %v2041 = vld [vmem:[#allocation16] sm:$0xff]
    %v2043 = vlaneseq
    %v2044 = vshrl.u32 %v2043, 7
    %v2045 = vsub.s32 0, %v2044
    %v2046 = vrot.slane %v2041, %v2045
    %v2047 = vlaneseq
    %v2048 = vshrl.u32 %v2047, 7
    %v2049 = vsub.s32 1, %v2048
    %v2050 = vrot.slane %v2041, %v2049
    %v2051 = vlaneseq
    %v2052 = vshrl.u32 %v2051, 7
    %v2053 = vsub.s32 2, %v2052
    %v2054 = vrot.slane %v2041, %v2053
    %v2055 = vlaneseq
    %v2056 = vshrl.u32 %v2055, 7
    %v2057 = vsub.s32 3, %v2056
    %v2058 = vrot.slane %v2041, %v2057
    %v2059 = vlaneseq
    %v2060 = vshrl.u32 %v2059, 7
    %v2061 = vsub.s32 4, %v2060
    %v2062 = vrot.slane %v2041, %v2061
    %v2063 = vlaneseq
    %v2064 = vshrl.u32 %v2063, 7
    %v2065 = vsub.s32 5, %v2064
    %v2066 = vrot.slane %v2041, %v2065
    %v2067 = vlaneseq
    %v2068 = vshrl.u32 %v2067, 7
    %v2069 = vsub.s32 6, %v2068
    %v2070 = vrot.slane %v2041, %v2069
    %v2071 = vlaneseq
    %v2072 = vshrl.u32 %v2071, 7
    %v2073 = vsub.s32 7, %v2072
    %v2074 = vrot.slane %v2041, %v2073
    %2083 = vmatprep.subr.mxu0 %v1530
    %2084 = vmatpush1.msra.mxu0 %v1529
    %2085 = vmatprep.subr.mxu0 %v1538
    %2086 = vmatpush1.msra.mxu0 %v1537
    %2087 = vmatprep.subr.mxu0 %v1546
    %2088 = vmatpush1.msra.mxu0 %v1545
    %2089 = vmatprep.subr.mxu0 %v1554
    %2090 = vmatpush1.msra.mxu0 %v1553
    %2091 = vmatprep.subr.mxu0 %v1562
    %2092 = vmatpush1.msra.mxu0 %v1561
    %2093 = vmatprep.subr.mxu0 %v1570
    %2094 = vmatpush1.msra.mxu0 %v1569
    %2095 = vmatprep.subr.mxu0 %v1578
    %2096 = vmatpush1.msra.mxu0 %v1577
    %2097 = vmatprep.subr.mxu0 %v1586
    %2098 = vmatpush1.msra.mxu0 %v1585
    %2099 = vmatprep.subr.mxu0 %v1594
    %2100 = vmatpush1.msra.mxu0 %v1593
    %2101 = vmatprep.subr.mxu0 %v1602
    %2102 = vmatpush1.msra.mxu0 %v1601
    %2103 = vmatprep.subr.mxu0 %v1610
    %2104 = vmatpush1.msra.mxu0 %v1609
    %2105 = vmatprep.subr.mxu0 %v1618
    %2106 = vmatpush1.msra.mxu0 %v1617
    %2107 = vmatprep.subr.mxu0 %v1626
    %2108 = vmatpush1.msra.mxu0 %v1625
    %2109 = vmatprep.subr.mxu0 %v1634
    %2110 = vmatpush1.msra.mxu0 %v1633
    %2111 = vmatprep.subr.mxu0 %v1642
    %2112 = vmatpush1.msra.mxu0 %v1641
    %2113 = vmatprep.subr.mxu0 %v1650
    %2114 = vmatpush1.msra.mxu0 %v1649
    %2115 = vmatprep.subr.mxu0 %v1658
    %2116 = vmatpush1.msra.mxu0 %v1657
    %2117 = vmatprep.subr.mxu0 %v1666
    %2118 = vmatpush1.msra.mxu0 %v1665
    %2119 = vmatprep.subr.mxu0 %v1674
    %2120 = vmatpush1.msra.mxu0 %v1673
    %2121 = vmatprep.subr.mxu0 %v1682
    %2122 = vmatpush1.msra.mxu0 %v1681
    %2123 = vmatprep.subr.mxu0 %v1690
    %2124 = vmatpush1.msra.mxu0 %v1689
    %2125 = vmatprep.subr.mxu0 %v1698
    %2126 = vmatpush1.msra.mxu0 %v1697
    %2127 = vmatprep.subr.mxu0 %v1706
    %2128 = vmatpush1.msra.mxu0 %v1705
    %2129 = vmatprep.subr.mxu0 %v1714
    %2130 = vmatpush1.msra.mxu0 %v1713
    %2131 = vmatprep.subr.mxu0 %v1722
    %2132 = vmatpush1.msra.mxu0 %v1721
    %2133 = vmatprep.subr.mxu0 %v1730
    %2134 = vmatpush1.msra.mxu0 %v1729
    %2135 = vmatprep.subr.mxu0 %v1738
    %2136 = vmatpush1.msra.mxu0 %v1737
    %2137 = vmatprep.subr.mxu0 %v1746
    %2138 = vmatpush1.msra.mxu0 %v1745
    %2139 = vmatprep.subr.mxu0 %v1754
    %2140 = vmatpush1.msra.mxu0 %v1753
    %2141 = vmatprep.subr.mxu0 %v1762
    %2142 = vmatpush1.msra.mxu0 %v1761
    %2143 = vmatprep.subr.mxu0 %v1770
    %2144 = vmatpush1.msra.mxu0 %v1769
    %2145 = vmatprep.subr.mxu0 %v1778
    %2146 = vmatpush1.msra.mxu0 %v1777
    %2147 = vmatprep.mubr.f32.mxu0 %v1526
    %2148 = vmatmul.mubr.f32.gmra.mrb[0].mxu0 %v1525
    %v2149 = vpop.f32.mrb[0].mxu0
    %v2150 = vadd.f32 %v2046, %v2149
    %v2151 = vpop.f32.mrb[0].mxu0
    %v2152 = vadd.f32 %v2050, %v2151
    %2153 = vdwg.mxu0
    %2154 = vmatprep.subr.mxu0 %v1786
    %2155 = vmatpush1.msra.mxu0 %v1785
    %2156 = vmatprep.subr.mxu0 %v1794
    %2157 = vmatpush1.msra.mxu0 %v1793
    %2158 = vmatprep.subr.mxu0 %v1802
    %2159 = vmatpush1.msra.mxu0 %v1801
    %2160 = vmatprep.subr.mxu0 %v1810
    %2161 = vmatpush1.msra.mxu0 %v1809
    %2162 = vmatprep.subr.mxu0 %v1818
    %2163 = vmatpush1.msra.mxu0 %v1817
    %2164 = vmatprep.subr.mxu0 %v1826
    %2165 = vmatpush1.msra.mxu0 %v1825
    %2166 = vmatprep.subr.mxu0 %v1834
    %2167 = vmatpush1.msra.mxu0 %v1833
    %2168 = vmatprep.subr.mxu0 %v1842
    %2169 = vmatpush1.msra.mxu0 %v1841
    %2170 = vmatprep.subr.mxu0 %v1850
    %2171 = vmatpush1.msra.mxu0 %v1849
    %2172 = vmatprep.subr.mxu0 %v1858
    %2173 = vmatpush1.msra.mxu0 %v1857
    %2174 = vmatprep.subr.mxu0 %v1866
    %2175 = vmatpush1.msra.mxu0 %v1865
    %2176 = vmatprep.subr.mxu0 %v1874
    %2177 = vmatpush1.msra.mxu0 %v1873
    %2178 = vmatprep.subr.mxu0 %v1882
    %2179 = vmatpush1.msra.mxu0 %v1881
    %2180 = vmatprep.subr.mxu0 %v1890
    %2181 = vmatpush1.msra.mxu0 %v1889
    %2182 = vmatprep.subr.mxu0 %v1898
    %2183 = vmatpush1.msra.mxu0 %v1897
    %2184 = vmatprep.subr.mxu0 %v1906
    %2185 = vmatpush1.msra.mxu0 %v1905
    %2186 = vmatprep.subr.mxu0 %v1914
    %2187 = vmatpush1.msra.mxu0 %v1913
    %2188 = vmatprep.subr.mxu0 %v1922
    %2189 = vmatpush1.msra.mxu0 %v1921
    %2190 = vmatprep.subr.mxu0 %v1930
    %2191 = vmatpush1.msra.mxu0 %v1929
    %2192 = vmatprep.subr.mxu0 %v1938
    %2193 = vmatpush1.msra.mxu0 %v1937
    %2194 = vmatprep.subr.mxu0 %v1946
    %2195 = vmatpush1.msra.mxu0 %v1945
    %2196 = vmatprep.subr.mxu0 %v1954
    %2197 = vmatpush1.msra.mxu0 %v1953
    %2198 = vmatprep.subr.mxu0 %v1962
    %2199 = vmatpush1.msra.mxu0 %v1961
    %2200 = vmatprep.subr.mxu0 %v1970
    %2201 = vmatpush1.msra.mxu0 %v1969
    %2202 = vmatprep.subr.mxu0 %v1978
    %2203 = vmatpush1.msra.mxu0 %v1977
    %2204 = vmatprep.subr.mxu0 %v1986
    %2205 = vmatpush1.msra.mxu0 %v1985
    %2206 = vmatprep.subr.mxu0 %v1994
    %2207 = vmatpush1.msra.mxu0 %v1993
    %2208 = vmatprep.subr.mxu0 %v2002
    %2209 = vmatpush1.msra.mxu0 %v2001
    %2210 = vmatprep.subr.mxu0 %v2010
    %2211 = vmatpush1.msra.mxu0 %v2009
    %2212 = vmatprep.subr.mxu0 %v2018
    %2213 = vmatpush1.msra.mxu0 %v2017
    %2214 = vmatprep.subr.mxu0 %v2026
    %2215 = vmatpush1.msra.mxu0 %v2025
    %2216 = vmatprep.subr.mxu0 %v2034
    %2217 = vmatpush1.msra.mxu0 %v2033
    %2218 = vmatprep.mubr.f32.mxu0 %v1528
    %2219 = vmatmul.mubr.f32.gmra.mrb[0].mxu0 %v1527
    %v2220 = vpop.f32.mrb[0].mxu0
    %v2221 = vadd.f32 %v2150, %v2220
    %v2222 = vpop.f32.mrb[0].mxu0
    %v2223 = vadd.f32 %v2152, %v2222
    %2224 = vdwg.mxu0
    %2225 = vmatprep.subr.mxu0 %v1532
    %2226 = vmatpush1.msra.mxu0 %v1531
    %2227 = vmatprep.subr.mxu0 %v1540
    %2228 = vmatpush1.msra.mxu0 %v1539
    %2229 = vmatprep.subr.mxu0 %v1548
    %2230 = vmatpush1.msra.mxu0 %v1547
    %2231 = vmatprep.subr.mxu0 %v1556
    %2232 = vmatpush1.msra.mxu0 %v1555
    %2233 = vmatprep.subr.mxu0 %v1564
    %2234 = vmatpush1.msra.mxu0 %v1563
    %2235 = vmatprep.subr.mxu0 %v1572
    %2236 = vmatpush1.msra.mxu0 %v1571
    %2237 = vmatprep.subr.mxu0 %v1580
    %2238 = vmatpush1.msra.mxu0 %v1579
    %2239 = vmatprep.subr.mxu0 %v1588
    %2240 = vmatpush1.msra.mxu0 %v1587
    %2241 = vmatprep.subr.mxu0 %v1596
    %2242 = vmatpush1.msra.mxu0 %v1595
    %2243 = vmatprep.subr.mxu0 %v1604
    %2244 = vmatpush1.msra.mxu0 %v1603
    %2245 = vmatprep.subr.mxu0 %v1612
    %2246 = vmatpush1.msra.mxu0 %v1611
    %2247 = vmatprep.subr.mxu0 %v1620
    %2248 = vmatpush1.msra.mxu0 %v1619
    %2249 = vmatprep.subr.mxu0 %v1628
    %2250 = vmatpush1.msra.mxu0 %v1627
    %2251 = vmatprep.subr.mxu0 %v1636
    %2252 = vmatpush1.msra.mxu0 %v1635
    %2253 = vmatprep.subr.mxu0 %v1644
    %2254 = vmatpush1.msra.mxu0 %v1643
    %2255 = vmatprep.subr.mxu0 %v1652
    %2256 = vmatpush1.msra.mxu0 %v1651
    %2257 = vmatprep.subr.mxu0 %v1660
    %2258 = vmatpush1.msra.mxu0 %v1659
    %2259 = vmatprep.subr.mxu0 %v1668
    %2260 = vmatpush1.msra.mxu0 %v1667
    %2261 = vmatprep.subr.mxu0 %v1676
    %2262 = vmatpush1.msra.mxu0 %v1675
    %2263 = vmatprep.subr.mxu0 %v1684
    %2264 = vmatpush1.msra.mxu0 %v1683
    %2265 = vmatprep.subr.mxu0 %v1692
    %2266 = vmatpush1.msra.mxu0 %v1691
    %2267 = vmatprep.subr.mxu0 %v1700
    %2268 = vmatpush1.msra.mxu0 %v1699
    %2269 = vmatprep.subr.mxu0 %v1708
    %2270 = vmatpush1.msra.mxu0 %v1707
    %2271 = vmatprep.subr.mxu0 %v1716
    %2272 = vmatpush1.msra.mxu0 %v1715
    %2273 = vmatprep.subr.mxu0 %v1724
    %2274 = vmatpush1.msra.mxu0 %v1723
    %2275 = vmatprep.subr.mxu0 %v1732
    %2276 = vmatpush1.msra.mxu0 %v1731
    %2277 = vmatprep.subr.mxu0 %v1740
    %2278 = vmatpush1.msra.mxu0 %v1739
    %2279 = vmatprep.subr.mxu0 %v1748
    %2280 = vmatpush1.msra.mxu0 %v1747
    %2281 = vmatprep.subr.mxu0 %v1756
    %2282 = vmatpush1.msra.mxu0 %v1755
    %2283 = vmatprep.subr.mxu0 %v1764
    %2284 = vmatpush1.msra.mxu0 %v1763
    %2285 = vmatprep.subr.mxu0 %v1772
    %2286 = vmatpush1.msra.mxu0 %v1771
    %2287 = vmatprep.subr.mxu0 %v1780
    %2288 = vmatpush1.msra.mxu0 %v1779
    %2289 = vmatprep.mubr.f32.mxu0 %v1526
    %2290 = vmatmul.mubr.f32.gmra.mrb[0].mxu0 %v1525
    %v2291 = vpop.f32.mrb[0].mxu0
    %v2292 = vadd.f32 %v2054, %v2291
    %v2293 = vpop.f32.mrb[0].mxu0
    %v2294 = vadd.f32 %v2058, %v2293
    %2295 = vdwg.mxu0
    %2296 = vmatprep.subr.mxu0 %v1788
    %2297 = vmatpush1.msra.mxu0 %v1787
    %2298 = vmatprep.subr.mxu0 %v1796
    %2299 = vmatpush1.msra.mxu0 %v1795
    %2300 = vmatprep.subr.mxu0 %v1804
    %2301 = vmatpush1.msra.mxu0 %v1803
    %2302 = vmatprep.subr.mxu0 %v1812
    %2303 = vmatpush1.msra.mxu0 %v1811
    %2304 = vmatprep.subr.mxu0 %v1820
    %2305 = vmatpush1.msra.mxu0 %v1819
    %2306 = vmatprep.subr.mxu0 %v1828
    %2307 = vmatpush1.msra.mxu0 %v1827
    %2308 = vmatprep.subr.mxu0 %v1836
    %2309 = vmatpush1.msra.mxu0 %v1835
    %2310 = vmatprep.subr.mxu0 %v1844
    %2311 = vmatpush1.msra.mxu0 %v1843
    %2312 = vmatprep.subr.mxu0 %v1852
    %2313 = vmatpush1.msra.mxu0 %v1851
    %2314 = vmatprep.subr.mxu0 %v1860
    %2315 = vmatpush1.msra.mxu0 %v1859
    %2316 = vmatprep.subr.mxu0 %v1868
    %2317 = vmatpush1.msra.mxu0 %v1867
    %2318 = vmatprep.subr.mxu0 %v1876
    %2319 = vmatpush1.msra.mxu0 %v1875
    %2320 = vmatprep.subr.mxu0 %v1884
    %2321 = vmatpush1.msra.mxu0 %v1883
    %2322 = vmatprep.subr.mxu0 %v1892
    %2323 = vmatpush1.msra.mxu0 %v1891
    %2324 = vmatprep.subr.mxu0 %v1900
    %2325 = vmatpush1.msra.mxu0 %v1899
    %2326 = vmatprep.subr.mxu0 %v1908
    %2327 = vmatpush1.msra.mxu0 %v1907
    %2328 = vmatprep.subr.mxu0 %v1916
    %2329 = vmatpush1.msra.mxu0 %v1915
    %2330 = vmatprep.subr.mxu0 %v1924
    %2331 = vmatpush1.msra.mxu0 %v1923
    %2332 = vmatprep.subr.mxu0 %v1932
    %2333 = vmatpush1.msra.mxu0 %v1931
    %2334 = vmatprep.subr.mxu0 %v1940
    %2335 = vmatpush1.msra.mxu0 %v1939
    %2336 = vmatprep.subr.mxu0 %v1948
    %2337 = vmatpush1.msra.mxu0 %v1947
    %2338 = vmatprep.subr.mxu0 %v1956
    %2339 = vmatpush1.msra.mxu0 %v1955
    %2340 = vmatprep.subr.mxu0 %v1964
    %2341 = vmatpush1.msra.mxu0 %v1963
    %2342 = vmatprep.subr.mxu0 %v1972
    %2343 = vmatpush1.msra.mxu0 %v1971
    %2344 = vmatprep.subr.mxu0 %v1980
    %2345 = vmatpush1.msra.mxu0 %v1979
    %2346 = vmatprep.subr.mxu0 %v1988
    %2347 = vmatpush1.msra.mxu0 %v1987
    %2348 = vmatprep.subr.mxu0 %v1996
    %2349 = vmatpush1.msra.mxu0 %v1995
    %2350 = vmatprep.subr.mxu0 %v2004
    %2351 = vmatpush1.msra.mxu0 %v2003
    %2352 = vmatprep.subr.mxu0 %v2012
    %2353 = vmatpush1.msra.mxu0 %v2011
    %2354 = vmatprep.subr.mxu0 %v2020
    %2355 = vmatpush1.msra.mxu0 %v2019
    %2356 = vmatprep.subr.mxu0 %v2028
    %2357 = vmatpush1.msra.mxu0 %v2027
    %2358 = vmatprep.subr.mxu0 %v2036
    %2359 = vmatpush1.msra.mxu0 %v2035
    %2360 = vmatprep.mubr.f32.mxu0 %v1528
    %2361 = vmatmul.mubr.f32.gmra.mrb[0].mxu0 %v1527
    %v2362 = vpop.f32.mrb[0].mxu0
    %v2363 = vadd.f32 %v2292, %v2362
    %v2364 = vpop.f32.mrb[0].mxu0
    %v2365 = vadd.f32 %v2294, %v2364
    %2366 = vdwg.mxu0
    %2367 = vmatprep.subr.mxu0 %v1534
    %2368 = vmatpush1.msra.mxu0 %v1533
    %2369 = vmatprep.subr.mxu0 %v1542
    %2370 = vmatpush1.msra.mxu0 %v1541
    %2371 = vmatprep.subr.mxu0 %v1550
    %2372 = vmatpush1.msra.mxu0 %v1549
    %2373 = vmatprep.subr.mxu0 %v1558
    %2374 = vmatpush1.msra.mxu0 %v1557
    %2375 = vmatprep.subr.mxu0 %v1566
    %2376 = vmatpush1.msra.mxu0 %v1565
    %2377 = vmatprep.subr.mxu0 %v1574
    %2378 = vmatpush1.msra.mxu0 %v1573
    %2379 = vmatprep.subr.mxu0 %v1582
    %2380 = vmatpush1.msra.mxu0 %v1581
    %2381 = vmatprep.subr.mxu0 %v1590
    %2382 = vmatpush1.msra.mxu0 %v1589
    %2383 = vmatprep.subr.mxu0 %v1598
    %2384 = vmatpush1.msra.mxu0 %v1597
    %2385 = vmatprep.subr.mxu0 %v1606
    %2386 = vmatpush1.msra.mxu0 %v1605
    %2387 = vmatprep.subr.mxu0 %v1614
    %2388 = vmatpush1.msra.mxu0 %v1613
    %2389 = vmatprep.subr.mxu0 %v1622
    %2390 = vmatpush1.msra.mxu0 %v1621
    %2391 = vmatprep.subr.mxu0 %v1630
    %2392 = vmatpush1.msra.mxu0 %v1629
    %2393 = vmatprep.subr.mxu0 %v1638
    %2394 = vmatpush1.msra.mxu0 %v1637
    %2395 = vmatprep.subr.mxu0 %v1646
    %2396 = vmatpush1.msra.mxu0 %v1645
    %2397 = vmatprep.subr.mxu0 %v1654
    %2398 = vmatpush1.msra.mxu0 %v1653
    %2399 = vmatprep.subr.mxu0 %v1662
    %2400 = vmatpush1.msra.mxu0 %v1661
    %2401 = vmatprep.subr.mxu0 %v1670
    %2402 = vmatpush1.msra.mxu0 %v1669
    %2403 = vmatprep.subr.mxu0 %v1678
    %2404 = vmatpush1.msra.mxu0 %v1677
    %2405 = vmatprep.subr.mxu0 %v1686
    %2406 = vmatpush1.msra.mxu0 %v1685
    %2407 = vmatprep.subr.mxu0 %v1694
    %2408 = vmatpush1.msra.mxu0 %v1693
    %2409 = vmatprep.subr.mxu0 %v1702
    %2410 = vmatpush1.msra.mxu0 %v1701
    %2411 = vmatprep.subr.mxu0 %v1710
    %2412 = vmatpush1.msra.mxu0 %v1709
    %2413 = vmatprep.subr.mxu0 %v1718
    %2414 = vmatpush1.msra.mxu0 %v1717
    %2415 = vmatprep.subr.mxu0 %v1726
    %2416 = vmatpush1.msra.mxu0 %v1725
    %2417 = vmatprep.subr.mxu0 %v1734
    %2418 = vmatpush1.msra.mxu0 %v1733
    %2419 = vmatprep.subr.mxu0 %v1742
    %2420 = vmatpush1.msra.mxu0 %v1741
    %2421 = vmatprep.subr.mxu0 %v1750
    %2422 = vmatpush1.msra.mxu0 %v1749
    %2423 = vmatprep.subr.mxu0 %v1758
    %2424 = vmatpush1.msra.mxu0 %v1757
    %2425 = vmatprep.subr.mxu0 %v1766
    %2426 = vmatpush1.msra.mxu0 %v1765
    %2427 = vmatprep.subr.mxu0 %v1774
    %2428 = vmatpush1.msra.mxu0 %v1773
    %2429 = vmatprep.subr.mxu0 %v1782
    %2430 = vmatpush1.msra.mxu0 %v1781
    %2431 = vmatprep.mubr.f32.mxu0 %v1526
    %2432 = vmatmul.mubr.f32.gmra.mrb[0].mxu0 %v1525
    %v2433 = vpop.f32.mrb[0].mxu0
    %v2434 = vadd.f32 %v2062, %v2433
    %v2435 = vpop.f32.mrb[0].mxu0
    %v2436 = vadd.f32 %v2066, %v2435
    %2437 = vdwg.mxu0
    %2438 = vmatprep.subr.mxu0 %v1790
    %2439 = vmatpush1.msra.mxu0 %v1789
    %2440 = vmatprep.subr.mxu0 %v1798
    %2441 = vmatpush1.msra.mxu0 %v1797
    %2442 = vmatprep.subr.mxu0 %v1806
    %2443 = vmatpush1.msra.mxu0 %v1805
    %2444 = vmatprep.subr.mxu0 %v1814
    %2445 = vmatpush1.msra.mxu0 %v1813
    %2446 = vmatprep.subr.mxu0 %v1822
    %2447 = vmatpush1.msra.mxu0 %v1821
    %2448 = vmatprep.subr.mxu0 %v1830
    %2449 = vmatpush1.msra.mxu0 %v1829
    %2450 = vmatprep.subr.mxu0 %v1838
    %2451 = vmatpush1.msra.mxu0 %v1837
    %2452 = vmatprep.subr.mxu0 %v1846
    %2453 = vmatpush1.msra.mxu0 %v1845
    %2454 = vmatprep.subr.mxu0 %v1854
    %2455 = vmatpush1.msra.mxu0 %v1853
    %2456 = vmatprep.subr.mxu0 %v1862
    %2457 = vmatpush1.msra.mxu0 %v1861
    %2458 = vmatprep.subr.mxu0 %v1870
    %2459 = vmatpush1.msra.mxu0 %v1869
    %2460 = vmatprep.subr.mxu0 %v1878
    %2461 = vmatpush1.msra.mxu0 %v1877
    %2462 = vmatprep.subr.mxu0 %v1886
    %2463 = vmatpush1.msra.mxu0 %v1885
    %2464 = vmatprep.subr.mxu0 %v1894
    %2465 = vmatpush1.msra.mxu0 %v1893
    %2466 = vmatprep.subr.mxu0 %v1902
    %2467 = vmatpush1.msra.mxu0 %v1901
    %2468 = vmatprep.subr.mxu0 %v1910
    %2469 = vmatpush1.msra.mxu0 %v1909
    %2470 = vmatprep.subr.mxu0 %v1918
    %2471 = vmatpush1.msra.mxu0 %v1917
    %2472 = vmatprep.subr.mxu0 %v1926
    %2473 = vmatpush1.msra.mxu0 %v1925
    %2474 = vmatprep.subr.mxu0 %v1934
    %2475 = vmatpush1.msra.mxu0 %v1933
    %2476 = vmatprep.subr.mxu0 %v1942
    %2477 = vmatpush1.msra.mxu0 %v1941
    %2478 = vmatprep.subr.mxu0 %v1950
    %2479 = vmatpush1.msra.mxu0 %v1949
    %2480 = vmatprep.subr.mxu0 %v1958
    %2481 = vmatpush1.msra.mxu0 %v1957
    %2482 = vmatprep.subr.mxu0 %v1966
    %2483 = vmatpush1.msra.mxu0 %v1965
    %2484 = vmatprep.subr.mxu0 %v1974
    %2485 = vmatpush1.msra.mxu0 %v1973
    %2486 = vmatprep.subr.mxu0 %v1982
    %2487 = vmatpush1.msra.mxu0 %v1981
    %2488 = vmatprep.subr.mxu0 %v1990
    %2489 = vmatpush1.msra.mxu0 %v1989
    %2490 = vmatprep.subr.mxu0 %v1998
    %2491 = vmatpush1.msra.mxu0 %v1997
    %2492 = vmatprep.subr.mxu0 %v2006
    %2493 = vmatpush1.msra.mxu0 %v2005
    %2494 = vmatprep.subr.mxu0 %v2014
    %2495 = vmatpush1.msra.mxu0 %v2013
    %2496 = vmatprep.subr.mxu0 %v2022
    %2497 = vmatpush1.msra.mxu0 %v2021
    %2498 = vmatprep.subr.mxu0 %v2030
    %2499 = vmatpush1.msra.mxu0 %v2029
    %2500 = vmatprep.subr.mxu0 %v2038
    %2501 = vmatpush1.msra.mxu0 %v2037
    %2502 = vmatprep.mubr.f32.mxu0 %v1528
    %2503 = vmatmul.mubr.f32.gmra.mrb[0].mxu0 %v1527
    %v2504 = vpop.f32.mrb[0].mxu0
    %v2505 = vadd.f32 %v2434, %v2504
    %v2506 = vpop.f32.mrb[0].mxu0
    %v2507 = vadd.f32 %v2436, %v2506
    %2508 = vdwg.mxu0
    %2509 = vmatprep.subr.mxu0 %v1536
    %2510 = vmatpush1.msra.mxu0 %v1535
    %2511 = vmatprep.subr.mxu0 %v1544
    %2512 = vmatpush1.msra.mxu0 %v1543
    %2513 = vmatprep.subr.mxu0 %v1552
    %2514 = vmatpush1.msra.mxu0 %v1551
    %2515 = vmatprep.subr.mxu0 %v1560
    %2516 = vmatpush1.msra.mxu0 %v1559
    %2517 = vmatprep.subr.mxu0 %v1568
    %2518 = vmatpush1.msra.mxu0 %v1567
    %2519 = vmatprep.subr.mxu0 %v1576
    %2520 = vmatpush1.msra.mxu0 %v1575
    %2521 = vmatprep.subr.mxu0 %v1584
    %2522 = vmatpush1.msra.mxu0 %v1583
    %2523 = vmatprep.subr.mxu0 %v1592
    %2524 = vmatpush1.msra.mxu0 %v1591
    %2525 = vmatprep.subr.mxu0 %v1600
    %2526 = vmatpush1.msra.mxu0 %v1599
    %2527 = vmatprep.subr.mxu0 %v1608
    %2528 = vmatpush1.msra.mxu0 %v1607
    %2529 = vmatprep.subr.mxu0 %v1616
    %2530 = vmatpush1.msra.mxu0 %v1615
    %2531 = vmatprep.subr.mxu0 %v1624
    %2532 = vmatpush1.msra.mxu0 %v1623
    %2533 = vmatprep.subr.mxu0 %v1632
    %2534 = vmatpush1.msra.mxu0 %v1631
    %2535 = vmatprep.subr.mxu0 %v1640
    %2536 = vmatpush1.msra.mxu0 %v1639
    %2537 = vmatprep.subr.mxu0 %v1648
    %2538 = vmatpush1.msra.mxu0 %v1647
    %2539 = vmatprep.subr.mxu0 %v1656
    %2540 = vmatpush1.msra.mxu0 %v1655
    %2541 = vmatprep.subr.mxu0 %v1664
    %2542 = vmatpush1.msra.mxu0 %v1663
    %2543 = vmatprep.subr.mxu0 %v1672
    %2544 = vmatpush1.msra.mxu0 %v1671
    %2545 = vmatprep.subr.mxu0 %v1680
    %2546 = vmatpush1.msra.mxu0 %v1679
    %2547 = vmatprep.subr.mxu0 %v1688
    %2548 = vmatpush1.msra.mxu0 %v1687
    %2549 = vmatprep.subr.mxu0 %v1696
    %2550 = vmatpush1.msra.mxu0 %v1695
    %2551 = vmatprep.subr.mxu0 %v1704
    %2552 = vmatpush1.msra.mxu0 %v1703
    %2553 = vmatprep.subr.mxu0 %v1712
    %2554 = vmatpush1.msra.mxu0 %v1711
    %2555 = vmatprep.subr.mxu0 %v1720
    %2556 = vmatpush1.msra.mxu0 %v1719
    %2557 = vmatprep.subr.mxu0 %v1728
    %2558 = vmatpush1.msra.mxu0 %v1727
    %2559 = vmatprep.subr.mxu0 %v1736
    %2560 = vmatpush1.msra.mxu0 %v1735
    %2561 = vmatprep.subr.mxu0 %v1744
    %2562 = vmatpush1.msra.mxu0 %v1743
    %2563 = vmatprep.subr.mxu0 %v1752
    %2564 = vmatpush1.msra.mxu0 %v1751
    %2565 = vmatprep.subr.mxu0 %v1760
    %2566 = vmatpush1.msra.mxu0 %v1759
    %2567 = vmatprep.subr.mxu0 %v1768
    %2568 = vmatpush1.msra.mxu0 %v1767
    %2569 = vmatprep.subr.mxu0 %v1776
    %2570 = vmatpush1.msra.mxu0 %v1775
    %2571 = vmatprep.subr.mxu0 %v1784
    %2572 = vmatpush1.msra.mxu0 %v1783
    %2573 = vmatprep.mubr.f32.mxu0 %v1526
    %2574 = vmatmul.mubr.f32.gmra.mrb[0].mxu0 %v1525
    %v2575 = vpop.f32.mrb[0].mxu0
    %v2576 = vadd.f32 %v2070, %v2575
    %v2577 = vpop.f32.mrb[0].mxu0
    %v2578 = vadd.f32 %v2074, %v2577
    %2579 = vdwg.mxu0
    %2580 = vmatprep.subr.mxu0 %v1792
    %2581 = vmatpush1.msra.mxu0 %v1791
    %2582 = vmatprep.subr.mxu0 %v1800
    %2583 = vmatpush1.msra.mxu0 %v1799
    %2584 = vmatprep.subr.mxu0 %v1808
    %2585 = vmatpush1.msra.mxu0 %v1807
    %2586 = vmatprep.subr.mxu0 %v1816
    %2587 = vmatpush1.msra.mxu0 %v1815
    %2588 = vmatprep.subr.mxu0 %v1824
    %2589 = vmatpush1.msra.mxu0 %v1823
    %2590 = vmatprep.subr.mxu0 %v1832
    %2591 = vmatpush1.msra.mxu0 %v1831
    %2592 = vmatprep.subr.mxu0 %v1840
    %2593 = vmatpush1.msra.mxu0 %v1839
    %2594 = vmatprep.subr.mxu0 %v1848
    %2595 = vmatpush1.msra.mxu0 %v1847
    %2596 = vmatprep.subr.mxu0 %v1856
    %2597 = vmatpush1.msra.mxu0 %v1855
    %2598 = vmatprep.subr.mxu0 %v1864
    %2599 = vmatpush1.msra.mxu0 %v1863
    %2600 = vmatprep.subr.mxu0 %v1872
    %2601 = vmatpush1.msra.mxu0 %v1871
    %2602 = vmatprep.subr.mxu0 %v1880
    %2603 = vmatpush1.msra.mxu0 %v1879
    %2604 = vmatprep.subr.mxu0 %v1888
    %2605 = vmatpush1.msra.mxu0 %v1887
    %2606 = vmatprep.subr.mxu0 %v1896
    %2607 = vmatpush1.msra.mxu0 %v1895
    %2608 = vmatprep.subr.mxu0 %v1904
    %2609 = vmatpush1.msra.mxu0 %v1903
    %2610 = vmatprep.subr.mxu0 %v1912
    %2611 = vmatpush1.msra.mxu0 %v1911
    %2612 = vmatprep.subr.mxu0 %v1920
    %2613 = vmatpush1.msra.mxu0 %v1919
    %2614 = vmatprep.subr.mxu0 %v1928
    %2615 = vmatpush1.msra.mxu0 %v1927
    %2616 = vmatprep.subr.mxu0 %v1936
    %2617 = vmatpush1.msra.mxu0 %v1935
    %2618 = vmatprep.subr.mxu0 %v1944
    %2619 = vmatpush1.msra.mxu0 %v1943
    %2620 = vmatprep.subr.mxu0 %v1952
    %2621 = vmatpush1.msra.mxu0 %v1951
    %2622 = vmatprep.subr.mxu0 %v1960
    %2623 = vmatpush1.msra.mxu0 %v1959
    %2624 = vmatprep.subr.mxu0 %v1968
    %2625 = vmatpush1.msra.mxu0 %v1967
    %2626 = vmatprep.subr.mxu0 %v1976
    %2627 = vmatpush1.msra.mxu0 %v1975
    %2628 = vmatprep.subr.mxu0 %v1984
    %2629 = vmatpush1.msra.mxu0 %v1983
    %2630 = vmatprep.subr.mxu0 %v1992
    %2631 = vmatpush1.msra.mxu0 %v1991
    %2632 = vmatprep.subr.mxu0 %v2000
    %2633 = vmatpush1.msra.mxu0 %v1999
    %2634 = vmatprep.subr.mxu0 %v2008
    %2635 = vmatpush1.msra.mxu0 %v2007
    %2636 = vmatprep.subr.mxu0 %v2016
    %2637 = vmatpush1.msra.mxu0 %v2015
    %2638 = vmatprep.subr.mxu0 %v2024
    %2639 = vmatpush1.msra.mxu0 %v2023
    %2640 = vmatprep.subr.mxu0 %v2032
    %2641 = vmatpush1.msra.mxu0 %v2031
    %2642 = vmatprep.subr.mxu0 %v2040
    %2643 = vmatpush1.msra.mxu0 %v2039
    %2644 = vmatprep.mubr.f32.mxu0 %v1528
    %2645 = vmatmul.mubr.f32.gmra.mrb[0].mxu0 %v1527
    %v2646 = vpop.f32.mrb[0].mxu0
    %v2647 = vadd.f32 %v2576, %v2646
    %v2648 = vpop.f32.mrb[0].mxu0
    %v2649 = vadd.f32 %v2578, %v2648
    %2650 = vdwg.mxu0
    %2651 = vst [vmem:[#allocation17] sm:$0xff] %v2221
    %2652 = vst [vmem:[#allocation17 + $0x8] sm:$0xff] %v2223
    %2653 = vst [vmem:[#allocation17 + $0x10] sm:$0xff] %v2363
    %2654 = vst [vmem:[#allocation17 + $0x18] sm:$0xff] %v2365
    %2655 = vst [vmem:[#allocation17 + $0x20] sm:$0xff] %v2505
    %2656 = vst [vmem:[#allocation17 + $0x28] sm:$0xff] %v2507
    %2657 = vst [vmem:[#allocation17 + $0x30] sm:$0xff] %v2647
    %2658 = vst [vmem:[#allocation17 + $0x38] sm:$0xff] %v2649
    // Predicated region
    $region74: #{tpu_custom_call.1} parent=1 // pred_check
      _
    $region75: #{tpu_custom_call.1} parent=1 // pred_check_branch
      %2660 = sbr.rel (0) target = $region77
    $region76: #{tpu_custom_call.1} parent=1 // pred_region
      %s2662 = ssub.s32 1024, 1024
      %2663 = vsyncadd [#allocation4], %s2662
      %s2665 = sshll.u32 [#allocation17], 4
      %s2666 = int_to_ptr.vmem [resolvable:$true] %s2665
      %2668 = dma.vmem_to_hbm [thread:$0]  %s2666, 1024, %s9, [#allocation4]
    $region77: #{tpu_custom_call.1} parent=1 // pred_fallthru
      _
    // Predicated region
    $region78: #{tpu_custom_call.1} parent=1 // pred_check
      _
    $region79: #{tpu_custom_call.1} parent=1 // pred_check_branch
      %2670 = sbr.rel (0) target = $region81
    $region80: #{tpu_custom_call.1} parent=1 // pred_region
      %2671 = dma.done [#allocation4], 1024
    $region81: #{tpu_custom_call.1} parent=1 // pred_fallthru
      _
    %2672 = vsyncpa [#allocation3], 1
    %2673 = vsyncpa [#allocation6], 1
    %2674 = vsyncpa [#allocation9], 1
    %2675 = vsyncpa [#allocation12], 1
    %2676 = vsyncpa [#allocation15], 1
    %2677 = vsyncpa [#allocation4], 1

</llo_original>
